<compile_context>
chip_gen: v7x
topology: tpu7x:2x2x1
jax: 0.10.0
libtpu: 0.0.40
codegen_flags: <defaults>
</compile_context>

<pallas_src>
import functools

import jax
import jax.numpy as jnp
from jax import lax
from jax.experimental import pallas as pl
from jax.experimental.pallas import tpu as pltpu

BN_EPS = 1e-5
COMPUTE_DTYPE = jnp.bfloat16          # MXU operand dtype; accumulation is always f32


def _vmem_capacity_bytes():
    try:
        return int(pltpu.get_tpu_info().vmem_capacity_bytes)
    except Exception:
        return 64 * 1024 * 1024       # conservative (v7x per-core) fallback


def _pick_cin_chunk(cin, max_chunk):
    """Largest multiple-of-128 divisor of cin that is <= max_chunk (else full cin)."""
    if cin <= max_chunk or cin % 128 != 0:
        return cin
    for cand in range(max_chunk, 0, -128):
        if cin % cand == 0:
            return cand
    return cin


# --------------------------------------------------------------------------
# Fused kernel
# --------------------------------------------------------------------------
def _psp_head_kernel(xp_ref, w5_ref, b5_ref, wtp_ref, btp_ref,
                     wgc_ref, bgc_ref, wext_ref, bngb_ref, w6_ref, b6_ref,
                     o_ref, acc_ref, *, H, W, Wp, inter, num_node, npad, k_tiles):
    """conv5(3x3+BN+ReLU) -> Global_Reason_Unit -> conv6 for one batch element.

    grid = (B, K): b -> "parallel", k -> Cin-chunk reduction ("arbitrary", innermost).
      xp_ref  : (1, (H+2)*Wp, TC) bf16  zero-padded input rows, Cin chunk k
      w5_ref  : (3, TC, 3*inter)  bf16  conv5 weights, BN scale folded, 3 dx taps
                                        concatenated along the output dim
      b5_ref  : (1, inter)        f32   folded conv5 BN bias
      wtp_ref : (inter, npad+ns)  bf16  [conv_theta (node-padded) | conv_phi]
      btp_ref : (1, npad+ns)      f32   theta|phi bias (padded node cols are 0)
      wgc/bgc : GCN weight/bias (f32);  wext: extend_dim with GloRe-BN scale folded
      bngb    : folded GloRe BN bias;   w6/b6: conv6, channels-major, padded
      o_ref   : (1, OCP, H*W)     f32   conv6 output, channels-major (lane-dense)
      acc_ref : (H*Wp, 3*inter)   f32   conv5 accumulator (persists over k)
    """

    def conv5_step():
        # 3 wide matmuls per chunk (one per dy); dy slabs are 8-aligned leading-dim
        # slices of the flattened padded image -> no per-tap slice+reshape copies.
        xp = xp_ref[0]                                      # ((H+2)*Wp, TC) bf16
        tc = xp.shape[1]
        for dy in range(3):
            rows = lax.slice(xp, (dy * Wp, 0), (dy * Wp + H * Wp, tc))
            acc_ref[...] += jnp.dot(rows, w5_ref[dy],
                                    preferred_element_type=jnp.float32)

    def gloru_conv6_epilogue():
        cdt = COMPUTE_DTYPE
        # conv5 epilogue: dx-shifted column-group extraction (once), BN bias, ReLU.
        a3 = acc_ref[...].reshape(H, Wp, 3 * inter)
        s = (a3[:, 0:W, 0:inter]
             + a3[:, 1:W + 1, inter:2 * inter]
             + a3[:, 2:W + 2, 2 * inter:3 * inter])
        feat = jnp.maximum(s.reshape(H * W, inter) + b5_ref[...], 0.0)   # (HW, inter) f32
        feat_b = feat.astype(cdt)

        # conv_theta + conv_phi fused into one matmul; split at lane-aligned npad.
        tp = jnp.dot(feat_b, wtp_ref[...],
                     preferred_element_type=jnp.float32) + btp_ref[...]
        theta = tp[:, :npad]                   # (HW, npad) f32; padded cols are 0
        phi = tp[:, npad:]                     # (HW, num_state) f32

        # V = theta^T @ phi / HW  (theta kept in f32 here for accuracy).
        gc_in = lax.dot_general(theta, phi, (((0,), (0,)), ((), ())),
                                preferred_element_type=jnp.float32) * (1.0 / (H * W))

        # adjacency = softmax(l2norm(V) @ l2norm(V)^T); padded node columns masked.
        xn = gc_in * lax.rsqrt(jnp.sum(gc_in * gc_in, axis=-1, keepdims=True) + 1e-24)
        sim = lax.dot_general(xn, xn, (((1,), (1,)), ((), ())),
                              preferred_element_type=jnp.float32)
        col = lax.broadcasted_iota(jnp.int32, sim.shape, 1)
        sim = jnp.where(col < num_node, sim, -jnp.inf)
        e = jnp.exp(sim - jnp.max(sim, axis=-1, keepdims=True))
        adj = e * pl.reciprocal(jnp.sum(e, axis=-1, keepdims=True), approx=True)

        # GCN + residual.  Padded gc rows carry junk but are annihilated below
        # because the matching theta columns (weight AND bias) are exactly zero.
        support = jnp.dot(gc_in, wgc_ref[...], preferred_element_type=jnp.float32)
        gc_out = (jnp.dot(adj, support, preferred_element_type=jnp.float32)
                  + bgc_ref[...] + gc_in)

        # Back-project to pixels; extend_dim (GloRe BN folded) + residual.
        y = jnp.dot(theta.astype(cdt), gc_out.astype(cdt),
                    preferred_element_type=jnp.float32)
        gl = (jnp.dot(y.astype(cdt), wext_ref[...],
                      preferred_element_type=jnp.float32)
              + bngb_ref[...] + feat)

        # conv6 (1x1 + bias), channels-major so the HBM store is lane-dense (HW).
        # TODO(synk): Dropout2d(p=0.1) before conv6 is identity (eval-mode forward).
        out = lax.dot_general(w6_ref[...], gl.astype(cdt), (((1,), (1,)), ((), ())),
                              preferred_element_type=jnp.float32)
        o_ref[0] = (out + b6_ref[...]).astype(o_ref.dtype)

    if k_tiles == 1:
        acc_ref[...] = jnp.zeros_like(acc_ref)
        conv5_step()
        gloru_conv6_epilogue()
    else:
        k = pl.program_id(1)

        @pl.when(k == 0)
        def _():
            acc_ref[...] = jnp.zeros_like(acc_ref)

        conv5_step()

        @pl.when(k == pl.num_programs(1) - 1)
        def _():
            gloru_conv6_epilogue()


# --------------------------------------------------------------------------
# Parameters (deterministic, PyTorch-shaped)
# --------------------------------------------------------------------------
def make_params(key, in_channels, out_channels, num_state=256, num_node=84):
    inter = in_channels // 4
    ks = jax.random.split(key, 10)

    def u(k, shape, scale):
        return jax.random.uniform(k, shape, jnp.float32, -scale, scale)

    p = {}
    p['w5'] = u(ks[0], (inter, in_channels, 3, 3), 1.0 / (in_channels * 9) ** 0.5)
    p['bn5_gamma'] = jnp.ones((inter,), jnp.float32)
    p['bn5_beta'] = jnp.zeros((inter,), jnp.float32)
    p['bn5_mean'] = jnp.zeros((inter,), jnp.float32)
    p['bn5_var'] = jnp.ones((inter,), jnp.float32)
    p['w_theta'] = u(ks[1], (num_node, inter, 1, 1), 1.0 / inter ** 0.5)
    p['b_theta'] = u(ks[2], (num_node,), 1.0 / inter ** 0.5)
    p['w_phi'] = u(ks[3], (num_state, inter, 1, 1), 1.0 / inter ** 0.5)
    p['b_phi'] = u(ks[4], (num_state,), 1.0 / inter ** 0.5)
    stdv = 1.0 / num_state ** 0.5
    p['w_gc'] = u(ks[5], (num_state, num_state), stdv)
    p['b_gc'] = u(ks[6], (num_state,), stdv)
    # nn.init.constant_(bn.weight, 0); nn.init.constant_(bn.bias, 0)
    p['bn_g_gamma'] = jnp.zeros((inter,), jnp.float32)
    p['bn_g_beta'] = jnp.zeros((inter,), jnp.float32)
    p['bn_g_mean'] = jnp.zeros((inter,), jnp.float32)
    p['bn_g_var'] = jnp.ones((inter,), jnp.float32)
    p['w_ext'] = u(ks[7], (inter, num_state, 1, 1), 1.0 / num_state ** 0.5)
    p['w6'] = u(ks[8], (out_channels, inter, 1, 1), 1.0 / inter ** 0.5)
    p['b6'] = u(ks[9], (out_channels,), 1.0 / inter ** 0.5)
    return p


# --------------------------------------------------------------------------
# Pallas forward (wrapper)
# --------------------------------------------------------------------------
def psp_head_forward(x, params, num_state=256, num_node=84):
    B, Cin, H, W = x.shape
    inter = params['w5'].shape[0]
    out_channels = params['w6'].shape[0]
    HW = H * W
    npad = ((num_node + 127) // 128) * 128        # lane-dense padded node dimension
    assert num_node <= npad
    ocp = max(8, ((out_channels + 7) // 8) * 8)   # sublane-padded conv6 channels
    Wp = ((W + 2 + 7) // 8) * 8                   # padded width -> 8-aligned dy slabs
    cdt = COMPUTE_DTYPE
    ns = num_state

    vmem_cap = _vmem_capacity_bytes()
    vmem_limit = int(min(vmem_cap * 3 // 4, 100 * 1024 * 1024))
    # Smaller Cin chunks on small-VMEM parts (e.g. v7x: 64 MiB per core).
    tc = _pick_cin_chunk(Cin, 512 if vmem_cap >= 96 * 1024 * 1024 else 256)
    k_tiles = Cin // tc

    # ---- conv5 operands: cast to bf16 BEFORE the layout ops, pad, flatten rows. ----
    x_nhwc = jnp.transpose(x, (0, 2, 3, 1)).astype(cdt)
    xpad = jnp.pad(x_nhwc, ((0, 0), (1, 1), (1, Wp - W - 1), (0, 0)))
    xp2d = xpad.reshape(B, (H + 2) * Wp, Cin)

    # conv5 weights with BN scale folded; the 3 dx taps concatenated along N:
    #   w5cat[dy, cin, dx*inter + cout] = w5[cout, cin, dy, dx] * bn_scale[cout]
    bn5_scale = params['bn5_gamma'] / jnp.sqrt(params['bn5_var'] + BN_EPS)
    bn5_bias = (params['bn5_beta'] - params['bn5_mean'] * bn5_scale).reshape(1, inter)
    w5 = jnp.transpose(params['w5'], (2, 3, 1, 0)) * bn5_scale           # (3,3,Cin,inter)
    w5cat = jnp.transpose(w5, (0, 2, 1, 3)).reshape(3, Cin, 3 * inter).astype(cdt)

    # ---- GloRe / conv6 operands. ----
    # conv_theta is node-padded to npad: padded weight AND bias columns are exactly
    # zero, so padded gc rows are annihilated in the theta back-projection.
    wtp = jnp.zeros((inter, npad + ns), jnp.float32)
    wtp = wtp.at[:, :num_node].set(params['w_theta'].reshape(num_node, inter).T)
    wtp = wtp.at[:, npad:].set(params['w_phi'].reshape(ns, inter).T)
    btp = jnp.zeros((1, npad + ns), jnp.float32)
    btp = btp.at[0, :num_node].set(params['b_theta'])
    btp = btp.at[0, npad:].set(params['b_phi'])
    wtp = wtp.astype(cdt)

    w_gc = params['w_gc']
    b_gc = params['b_gc'].reshape(1, ns)
    bng_scale = params['bn_g_gamma'] / jnp.sqrt(params['bn_g_var'] + BN_EPS)
    bng_bias = (params['bn_g_beta'] - params['bn_g_mean'] * bng_scale).reshape(1, inter)
    w_ext = (params['w_ext'].reshape(inter, ns).T * bng_scale).astype(cdt)  # (ns, inter)
    w6_p = jnp.zeros((ocp, inter), jnp.float32).at[:out_channels].set(
        params['w6'].reshape(out_channels, inter)).astype(cdt)
    b6_p = jnp.zeros((ocp, 1), jnp.float32).at[:out_channels, 0].set(params['b6'])

    def _const(shape):
        zeros = (0,) * len(shape)
        return pl.BlockSpec(shape, lambda b, k: zeros)

    mm = (HW * inter * (npad + ns)        # theta|phi projection
          + npad * HW * ns                # theta^T @ phi
          + npad * ns * npad              # sim
          + npad * ns * ns                # gc_in @ W
          + npad * npad * ns              # adj @ support
          + HW * npad * ns                # back-projection
          + HW * ns * inter               # extend_dim
          + HW * inter * ocp)             # conv6
    cost = pl.CostEstimate(
        flops=int(2 * B * (3 * H * Wp * Cin * 3 * inter + mm)),
        transcendentals=int(B * (npad * npad + 2 * npad)),
        bytes_accessed=int(xp2d.size * 2 + B * ocp * HW * 4
                           + B * (w5cat.size + wtp.size + w_ext.size + w6_p.size) * 2
                           + B * w_gc.size * 4))

    out_chw = pl.pallas_call(
        functools.partial(_psp_head_kernel, H=H, W=W, Wp=Wp, inter=inter,
                          num_node=num_node, npad=npad, k_tiles=k_tiles),
        out_shape=jax.ShapeDtypeStruct((B, ocp, HW), jnp.float32),
        grid=(B, k_tiles),
        in_specs=[pl.BlockSpec((1, (H + 2) * Wp, tc), lambda b, k: (b, 0, k)),
                  pl.BlockSpec((3, tc, 3 * inter), lambda b, k: (0, k, 0)),
                  _const((1, inter)),
                  _const((inter, npad + ns)), _const((1, npad + ns)),
                  _const((ns, ns)), _const((1, ns)),
                  _const((ns, inter)), _const((1, inter)),
                  _const((ocp, inter)), _const((ocp, 1))],
        out_specs=pl.BlockSpec((1, ocp, HW), lambda b, k: (b, 0, 0)),
        scratch_shapes=[pltpu.VMEM((H * Wp, 3 * inter), jnp.float32)],
        compiler_params=pltpu.CompilerParams(
            dimension_semantics=("parallel", "arbitrary"),
            vmem_limit_bytes=vmem_limit),
        cost_estimate=cost,
    )(xp2d, w5cat, bn5_bias, wtp, btp, w_gc, b_gc, w_ext, bng_bias, w6_p, b6_p)

    # Output is already channels-major; drop the channel padding, reshape to NCHW.
    return out_chw[:, :out_channels, :].reshape(B, out_channels, H, W)


# --------------------------------------------------------------------------
# Pure-JAX f32 reference (same math, for verification)
# --------------------------------------------------------------------------
def psp_head_reference(x, params, num_state=256, num_node=84):
    pm = functools.partial(jnp.matmul, precision=lax.Precision.HIGHEST)
    B, Cin, H, W = x.shape
    inter = params['w5'].shape[0]
    HW = H * W
    x_nhwc = jnp.transpose(x, (0, 2, 3, 1)).astype(jnp.float32)
    xp = jnp.pad(x_nhwc, ((0, 0), (1, 1), (1, 1), (0, 0)))
    patches = jnp.concatenate(
        [xp[:, dy:dy + H, dx:dx + W, :] for dy in range(3) for dx in range(3)], -1)
    w5_mat = jnp.transpose(params['w5'], (2, 3, 1, 0)).reshape(9 * Cin, inter)
    y = pm(patches.reshape(B * HW, 9 * Cin), w5_mat)
    sc = params['bn5_gamma'] / jnp.sqrt(params['bn5_var'] + BN_EPS)
    y = y * sc + (params['bn5_beta'] - params['bn5_mean'] * sc)
    feat = jnp.maximum(y, 0.0).reshape(B, HW, inter)

    w_theta = params['w_theta'].reshape(num_node, inter)
    w_phi = params['w_phi'].reshape(num_state, inter)
    Bf = pm(feat, w_theta.T) + params['b_theta']
    phi = pm(feat, w_phi.T) + params['b_phi']
    gc_in = pm(jnp.swapaxes(Bf, 1, 2), phi) / HW
    nrm = jnp.sqrt(jnp.sum(gc_in * gc_in, axis=-1, keepdims=True))
    xn = gc_in / jnp.maximum(nrm, 1e-12)
    adj = jax.nn.softmax(pm(xn, jnp.swapaxes(xn, 1, 2)), axis=-1)
    gc_out = pm(adj, pm(gc_in, params['w_gc'])) + params['b_gc'] + gc_in
    Y = pm(Bf, gc_out)
    w_ext = params['w_ext'].reshape(inter, num_state)
    Yext = pm(Y, w_ext.T)
    gsc = params['bn_g_gamma'] / jnp.sqrt(params['bn_g_var'] + BN_EPS)
    gl = Yext * gsc + (params['bn_g_beta'] - params['bn_g_mean'] * gsc) + feat
    w6 = params['w6'].reshape(-1, inter)
    out = pm(gl, w6.T) + params['b6']
    return jnp.transpose(out.reshape(B, H, W, -1), (0, 3, 1, 2))


if __name__ == "__main__":
    key = jax.random.PRNGKey(0)
    kx, kp = jax.random.split(key)
    B, in_channels, H, W = 2, 128, 16, 16      # inter_channels = 32
    out_channels = 8
    x = jax.random.normal(kx, (B, in_channels, H, W), jnp.float32)
    params = make_params(kp, in_channels, out_channels)
    # The module zero-inits the GloRe BN gamma, which multiplies the whole graph
    # branch by 0 and would make the numerical check vacuous; override it so the
    # adjacency / GCN / back-projection path is actually exercised by the check.
    params['bn_g_gamma'] = jnp.full_like(params['bn_g_gamma'], 0.5)

    fwd = jax.jit(psp_head_forward)
    out = jax.block_until_ready(fwd(x, params))
    assert out.shape == (B, out_channels, H, W)

    ref = psp_head_reference(x, params)
    err = float(jnp.max(jnp.abs(out - ref)))
    # bf16 MXU operands with f32 accumulation + approx EUP reciprocal in softmax
    # -> slightly looser tolerance than a pure-f32 comparison.
    assert jnp.allclose(out, ref, atol=2e-2, rtol=2e-2), f"max abs err {err}"
    print("KERNEL_OK")
</pallas_src>

<mosaic_0001>
module attributes {stable_mosaic.version = 11 : i64} {
  func.func @_psp_head_kernel(%arg0: i32, %arg1: i32, %arg2: memref<1x432x128xbf16, #tpu.memory_space<vmem>>, %arg3: memref<3x128x96xbf16, #tpu.memory_space<vmem>>, %arg4: memref<1x32xf32, #tpu.memory_space<vmem>>, %arg5: memref<32x384xbf16, #tpu.memory_space<vmem>>, %arg6: memref<1x384xf32, #tpu.memory_space<vmem>>, %arg7: memref<256x256xf32, #tpu.memory_space<vmem>>, %arg8: memref<1x256xf32, #tpu.memory_space<vmem>>, %arg9: memref<256x32xbf16, #tpu.memory_space<vmem>>, %arg10: memref<1x32xf32, #tpu.memory_space<vmem>>, %arg11: memref<8x32xbf16, #tpu.memory_space<vmem>>, %arg12: memref<8x1xf32, #tpu.memory_space<vmem>>, %arg13: memref<1x8x256xf32, #tpu.memory_space<vmem>>, %arg14: memref<384x96xf32, #tpu.memory_space<vmem>>) attributes {dimension_semantics = [#tpu.dimension_semantics<parallel>, #tpu.dimension_semantics<arbitrary>], iteration_bounds = array<i64: 2, 1>, scalar_prefetch = 0 : i64, scratch_operands = 1 : i64, tpu.core_type = #tpu.core_type<tc>, window_params = [{transform_indices = @transform_0, window_bounds = array<i64: 1, 432, 128>}, {transform_indices = @transform_1, window_bounds = array<i64: 3, 128, 96>}, {pipeline_mode = #tpu.pipeline_mode<synchronous>, transform_indices = @transform_2, window_bounds = array<i64: 1, 32>}, {pipeline_mode = #tpu.pipeline_mode<synchronous>, transform_indices = @transform_3, window_bounds = array<i64: 32, 384>}, {pipeline_mode = #tpu.pipeline_mode<synchronous>, transform_indices = @transform_4, window_bounds = array<i64: 1, 384>}, {pipeline_mode = #tpu.pipeline_mode<synchronous>, transform_indices = @transform_5, window_bounds = array<i64: 256, 256>}, {pipeline_mode = #tpu.pipeline_mode<synchronous>, transform_indices = @transform_6, window_bounds = array<i64: 1, 256>}, {pipeline_mode = #tpu.pipeline_mode<synchronous>, transform_indices = @transform_7, window_bounds = array<i64: 256, 32>}, {pipeline_mode = #tpu.pipeline_mode<synchronous>, transform_indices = @transform_8, window_bounds = array<i64: 1, 32>}, {pipeline_mode = #tpu.pipeline_mode<synchronous>, transform_indices = @transform_9, window_bounds = array<i64: 8, 32>}, {pipeline_mode = #tpu.pipeline_mode<synchronous>, transform_indices = @transform_10, window_bounds = array<i64: 8, 1>}, {transform_indices = @transform_11, window_bounds = array<i64: 1, 8, 256>}]} {
    %cst = arith.constant 0.000000e+00 : f32
    %0 = vector.broadcast %cst : f32 to vector<384x96xf32>
    %c0 = arith.constant 0 : index
    %c0_0 = arith.constant 0 : index
    %1 = vector.load %arg14[%c0, %c0_0] : memref<384x96xf32, #tpu.memory_space<vmem>>, vector<384x96xf32>
    tpu.vector_store %arg14[%c0, %c0_0], %0 {strides = array<i32>} : memref<384x96xf32, #tpu.memory_space<vmem>>, vector<384x96xf32>,
    %c0_1 = arith.constant 0 : index
    %c0_2 = arith.constant 0 : index
    %c0_3 = arith.constant 0 : index
    %2 = vector.load %arg2[%c0_1, %c0_2, %c0_3] : memref<1x432x128xbf16, #tpu.memory_space<vmem>>, vector<1x432x128xbf16>
    %3 = vector.shape_cast %2 : vector<1x432x128xbf16> to vector<432x128xbf16>
    %4 = vector.extract_strided_slice %3 {offsets = [0, 0], sizes = [384, 128], strides = [1, 1]} : vector<432x128xbf16> to vector<384x128xbf16>
    %c0_4 = arith.constant 0 : index
    %c0_5 = arith.constant 0 : index
    %5 = vector.load %arg14[%c0_4, %c0_5] : memref<384x96xf32, #tpu.memory_space<vmem>>, vector<384x96xf32>
    %c0_6 = arith.constant 0 : index
    %c0_7 = arith.constant 0 : index
    %c0_8 = arith.constant 0 : index
    %6 = vector.load %arg3[%c0_6, %c0_7, %c0_8] : memref<3x128x96xbf16, #tpu.memory_space<vmem>>, vector<1x128x96xbf16>
    %7 = vector.shape_cast %6 : vector<1x128x96xbf16> to vector<128x96xbf16>
    %cst_9 = arith.constant dense<0.000000e+00> : vector<384x96xf32>
    %8 = tpu.matmul %4, %7, %cst_9 {dimension_numbers = #tpu.dot_dimension_numbers<[1], [0], [0], [1], [0, 0, 1, 1], [], []>} : vector<384x128xbf16>, vector<128x96xbf16>, vector<384x96xf32> -> vector<384x96xf32>
    %9 = arith.addf %5, %8 : vector<384x96xf32>
    %c0_10 = arith.constant 0 : index
    %c0_11 = arith.constant 0 : index
    %10 = vector.load %arg14[%c0_10, %c0_11] : memref<384x96xf32, #tpu.memory_space<vmem>>, vector<384x96xf32>
    tpu.vector_store %arg14[%c0_10, %c0_11], %9 {strides = array<i32>} : memref<384x96xf32, #tpu.memory_space<vmem>>, vector<384x96xf32>,
    %11 = vector.extract_strided_slice %3 {offsets = [24, 0], sizes = [384, 128], strides = [1, 1]} : vector<432x128xbf16> to vector<384x128xbf16>
    %c0_12 = arith.constant 0 : index
    %c0_13 = arith.constant 0 : index
    %12 = vector.load %arg14[%c0_12, %c0_13] : memref<384x96xf32, #tpu.memory_space<vmem>>, vector<384x96xf32>
    %c1 = arith.constant 1 : index
    %c0_14 = arith.constant 0 : index
    %c0_15 = arith.constant 0 : index
    %13 = vector.load %arg3[%c1, %c0_14, %c0_15] : memref<3x128x96xbf16, #tpu.memory_space<vmem>>, vector<1x128x96xbf16>
    %14 = vector.shape_cast %13 : vector<1x128x96xbf16> to vector<128x96xbf16>
    %cst_16 = arith.constant dense<0.000000e+00> : vector<384x96xf32>
    %15 = tpu.matmul %11, %14, %cst_16 {dimension_numbers = #tpu.dot_dimension_numbers<[1], [0], [0], [1], [0, 0, 1, 1], [], []>} : vector<384x128xbf16>, vector<128x96xbf16>, vector<384x96xf32> -> vector<384x96xf32>
    %16 = arith.addf %12, %15 : vector<384x96xf32>
    %c0_17 = arith.constant 0 : index
    %c0_18 = arith.constant 0 : index
    %17 = vector.load %arg14[%c0_17, %c0_18] : memref<384x96xf32, #tpu.memory_space<vmem>>, vector<384x96xf32>
    tpu.vector_store %arg14[%c0_17, %c0_18], %16 {strides = array<i32>} : memref<384x96xf32, #tpu.memory_space<vmem>>, vector<384x96xf32>,
    %18 = vector.extract_strided_slice %3 {offsets = [48, 0], sizes = [384, 128], strides = [1, 1]} : vector<432x128xbf16> to vector<384x128xbf16>
    %c0_19 = arith.constant 0 : index
    %c0_20 = arith.constant 0 : index
    %19 = vector.load %arg14[%c0_19, %c0_20] : memref<384x96xf32, #tpu.memory_space<vmem>>, vector<384x96xf32>
    %c2 = arith.constant 2 : index
    %c0_21 = arith.constant 0 : index
    %c0_22 = arith.constant 0 : index
    %20 = vector.load %arg3[%c2, %c0_21, %c0_22] : memref<3x128x96xbf16, #tpu.memory_space<vmem>>, vector<1x128x96xbf16>
    %21 = vector.shape_cast %20 : vector<1x128x96xbf16> to vector<128x96xbf16>
    %cst_23 = arith.constant dense<0.000000e+00> : vector<384x96xf32>
    %22 = tpu.matmul %18, %21, %cst_23 {dimension_numbers = #tpu.dot_dimension_numbers<[1], [0], [0], [1], [0, 0, 1, 1], [], []>} : vector<384x128xbf16>, vector<128x96xbf16>, vector<384x96xf32> -> vector<384x96xf32>
    %23 = arith.addf %19, %22 : vector<384x96xf32>
    %c0_24 = arith.constant 0 : index
    %c0_25 = arith.constant 0 : index
    %24 = vector.load %arg14[%c0_24, %c0_25] : memref<384x96xf32, #tpu.memory_space<vmem>>, vector<384x96xf32>
    tpu.vector_store %arg14[%c0_24, %c0_25], %23 {strides = array<i32>} : memref<384x96xf32, #tpu.memory_space<vmem>>, vector<384x96xf32>,
    %c0_26 = arith.constant 0 : index
    %c0_27 = arith.constant 0 : index
    %25 = vector.load %arg14[%c0_26, %c0_27] : memref<384x96xf32, #tpu.memory_space<vmem>>, vector<384x96xf32>
    %26 = vector.shape_cast %25 : vector<384x96xf32> to vector<16x24x96xf32>
    %27 = vector.extract_strided_slice %26 {offsets = [0, 0, 0], sizes = [16, 16, 32], strides = [1, 1, 1]} : vector<16x24x96xf32> to vector<16x16x32xf32>
    %28 = vector.extract_strided_slice %26 {offsets = [0, 1, 32], sizes = [16, 16, 32], strides = [1, 1, 1]} : vector<16x24x96xf32> to vector<16x16x32xf32>
    %29 = arith.addf %27, %28 : vector<16x16x32xf32>
    %30 = vector.extract_strided_slice %26 {offsets = [0, 2, 64], sizes = [16, 16, 32], strides = [1, 1, 1]} : vector<16x24x96xf32> to vector<16x16x32xf32>
    %31 = arith.addf %29, %30 : vector<16x16x32xf32>
    %32 = vector.shape_cast %31 : vector<16x16x32xf32> to vector<256x32xf32>
    %c0_28 = arith.constant 0 : index
    %c0_29 = arith.constant 0 : index
    %33 = vector.load %arg4[%c0_28, %c0_29] : memref<1x32xf32, #tpu.memory_space<vmem>>, vector<1x32xf32>
    %34 = vector.broadcast %33 : vector<1x32xf32> to vector<256x32xf32>
    %35 = arith.addf %32, %34 : vector<256x32xf32>
    %cst_30 = arith.constant 0.000000e+00 : f32
    %36 = vector.broadcast %cst_30 : f32 to vector<256x32xf32>
    %37 = arith.maximumf %35, %36 : vector<256x32xf32>
    %38 = arith.truncf %37 : vector<256x32xf32> to vector<256x32xbf16>
    %c0_31 = arith.constant 0 : index
    %c0_32 = arith.constant 0 : index
    %39 = vector.load %arg5[%c0_31, %c0_32] : memref<32x384xbf16, #tpu.memory_space<vmem>>, vector<32x384xbf16>
    %cst_33 = arith.constant dense<0.000000e+00> : vector<256x384xf32>
    %40 = tpu.matmul %38, %39, %cst_33 {dimension_numbers = #tpu.dot_dimension_numbers<[1], [0], [0], [1], [0, 0, 1, 1], [], []>} : vector<256x32xbf16>, vector<32x384xbf16>, vector<256x384xf32> -> vector<256x384xf32>
    %c0_34 = arith.constant 0 : index
    %c0_35 = arith.constant 0 : index
    %41 = vector.load %arg6[%c0_34, %c0_35] : memref<1x384xf32, #tpu.memory_space<vmem>>, vector<1x384xf32>
    %42 = vector.broadcast %41 : vector<1x384xf32> to vector<256x384xf32>
    %43 = arith.addf %40, %42 : vector<256x384xf32>
    %44 = vector.extract_strided_slice %43 {offsets = [0, 0], sizes = [256, 128], strides = [1, 1]} : vector<256x384xf32> to vector<256x128xf32>
    %45 = vector.extract_strided_slice %43 {offsets = [0, 128], sizes = [256, 256], strides = [1, 1]} : vector<256x384xf32> to vector<256x256xf32>
    %cst_36 = arith.constant dense<0.000000e+00> : vector<128x256xf32>
    %46 = tpu.matmul %44, %45, %cst_36 {dimension_numbers = #tpu.dot_dimension_numbers<[0], [0], [1], [1], [0, 1, 1, 1], [], []>} : vector<256x128xf32>, vector<256x256xf32>, vector<128x256xf32> -> vector<128x256xf32>
    %cst_37 = arith.constant 3.906250e-03 : f32
    %47 = vector.broadcast %cst_37 : f32 to vector<128x256xf32>
    %48 = arith.mulf %46, %47 : vector<128x256xf32>
    %49 = arith.mulf %48, %48 : vector<128x256xf32>
    %cst_38 = arith.constant dense<0.000000e+00> : vector<128xf32>
    %50 = vector.multi_reduction <add>, %49, %cst_38 [1] : vector<128x256xf32> to vector<128xf32>
    %51 = vector.shape_cast %50 : vector<128xf32> to vector<128x1xf32>
    %cst_39 = arith.constant 1.000000e-24 : f32
    %52 = vector.broadcast %cst_39 : f32 to vector<128x1xf32>
    %53 = arith.addf %51, %52 : vector<128x1xf32>
    %54 = math.rsqrt %53 : vector<128x1xf32>
    %55 = vector.broadcast %54 : vector<128x1xf32> to vector<128x256xf32>
    %56 = arith.mulf %48, %55 : vector<128x256xf32>
    %cst_40 = arith.constant dense<0.000000e+00> : vector<128x128xf32>
    %57 = tpu.matmul %56, %56, %cst_40 {dimension_numbers = #tpu.dot_dimension_numbers<[1], [1], [0], [0], [0, 0, 1, 0], [], []>} : vector<128x256xf32>, vector<128x256xf32>, vector<128x128xf32> -> vector<128x128xf32>
    %58 = tpu.iota {dimensions = array<i32: 1>} : vector<128x128xi32>
    %c84_i32 = arith.constant 84 : i32
    %59 = vector.broadcast %c84_i32 : i32 to vector<128x128xi32>
    %60 = arith.cmpi slt, %58, %59 : vector<128x128xi32>
    %cst_41 = arith.constant 0xFF800000 : f32
    %61 = vector.broadcast %cst_41 : f32 to vector<128x128xf32>
    %62 = arith.select %60, %57, %61 : vector<128x128xi1>, vector<128x128xf32>
    %cst_42 = arith.constant dense<0xFF800000> : vector<128xf32>
    %63 = vector.multi_reduction <maximumf>, %62, %cst_42 [1] : vector<128x128xf32> to vector<128xf32>
    %64 = vector.shape_cast %63 : vector<128xf32> to vector<128x1xf32>
    %65 = vector.broadcast %64 : vector<128x1xf32> to vector<128x128xf32>
    %66 = arith.subf %62, %65 : vector<128x128xf32>
    %67 = math.exp %66 : vector<128x128xf32>
    %cst_43 = arith.constant dense<0.000000e+00> : vector<128xf32>
    %68 = vector.multi_reduction <add>, %67, %cst_43 [1] : vector<128x128xf32> to vector<128xf32>
    %69 = vector.shape_cast %68 : vector<128xf32> to vector<128x1xf32>
    %70 = tpu.reciprocal %69 {approx = true} : vector<128x1xf32> -> vector<128x1xf32>
    %71 = vector.broadcast %70 : vector<128x1xf32> to vector<128x128xf32>
    %72 = arith.mulf %67, %71 : vector<128x128xf32>
    %c0_44 = arith.constant 0 : index
    %c0_45 = arith.constant 0 : index
    %73 = vector.load %arg7[%c0_44, %c0_45] : memref<256x256xf32, #tpu.memory_space<vmem>>, vector<256x256xf32>
    %cst_46 = arith.constant dense<0.000000e+00> : vector<128x256xf32>
    %74 = tpu.matmul %48, %73, %cst_46 {dimension_numbers = #tpu.dot_dimension_numbers<[1], [0], [0], [1], [0, 0, 1, 1], [], []>} : vector<128x256xf32>, vector<256x256xf32>, vector<128x256xf32> -> vector<128x256xf32>
    %cst_47 = arith.constant dense<0.000000e+00> : vector<128x256xf32>
    %75 = tpu.matmul %72, %74, %cst_47 {dimension_numbers = #tpu.dot_dimension_numbers<[1], [0], [0], [1], [0, 0, 1, 1], [], []>} : vector<128x128xf32>, vector<128x256xf32>, vector<128x256xf32> -> vector<128x256xf32>
    %c0_48 = arith.constant 0 : index
    %c0_49 = arith.constant 0 : index
    %76 = vector.load %arg8[%c0_48, %c0_49] : memref<1x256xf32, #tpu.memory_space<vmem>>, vector<1x256xf32>
    %77 = vector.broadcast %76 : vector<1x256xf32> to vector<128x256xf32>
    %78 = arith.addf %75, %77 : vector<128x256xf32>
    %79 = arith.addf %78, %48 : vector<128x256xf32>
    %80 = arith.truncf %44 : vector<256x128xf32> to vector<256x128xbf16>
    %81 = arith.truncf %79 : vector<128x256xf32> to vector<128x256xbf16>
    %cst_50 = arith.constant dense<0.000000e+00> : vector<256x256xf32>
    %82 = tpu.matmul %80, %81, %cst_50 {dimension_numbers = #tpu.dot_dimension_numbers<[1], [0], [0], [1], [0, 0, 1, 1], [], []>} : vector<256x128xbf16>, vector<128x256xbf16>, vector<256x256xf32> -> vector<256x256xf32>
    %83 = arith.truncf %82 : vector<256x256xf32> to vector<256x256xbf16>
    %c0_51 = arith.constant 0 : index
    %c0_52 = arith.constant 0 : index
    %84 = vector.load %arg9[%c0_51, %c0_52] : memref<256x32xbf16, #tpu.memory_space<vmem>>, vector<256x32xbf16>
    %cst_53 = arith.constant dense<0.000000e+00> : vector<256x32xf32>
    %85 = tpu.matmul %83, %84, %cst_53 {dimension_numbers = #tpu.dot_dimension_numbers<[1], [0], [0], [1], [0, 0, 1, 1], [], []>} : vector<256x256xbf16>, vector<256x32xbf16>, vector<256x32xf32> -> vector<256x32xf32>
    %c0_54 = arith.constant 0 : index
    %c0_55 = arith.constant 0 : index
    %86 = vector.load %arg10[%c0_54, %c0_55] : memref<1x32xf32, #tpu.memory_space<vmem>>, vector<1x32xf32>
    %87 = vector.broadcast %86 : vector<1x32xf32> to vector<256x32xf32>
    %88 = arith.addf %85, %87 : vector<256x32xf32>
    %89 = arith.addf %88, %37 : vector<256x32xf32>
    %c0_56 = arith.constant 0 : index
    %c0_57 = arith.constant 0 : index
    %90 = vector.load %arg11[%c0_56, %c0_57] : memref<8x32xbf16, #tpu.memory_space<vmem>>, vector<8x32xbf16>
    %91 = arith.truncf %89 : vector<256x32xf32> to vector<256x32xbf16>
    %cst_58 = arith.constant dense<0.000000e+00> : vector<8x256xf32>
    %92 = tpu.matmul %90, %91, %cst_58 {dimension_numbers = #tpu.dot_dimension_numbers<[1], [1], [0], [0], [0, 0, 1, 0], [], []>} : vector<8x32xbf16>, vector<256x32xbf16>, vector<8x256xf32> -> vector<8x256xf32>
    %c0_59 = arith.constant 0 : index
    %c0_60 = arith.constant 0 : index
    %93 = vector.load %arg12[%c0_59, %c0_60] : memref<8x1xf32, #tpu.memory_space<vmem>>, vector<8x1xf32>
    %94 = vector.broadcast %93 : vector<8x1xf32> to vector<8x256xf32>
    %95 = arith.addf %92, %94 : vector<8x256xf32>
    %c0_61 = arith.constant 0 : index
    %c0_62 = arith.constant 0 : index
    %c0_63 = arith.constant 0 : index
    %96 = vector.load %arg13[%c0_61, %c0_62, %c0_63] : memref<1x8x256xf32, #tpu.memory_space<vmem>>, vector<1x8x256xf32>
    %97 = vector.shape_cast %96 : vector<1x8x256xf32> to vector<8x256xf32>
    %98 = vector.shape_cast %95 : vector<8x256xf32> to vector<1x8x256xf32>
    tpu.vector_store %arg13[%c0_61, %c0_62, %c0_63], %98 {strides = array<i32>} : memref<1x8x256xf32, #tpu.memory_space<vmem>>, vector<1x8x256xf32>,
    return
  }
  func.func @transform_0(%arg0: i32, %arg1: i32) -> (i32, i32, i32) {
    %c0_i32 = arith.constant 0 : i32
    %c0_i32_0 = arith.constant 0 : i32
    return %arg0, %c0_i32, %arg1 : i32, i32, i32
  }
  func.func @transform_1(%arg0: i32, %arg1: i32) -> (i32, i32, i32) {
    %c0_i32 = arith.constant 0 : i32
    %c0_i32_0 = arith.constant 0 : i32
    %c0_i32_1 = arith.constant 0 : i32
    return %c0_i32, %arg1, %c0_i32_0 : i32, i32, i32
  }
  func.func @transform_2(%arg0: i32, %arg1: i32) -> (i32, i32) {
    %c0_i32 = arith.constant 0 : i32
    %c0_i32_0 = arith.constant 0 : i32
    %c0_i32_1 = arith.constant 0 : i32
    return %c0_i32, %c0_i32_0 : i32, i32
  }
  func.func @transform_3(%arg0: i32, %arg1: i32) -> (i32, i32) {
    %c0_i32 = arith.constant 0 : i32
    %c0_i32_0 = arith.constant 0 : i32
    %c0_i32_1 = arith.constant 0 : i32
    return %c0_i32, %c0_i32_0 : i32, i32
  }
  func.func @transform_4(%arg0: i32, %arg1: i32) -> (i32, i32) {
    %c0_i32 = arith.constant 0 : i32
    %c0_i32_0 = arith.constant 0 : i32
    %c0_i32_1 = arith.constant 0 : i32
    return %c0_i32, %c0_i32_0 : i32, i32
  }
  func.func @transform_5(%arg0: i32, %arg1: i32) -> (i32, i32) {
    %c0_i32 = arith.constant 0 : i32
    %c0_i32_0 = arith.constant 0 : i32
    %c0_i32_1 = arith.constant 0 : i32
    return %c0_i32, %c0_i32_0 : i32, i32
  }
  func.func @transform_6(%arg0: i32, %arg1: i32) -> (i32, i32) {
    %c0_i32 = arith.constant 0 : i32
    %c0_i32_0 = arith.constant 0 : i32
    %c0_i32_1 = arith.constant 0 : i32
    return %c0_i32, %c0_i32_0 : i32, i32
  }
  func.func @transform_7(%arg0: i32, %arg1: i32) -> (i32, i32) {
    %c0_i32 = arith.constant 0 : i32
    %c0_i32_0 = arith.constant 0 : i32
    %c0_i32_1 = arith.constant 0 : i32
    return %c0_i32, %c0_i32_0 : i32, i32
  }
  func.func @transform_8(%arg0: i32, %arg1: i32) -> (i32, i32) {
    %c0_i32 = arith.constant 0 : i32
    %c0_i32_0 = arith.constant 0 : i32
    %c0_i32_1 = arith.constant 0 : i32
    return %c0_i32, %c0_i32_0 : i32, i32
  }
  func.func @transform_9(%arg0: i32, %arg1: i32) -> (i32, i32) {
    %c0_i32 = arith.constant 0 : i32
    %c0_i32_0 = arith.constant 0 : i32
    %c0_i32_1 = arith.constant 0 : i32
    return %c0_i32, %c0_i32_0 : i32, i32
  }
  func.func @transform_10(%arg0: i32, %arg1: i32) -> (i32, i32) {
    %c0_i32 = arith.constant 0 : i32
    %c0_i32_0 = arith.constant 0 : i32
    %c0_i32_1 = arith.constant 0 : i32
    return %c0_i32, %c0_i32_0 : i32, i32
  }
  func.func @transform_11(%arg0: i32, %arg1: i32) -> (i32, i32, i32) {
    %c0_i32 = arith.constant 0 : i32
    %c0_i32_0 = arith.constant 0 : i32
    %c0_i32_1 = arith.constant 0 : i32
    return %arg0, %c0_i32, %c0_i32_0 : i32, i32, i32
  }
}

</mosaic_0001>

<llo_original>
// kernel: psp_head_forward.1
$region0: #{psp_head_forward.1}
  #allocation0 [shape = 'u32[]', space=smem, size = 0x4, offset = 0x4, fixed_abs, tag = 'smem constant byte address 0x4 - core index']
  #allocation1 [shape = 'u32[144,128]{1,0:T(1,128)}', space=vmem, size = 0x12000, scoped, tag = 'internal scratch']
  #allocation2 [shape = 'f32[384,96]{1,0:T(8,128)}', space=vmem, size = 0x30000, scoped, tag = 'scratch operand']
  %s0 = inlined_call_operand.vmem [shape: bf16[2,432,128], index: 0, kind: input, shape index: {}]
  %s1 = inlined_call_operand.vmem [shape: bf16[3,128,96], index: 1, kind: input, shape index: {}]
  %s2 = inlined_call_operand.vmem [shape: f32[1,32], index: 2, kind: input, shape index: {}]
  %s3 = inlined_call_operand.vmem [shape: bf16[32,384], index: 3, kind: input, shape index: {}]
  %s4 = inlined_call_operand.vmem [shape: f32[1,384], index: 4, kind: input, shape index: {}]
  %s5 = inlined_call_operand.vmem [shape: f32[256,256], index: 5, kind: input, shape index: {}]
  %s6 = inlined_call_operand.vmem [shape: f32[1,256], index: 6, kind: input, shape index: {}]
  %s7 = inlined_call_operand.vmem [shape: bf16[256,32], index: 7, kind: input, shape index: {}]
  %s8 = inlined_call_operand.vmem [shape: f32[1,32], index: 8, kind: input, shape index: {}]
  %s9 = inlined_call_operand.vmem [shape: bf16[8,32], index: 9, kind: input, shape index: {}]
  %s10 = inlined_call_operand.vmem [shape: f32[8,1], index: 10, kind: input, shape index: {}]
  %s11 = inlined_call_operand.vmem [shape: f32[2,8,256], index: 11, kind: output, shape index: {}]
  %s12 = sld [smem:[#allocation0]]
  $region77: #{psp_head_forward.1} parent=0
    _
  %s14 = ssub.s32 1, %s12
  %s15 = scalar_select 0, %s14, %s12
  loop: start=0, step=1, limit=4
  $region2: #{psp_head_forward.1} parent=0 // loop_pre_header
    _
  $region3: #{psp_head_forward.1} parent=0 // loop_header
    %s17 = sphi 0, %s21
    %p18 = scmp.ge.s32.totalorder %s17, 4
    %s24 = sphi 0, %s36
    %s25 = sphi 0, %s32
    %s26 = sphi 0, %s24
    %s27 = sphi 0, %s25
    %s28 = sphi 0, %s26
    %s29 = sphi 0, %s27
    %s41 = sphi 0, %s43
    %s44 = sphi 0, %s41
    %s45 = sphi 0, %s44
    %s61 = sphi 0, %s45
    %s67 = sphi 0, %s69
    %s70 = sphi 0, %s67
    %s71 = sphi 0, %s70
    %s87 = sphi 0, %s71
    %s91 = sphi 0, %s91
    %s93 = sphi 0, %s91
    %s94 = sphi 0, %s93
    %s108 = sphi 0, %s94
    %s112 = sphi 0, %s112
    %s114 = sphi 0, %s112
    %s115 = sphi 0, %s114
    %s129 = sphi 0, %s115
    %s133 = sphi 0, %s133
    %s135 = sphi 0, %s133
    %s136 = sphi 0, %s135
    %s150 = sphi 0, %s136
    %s154 = sphi 0, %s154
    %s156 = sphi 0, %s154
    %s157 = sphi 0, %s156
    %s171 = sphi 0, %s157
    %s175 = sphi 0, %s175
    %s177 = sphi 0, %s175
    %s178 = sphi 0, %s177
    %s192 = sphi 0, %s178
    %s196 = sphi 0, %s196
    %s198 = sphi 0, %s196
    %s199 = sphi 0, %s198
    %s213 = sphi 0, %s199
    %s217 = sphi 0, %s217
    %s219 = sphi 0, %s217
    %s220 = sphi 0, %s219
    %s234 = sphi 0, %s220
    %s238 = sphi 0, %s238
    %s240 = sphi 0, %s238
    %s241 = sphi 0, %s240
    %s255 = sphi 0, %s241
    %s259 = sphi 0, %s259
    %s261 = sphi 0, %s259
    %s262 = sphi 0, %s261
    %s276 = sphi 0, %s262
    %s282 = sphi 0, %s284
    %s285 = sphi 0, %s282
    %s286 = sphi 0, %s285
    %s302 = sphi 0, %s286
  $region4: #{psp_head_forward.1} parent=0 // loop_header_branch
    %20 = sbr.rel (%p18) target = $region8
  $region5: #{psp_head_forward.1} parent=0 // loop_body
    %s22 = ssub.s32 %s17, 1
    %s23 = ssub.s32 %s17, 2
    %s30 = sadd.s32 1, %s25
    %p31 = scmp.ge.s32.totalorder %s30, 1
    %s32 = scalar_select %p31, 0, %s30
    %s33 = sadd.s32 1, %s24
    %s34 = scalar_select %p31, %s33, %s24
    %p35 = scmp.ge.s32.totalorder %s34, 2
    %s36 = scalar_select %p35, 0, %s34
    %s37 = ssub.s32 %s24, %s36
    %s38 = ssub.s32 %s25, %s32
    %s39 = sor.u32 %s37, %s38
    %p40 = scmp.eq.s32.totalorder %s39, 0
    %s42 = sadd.s32 %s41, 1
    %s43 = scalar_select %p40, %s41, %s42
    %p46 = pneg %p40
    %p47 = scmp.eq.s32.totalorder %s17, 1
    %p48 = por %p46, %p47
    %p49 = scmp.ne.s32.totalorder %s41, %s44
    %p50 = scmp.eq.s32.totalorder %s17, 0
    %p51 = por %p49, %p50
    %p52 = scmp.ne.s32.totalorder %s41, %s44
    %p53 = scmp.eq.s32.totalorder %s22, 1
    %p54 = por %p52, %p53
    %p55 = scmp.ne.s32.totalorder %s44, %s45
    %p56 = scmp.eq.s32.totalorder %s22, 0
    %p57 = por %p55, %p56
    %p58 = scmp.ne.s32.totalorder %s44, %s45
    %p59 = scmp.eq.s32.totalorder %s23, 1
    %p60 = por %p58, %p59
    %p62 = scmp.ne.s32.totalorder %s45, %s61
    %p63 = scmp.eq.s32.totalorder %s23, 0
    %p64 = por %p62, %p63
    %s65 = ssub.s32 %s25, %s32
    %p66 = scmp.eq.s32.totalorder %s65, 0
    %s68 = sadd.s32 %s67, 1
    %s69 = scalar_select %p66, %s67, %s68
    %p72 = pneg %p66
    %p73 = scmp.eq.s32.totalorder %s17, 1
    %p74 = por %p72, %p73
    %p75 = scmp.ne.s32.totalorder %s67, %s70
    %p76 = scmp.eq.s32.totalorder %s17, 0
    %p77 = por %p75, %p76
    %p78 = scmp.ne.s32.totalorder %s67, %s70
    %p79 = scmp.eq.s32.totalorder %s22, 1
    %p80 = por %p78, %p79
    %p81 = scmp.ne.s32.totalorder %s70, %s71
    %p82 = scmp.eq.s32.totalorder %s22, 0
    %p83 = por %p81, %p82
    %p84 = scmp.ne.s32.totalorder %s70, %s71
    %p85 = scmp.eq.s32.totalorder %s23, 1
    %p86 = por %p84, %p85
    %p88 = scmp.ne.s32.totalorder %s71, %s87
    %p89 = scmp.eq.s32.totalorder %s23, 0
    %p90 = por %p88, %p89
    %s92 = sadd.s32 %s91, 1
    %p95 = scmp.eq.s32.totalorder %s17, 1
    %p96 = scmp.ne.s32.totalorder %s91, %s93
    %p97 = scmp.eq.s32.totalorder %s17, 0
    %p98 = por %p96, %p97
    %p99 = scmp.ne.s32.totalorder %s91, %s93
    %p100 = scmp.eq.s32.totalorder %s22, 1
    %p101 = por %p99, %p100
    %p102 = scmp.ne.s32.totalorder %s93, %s94
    %p103 = scmp.eq.s32.totalorder %s22, 0
    %p104 = por %p102, %p103
    %p105 = scmp.ne.s32.totalorder %s93, %s94
    %p106 = scmp.eq.s32.totalorder %s23, 1
    %p107 = por %p105, %p106
    %p109 = scmp.ne.s32.totalorder %s94, %s108
    %p110 = scmp.eq.s32.totalorder %s23, 0
    %p111 = por %p109, %p110
    %s113 = sadd.s32 %s112, 1
    %p116 = scmp.eq.s32.totalorder %s17, 1
    %p117 = scmp.ne.s32.totalorder %s112, %s114
    %p118 = scmp.eq.s32.totalorder %s17, 0
    %p119 = por %p117, %p118
    %p120 = scmp.ne.s32.totalorder %s112, %s114
    %p121 = scmp.eq.s32.totalorder %s22, 1
    %p122 = por %p120, %p121
    %p123 = scmp.ne.s32.totalorder %s114, %s115
    %p124 = scmp.eq.s32.totalorder %s22, 0
    %p125 = por %p123, %p124
    %p126 = scmp.ne.s32.totalorder %s114, %s115
    %p127 = scmp.eq.s32.totalorder %s23, 1
    %p128 = por %p126, %p127
    %p130 = scmp.ne.s32.totalorder %s115, %s129
    %p131 = scmp.eq.s32.totalorder %s23, 0
    %p132 = por %p130, %p131
    %s134 = sadd.s32 %s133, 1
    %p137 = scmp.eq.s32.totalorder %s17, 1
    %p138 = scmp.ne.s32.totalorder %s133, %s135
    %p139 = scmp.eq.s32.totalorder %s17, 0
    %p140 = por %p138, %p139
    %p141 = scmp.ne.s32.totalorder %s133, %s135
    %p142 = scmp.eq.s32.totalorder %s22, 1
    %p143 = por %p141, %p142
    %p144 = scmp.ne.s32.totalorder %s135, %s136
    %p145 = scmp.eq.s32.totalorder %s22, 0
    %p146 = por %p144, %p145
    %p147 = scmp.ne.s32.totalorder %s135, %s136
    %p148 = scmp.eq.s32.totalorder %s23, 1
    %p149 = por %p147, %p148
    %p151 = scmp.ne.s32.totalorder %s136, %s150
    %p152 = scmp.eq.s32.totalorder %s23, 0
    %p153 = por %p151, %p152
    %s155 = sadd.s32 %s154, 1
    %p158 = scmp.eq.s32.totalorder %s17, 1
    %p159 = scmp.ne.s32.totalorder %s154, %s156
    %p160 = scmp.eq.s32.totalorder %s17, 0
    %p161 = por %p159, %p160
    %p162 = scmp.ne.s32.totalorder %s154, %s156
    %p163 = scmp.eq.s32.totalorder %s22, 1
    %p164 = por %p162, %p163
    %p165 = scmp.ne.s32.totalorder %s156, %s157
    %p166 = scmp.eq.s32.totalorder %s22, 0
    %p167 = por %p165, %p166
    %p168 = scmp.ne.s32.totalorder %s156, %s157
    %p169 = scmp.eq.s32.totalorder %s23, 1
    %p170 = por %p168, %p169
    %p172 = scmp.ne.s32.totalorder %s157, %s171
    %p173 = scmp.eq.s32.totalorder %s23, 0
    %p174 = por %p172, %p173
    %s176 = sadd.s32 %s175, 1
    %p179 = scmp.eq.s32.totalorder %s17, 1
    %p180 = scmp.ne.s32.totalorder %s175, %s177
    %p181 = scmp.eq.s32.totalorder %s17, 0
    %p182 = por %p180, %p181
    %p183 = scmp.ne.s32.totalorder %s175, %s177
    %p184 = scmp.eq.s32.totalorder %s22, 1
    %p185 = por %p183, %p184
    %p186 = scmp.ne.s32.totalorder %s177, %s178
    %p187 = scmp.eq.s32.totalorder %s22, 0
    %p188 = por %p186, %p187
    %p189 = scmp.ne.s32.totalorder %s177, %s178
    %p190 = scmp.eq.s32.totalorder %s23, 1
    %p191 = por %p189, %p190
    %p193 = scmp.ne.s32.totalorder %s178, %s192
    %p194 = scmp.eq.s32.totalorder %s23, 0
    %p195 = por %p193, %p194
    %s197 = sadd.s32 %s196, 1
    %p200 = scmp.eq.s32.totalorder %s17, 1
    %p201 = scmp.ne.s32.totalorder %s196, %s198
    %p202 = scmp.eq.s32.totalorder %s17, 0
    %p203 = por %p201, %p202
    %p204 = scmp.ne.s32.totalorder %s196, %s198
    %p205 = scmp.eq.s32.totalorder %s22, 1
    %p206 = por %p204, %p205
    %p207 = scmp.ne.s32.totalorder %s198, %s199
    %p208 = scmp.eq.s32.totalorder %s22, 0
    %p209 = por %p207, %p208
    %p210 = scmp.ne.s32.totalorder %s198, %s199
    %p211 = scmp.eq.s32.totalorder %s23, 1
    %p212 = por %p210, %p211
    %p214 = scmp.ne.s32.totalorder %s199, %s213
    %p215 = scmp.eq.s32.totalorder %s23, 0
    %p216 = por %p214, %p215
    %s218 = sadd.s32 %s217, 1
    %p221 = scmp.eq.s32.totalorder %s17, 1
    %p222 = scmp.ne.s32.totalorder %s217, %s219
    %p223 = scmp.eq.s32.totalorder %s17, 0
    %p224 = por %p222, %p223
    %p225 = scmp.ne.s32.totalorder %s217, %s219
    %p226 = scmp.eq.s32.totalorder %s22, 1
    %p227 = por %p225, %p226
    %p228 = scmp.ne.s32.totalorder %s219, %s220
    %p229 = scmp.eq.s32.totalorder %s22, 0
    %p230 = por %p228, %p229
    %p231 = scmp.ne.s32.totalorder %s219, %s220
    %p232 = scmp.eq.s32.totalorder %s23, 1
    %p233 = por %p231, %p232
    %p235 = scmp.ne.s32.totalorder %s220, %s234
    %p236 = scmp.eq.s32.totalorder %s23, 0
    %p237 = por %p235, %p236
    %s239 = sadd.s32 %s238, 1
    %p242 = scmp.eq.s32.totalorder %s17, 1
    %p243 = scmp.ne.s32.totalorder %s238, %s240
    %p244 = scmp.eq.s32.totalorder %s17, 0
    %p245 = por %p243, %p244
    %p246 = scmp.ne.s32.totalorder %s238, %s240
    %p247 = scmp.eq.s32.totalorder %s22, 1
    %p248 = por %p246, %p247
    %p249 = scmp.ne.s32.totalorder %s240, %s241
    %p250 = scmp.eq.s32.totalorder %s22, 0
    %p251 = por %p249, %p250
    %p252 = scmp.ne.s32.totalorder %s240, %s241
    %p253 = scmp.eq.s32.totalorder %s23, 1
    %p254 = por %p252, %p253
    %p256 = scmp.ne.s32.totalorder %s241, %s255
    %p257 = scmp.eq.s32.totalorder %s23, 0
    %p258 = por %p256, %p257
    %s260 = sadd.s32 %s259, 1
    %p263 = scmp.eq.s32.totalorder %s17, 1
    %p264 = scmp.ne.s32.totalorder %s259, %s261
    %p265 = scmp.eq.s32.totalorder %s17, 0
    %p266 = por %p264, %p265
    %p267 = scmp.ne.s32.totalorder %s259, %s261
    %p268 = scmp.eq.s32.totalorder %s22, 1
    %p269 = por %p267, %p268
    %p270 = scmp.ne.s32.totalorder %s261, %s262
    %p271 = scmp.eq.s32.totalorder %s22, 0
    %p272 = por %p270, %p271
    %p273 = scmp.ne.s32.totalorder %s261, %s262
    %p274 = scmp.eq.s32.totalorder %s23, 1
    %p275 = por %p273, %p274
    %p277 = scmp.ne.s32.totalorder %s262, %s276
    %p278 = scmp.eq.s32.totalorder %s23, 0
    %p279 = por %p277, %p278
    %s280 = ssub.s32 %s24, %s36
    %p281 = scmp.eq.s32.totalorder %s280, 0
    %s283 = sadd.s32 %s282, 1
    %s284 = scalar_select %p281, %s282, %s283
    %p287 = pneg %p281
    %p288 = scmp.eq.s32.totalorder %s17, 1
    %p289 = por %p287, %p288
    %p290 = scmp.ne.s32.totalorder %s282, %s285
    %p291 = scmp.eq.s32.totalorder %s17, 0
    %p292 = por %p290, %p291
    %p293 = scmp.ne.s32.totalorder %s282, %s285
    %p294 = scmp.eq.s32.totalorder %s22, 1
    %p295 = por %p293, %p294
    %p296 = scmp.ne.s32.totalorder %s285, %s286
    %p297 = scmp.eq.s32.totalorder %s22, 0
    %p298 = por %p296, %p297
    %p299 = scmp.ne.s32.totalorder %s285, %s286
    %p300 = scmp.eq.s32.totalorder %s23, 1
    %p301 = por %p299, %p300
    %p303 = scmp.ne.s32.totalorder %s286, %s302
    %p304 = scmp.eq.s32.totalorder %s23, 0
    %p305 = por %p303, %p304
    %p306 = scmp.le.s32.totalorder 1, %s17
    %p307 = scmp.lt.s32.totalorder %s17, 3
    %p308 = pnand %p306, %p307
    %p309 = pneg %p308
    // Predicated region
    $region9: #{psp_head_forward.1} parent=5 // pred_check
      _
    $region10: #{psp_head_forward.1} parent=5 // pred_check_branch
      %311 = sbr.rel (%p308) target = $region12
    $region11: #{psp_head_forward.1} parent=5 // pred_region
      %s312 = ssub.s32 %s17, 1
      // Predicated region
      $region13: #{psp_head_forward.1} parent=11 // pred_check
        %p313 = pneg %p83
      $region14: #{psp_head_forward.1} parent=11 // pred_check_branch
        %315 = sbr.rel (%p313) target = $region16
      $region15: #{psp_head_forward.1} parent=11 // pred_region
        %s316 = smul.u32 16, %s27
        %p317 = scmp.lt.s32.totalorder %s316, 15
        %s318 = scalar_select %p317, %s316, 15
        %s319 = smul.addr %s318, 4
        %s320 = scalar_lea.vmem %s1, %s319
        %s321 = smul.u32 16, %s27
      $region16: #{psp_head_forward.1} parent=11 // pred_fallthru
        _
      // Predicated region
      $region17: #{psp_head_forward.1} parent=11 // pred_check
        %p322 = pneg %p104
      $region18: #{psp_head_forward.1} parent=11 // pred_check_branch
        %324 = sbr.rel (%p322) target = $region20
      $region19: #{psp_head_forward.1} parent=11 // pred_region
        _
      $region20: #{psp_head_forward.1} parent=11 // pred_fallthru
        _
      // Predicated region
      $region21: #{psp_head_forward.1} parent=11 // pred_check
        %p325 = pneg %p125
      $region22: #{psp_head_forward.1} parent=11 // pred_check_branch
        %327 = sbr.rel (%p325) target = $region24
      $region23: #{psp_head_forward.1} parent=11 // pred_region
        _
      $region24: #{psp_head_forward.1} parent=11 // pred_fallthru
        _
      // Predicated region
      $region25: #{psp_head_forward.1} parent=11 // pred_check
        %p328 = pneg %p146
      $region26: #{psp_head_forward.1} parent=11 // pred_check_branch
        %330 = sbr.rel (%p328) target = $region28
      $region27: #{psp_head_forward.1} parent=11 // pred_region
        _
      $region28: #{psp_head_forward.1} parent=11 // pred_fallthru
        _
      // Predicated region
      $region29: #{psp_head_forward.1} parent=11 // pred_check
        %p331 = pneg %p167
      $region30: #{psp_head_forward.1} parent=11 // pred_check_branch
        %333 = sbr.rel (%p331) target = $region32
      $region31: #{psp_head_forward.1} parent=11 // pred_region
        _
      $region32: #{psp_head_forward.1} parent=11 // pred_fallthru
        _
      // Predicated region
      $region33: #{psp_head_forward.1} parent=11 // pred_check
        %p334 = pneg %p188
      $region34: #{psp_head_forward.1} parent=11 // pred_check_branch
        %336 = sbr.rel (%p334) target = $region36
      $region35: #{psp_head_forward.1} parent=11 // pred_region
        _
      $region36: #{psp_head_forward.1} parent=11 // pred_fallthru
        _
      // Predicated region
      $region37: #{psp_head_forward.1} parent=11 // pred_check
        %p337 = pneg %p209
      $region38: #{psp_head_forward.1} parent=11 // pred_check_branch
        %339 = sbr.rel (%p337) target = $region40
      $region39: #{psp_head_forward.1} parent=11 // pred_region
        _
      $region40: #{psp_head_forward.1} parent=11 // pred_fallthru
        _
      // Predicated region
      $region41: #{psp_head_forward.1} parent=11 // pred_check
        %p340 = pneg %p230
      $region42: #{psp_head_forward.1} parent=11 // pred_check_branch
        %342 = sbr.rel (%p340) target = $region44
      $region43: #{psp_head_forward.1} parent=11 // pred_region
        _
      $region44: #{psp_head_forward.1} parent=11 // pred_fallthru
        _
      // Predicated region
      $region45: #{psp_head_forward.1} parent=11 // pred_check
        %p343 = pneg %p251
      $region46: #{psp_head_forward.1} parent=11 // pred_check_branch
        %345 = sbr.rel (%p343) target = $region48
      $region47: #{psp_head_forward.1} parent=11 // pred_region
        _
      $region48: #{psp_head_forward.1} parent=11 // pred_fallthru
        _
      // Predicated region
      $region49: #{psp_head_forward.1} parent=11 // pred_check
        %p346 = pneg %p272
      $region50: #{psp_head_forward.1} parent=11 // pred_check_branch
        %348 = sbr.rel (%p346) target = $region52
      $region51: #{psp_head_forward.1} parent=11 // pred_region
        _
      $region52: #{psp_head_forward.1} parent=11 // pred_fallthru
        _
    $region12: #{psp_head_forward.1} parent=5 // pred_fallthru
      _
    %p349 = scmp.lt.s32.totalorder %s17, 2
    // Predicated region
    $region53: #{psp_head_forward.1} parent=5 // pred_check
      %p350 = pneg %p349
    $region54: #{psp_head_forward.1} parent=5 // pred_check_branch
      %352 = sbr.rel (%p350) target = $region56
    $region55: #{psp_head_forward.1} parent=5 // pred_region
      // Predicated region
      $region57: #{psp_head_forward.1} parent=55 // pred_check
        %p353 = pneg %p51
      $region58: #{psp_head_forward.1} parent=55 // pred_check_branch
        %355 = sbr.rel (%p353) target = $region60
      $region59: #{psp_head_forward.1} parent=55 // pred_region
        %p356 = scmp.lt.s32.totalorder %s24, 1
        %s357 = scalar_select %p356, %s24, 1
        %p358 = scmp.lt.s32.totalorder %s25, 0
        %s359 = scalar_select %p358, %s25, 0
        %s360 = smul.addr %s357, 54
        %s361 = sadd.s32 %s359, %s360
        %s362 = smul.addr %s361, 4
        %s363 = scalar_lea.vmem %s0, %s362
      $region60: #{psp_head_forward.1} parent=55 // pred_fallthru
        _
    $region56: #{psp_head_forward.1} parent=5 // pred_fallthru
      _
    %p364 = scmp.le.s32.totalorder 1, %s17
    %p365 = scmp.lt.s32.totalorder %s17, 3
    %p366 = pnand %p364, %p365
    %p367 = pneg %p366
    // Predicated region
    $region61: #{psp_head_forward.1} parent=5 // pred_check
      _
    $region62: #{psp_head_forward.1} parent=5 // pred_check_branch
      %369 = sbr.rel (%p366) target = $region64
    $region63: #{psp_head_forward.1} parent=5 // pred_region
      %s370 = ssub.s32 %s17, 1
      %p371 = scmp.lt.s32.totalorder %s26, 1
      %s372 = scalar_select %p371, %s26, 1
      %p373 = scmp.lt.s32.totalorder %s27, 0
      %s374 = scalar_select %p373, %s27, 0
      %s375 = smul.addr %s372, 54
      %s376 = sadd.s32 %s374, %s375
      %s377 = smul.addr %s376, 4
      %s378 = scalar_lea.vmem %s0, %s377
      %p379 = pneg %p57
      %p380 = pneg %p54
      %s381 = smul.u32 16, %s27
      %p382 = scmp.lt.s32.totalorder %s381, 15
      %s383 = scalar_select %p382, %s381, 15
      %s384 = smul.addr %s383, 4
      %s385 = scalar_lea.vmem %s1, %s384
      %p386 = pneg %p83
      %p387 = pneg %p80
      %p388 = pneg %p104
      %p389 = pneg %p101
      %p390 = pneg %p125
      %p391 = pneg %p122
      %p392 = pneg %p146
      %p393 = pneg %p143
      %p394 = pneg %p167
      %p395 = pneg %p164
      %p396 = pneg %p188
      %p397 = pneg %p185
      %p398 = pneg %p209
      %p399 = pneg %p206
      %p400 = pneg %p230
      %p401 = pneg %p227
      %p402 = pneg %p251
      %p403 = pneg %p248
      %p404 = pneg %p272
      %p405 = pneg %p269
      %p406 = pneg %p298
      %p407 = pneg %p295
      %p408 = scmp.lt.s32.totalorder %s26, 1
      %s409 = scalar_select %p408, %s26, 1
      %s410 = smul.addr %s409, 2
      %s411 = smul.addr %s410, 8
      %s412 = scalar_lea.vmem %s11, %s411
      %p413 = scmp.lt.s32.totalorder %s26, 1
      %s414 = scalar_select %p413, %s26, 1
      %p415 = scmp.lt.s32.totalorder %s27, 0
      %s416 = scalar_select %p415, %s27, 0
      %s417 = smul.addr %s414, 54
      %s418 = sadd.s32 %s416, %s417
      %s419 = smul.addr %s418, 4
      %s420 = scalar_lea.vmem %s0, %s419
      %s421 = smul.u32 16, %s27
      %p422 = scmp.lt.s32.totalorder %s421, 15
      %s423 = scalar_select %p422, %s421, 15
      %s424 = smul.addr %s423, 4
      %s425 = scalar_lea.vmem %s1, %s424
      %s426 = smul.u32 16, %s27
      %p427 = scmp.lt.s32.totalorder %s26, 1
      %s428 = scalar_select %p427, %s26, 1
      %s429 = smul.addr %s428, 2
      %s430 = smul.addr %s429, 8
      %s431 = scalar_lea.vmem %s11, %s430
      %vm433 = vcmask 785408
      %434 = vst.msk [vmem:[#allocation2] sm:$0xff] %vm433, 0.0
      %435 = vst.msk [vmem:[#allocation2 + $0x8] sm:$0xff] %vm433, 0.0
      %436 = vst.msk [vmem:[#allocation2 + $0x10] sm:$0xff] %vm433, 0.0
      %437 = vst.msk [vmem:[#allocation2 + $0x18] sm:$0xff] %vm433, 0.0
      %438 = vst.msk [vmem:[#allocation2 + $0x20] sm:$0xff] %vm433, 0.0
      %439 = vst.msk [vmem:[#allocation2 + $0x28] sm:$0xff] %vm433, 0.0
      %440 = vst.msk [vmem:[#allocation2 + $0x30] sm:$0xff] %vm433, 0.0
      %441 = vst.msk [vmem:[#allocation2 + $0x38] sm:$0xff] %vm433, 0.0
      %442 = vst.msk [vmem:[#allocation2 + $0x40] sm:$0xff] %vm433, 0.0
      %443 = vst.msk [vmem:[#allocation2 + $0x48] sm:$0xff] %vm433, 0.0
      %444 = vst.msk [vmem:[#allocation2 + $0x50] sm:$0xff] %vm433, 0.0
      %445 = vst.msk [vmem:[#allocation2 + $0x58] sm:$0xff] %vm433, 0.0
      %446 = vst.msk [vmem:[#allocation2 + $0x60] sm:$0xff] %vm433, 0.0
      %447 = vst.msk [vmem:[#allocation2 + $0x68] sm:$0xff] %vm433, 0.0
      %448 = vst.msk [vmem:[#allocation2 + $0x70] sm:$0xff] %vm433, 0.0
      %449 = vst.msk [vmem:[#allocation2 + $0x78] sm:$0xff] %vm433, 0.0
      %450 = vst.msk [vmem:[#allocation2 + $0x80] sm:$0xff] %vm433, 0.0
      %451 = vst.msk [vmem:[#allocation2 + $0x88] sm:$0xff] %vm433, 0.0
      %452 = vst.msk [vmem:[#allocation2 + $0x90] sm:$0xff] %vm433, 0.0
      %453 = vst.msk [vmem:[#allocation2 + $0x98] sm:$0xff] %vm433, 0.0
      %454 = vst.msk [vmem:[#allocation2 + $0xa0] sm:$0xff] %vm433, 0.0
      %455 = vst.msk [vmem:[#allocation2 + $0xa8] sm:$0xff] %vm433, 0.0
      %456 = vst.msk [vmem:[#allocation2 + $0xb0] sm:$0xff] %vm433, 0.0
      %457 = vst.msk [vmem:[#allocation2 + $0xb8] sm:$0xff] %vm433, 0.0
      %458 = vst.msk [vmem:[#allocation2 + $0xc0] sm:$0xff] %vm433, 0.0
      %459 = vst.msk [vmem:[#allocation2 + $0xc8] sm:$0xff] %vm433, 0.0
      %460 = vst.msk [vmem:[#allocation2 + $0xd0] sm:$0xff] %vm433, 0.0
      %461 = vst.msk [vmem:[#allocation2 + $0xd8] sm:$0xff] %vm433, 0.0
      %462 = vst.msk [vmem:[#allocation2 + $0xe0] sm:$0xff] %vm433, 0.0
      %463 = vst.msk [vmem:[#allocation2 + $0xe8] sm:$0xff] %vm433, 0.0
      %464 = vst.msk [vmem:[#allocation2 + $0xf0] sm:$0xff] %vm433, 0.0
      %465 = vst.msk [vmem:[#allocation2 + $0xf8] sm:$0xff] %vm433, 0.0
      %466 = vst.msk [vmem:[#allocation2 + $0x100] sm:$0xff] %vm433, 0.0
      %467 = vst.msk [vmem:[#allocation2 + $0x108] sm:$0xff] %vm433, 0.0
      %468 = vst.msk [vmem:[#allocation2 + $0x110] sm:$0xff] %vm433, 0.0
      %469 = vst.msk [vmem:[#allocation2 + $0x118] sm:$0xff] %vm433, 0.0
      %470 = vst.msk [vmem:[#allocation2 + $0x120] sm:$0xff] %vm433, 0.0
      %471 = vst.msk [vmem:[#allocation2 + $0x128] sm:$0xff] %vm433, 0.0
      %472 = vst.msk [vmem:[#allocation2 + $0x130] sm:$0xff] %vm433, 0.0
      %473 = vst.msk [vmem:[#allocation2 + $0x138] sm:$0xff] %vm433, 0.0
      %474 = vst.msk [vmem:[#allocation2 + $0x140] sm:$0xff] %vm433, 0.0
      %475 = vst.msk [vmem:[#allocation2 + $0x148] sm:$0xff] %vm433, 0.0
      %476 = vst.msk [vmem:[#allocation2 + $0x150] sm:$0xff] %vm433, 0.0
      %477 = vst.msk [vmem:[#allocation2 + $0x158] sm:$0xff] %vm433, 0.0
      %478 = vst.msk [vmem:[#allocation2 + $0x160] sm:$0xff] %vm433, 0.0
      %479 = vst.msk [vmem:[#allocation2 + $0x168] sm:$0xff] %vm433, 0.0
      %480 = vst.msk [vmem:[#allocation2 + $0x170] sm:$0xff] %vm433, 0.0
      %481 = vst.msk [vmem:[#allocation2 + $0x178] sm:$0xff] %vm433, 0.0
      %v482 = vld [vmem:[%s420] sm:$0xf]
      %v483 = vld [vmem:[%s420 + $0x4] sm:$0xf]
      %v484 = vld [vmem:[%s420 + $0x8] sm:$0xf]
      %v485 = vld [vmem:[%s420 + $0xc] sm:$0xf]
      %v486 = vld [vmem:[%s420 + $0x10] sm:$0xf]
      %v487 = vld [vmem:[%s420 + $0x14] sm:$0xf]
      %v488 = vld [vmem:[%s420 + $0x18] sm:$0xf]
      %v489 = vld [vmem:[%s420 + $0x1c] sm:$0xf]
      %v490 = vld [vmem:[%s420 + $0x20] sm:$0xf]
      %v491 = vld [vmem:[%s420 + $0x24] sm:$0xf]
      %v492 = vld [vmem:[%s420 + $0x28] sm:$0xf]
      %v493 = vld [vmem:[%s420 + $0x2c] sm:$0xf]
      %v494 = vld [vmem:[%s420 + $0x30] sm:$0xf]
      %v495 = vld [vmem:[%s420 + $0x34] sm:$0xf]
      %v496 = vld [vmem:[%s420 + $0x38] sm:$0xf]
      %v497 = vld [vmem:[%s420 + $0x3c] sm:$0xf]
      %v498 = vld [vmem:[%s420 + $0x40] sm:$0xf]
      %v499 = vld [vmem:[%s420 + $0x44] sm:$0xf]
      %v500 = vld [vmem:[%s420 + $0x48] sm:$0xf]
      %v501 = vld [vmem:[%s420 + $0x4c] sm:$0xf]
      %v502 = vld [vmem:[%s420 + $0x50] sm:$0xf]
      %v503 = vld [vmem:[%s420 + $0x54] sm:$0xf]
      %v504 = vld [vmem:[%s420 + $0x58] sm:$0xf]
      %v505 = vld [vmem:[%s420 + $0x5c] sm:$0xf]
      %v506 = vld [vmem:[%s420 + $0x60] sm:$0xf]
      %v507 = vld [vmem:[%s420 + $0x64] sm:$0xf]
      %v508 = vld [vmem:[%s420 + $0x68] sm:$0xf]
      %v509 = vld [vmem:[%s420 + $0x6c] sm:$0xf]
      %v510 = vld [vmem:[%s420 + $0x70] sm:$0xf]
      %v511 = vld [vmem:[%s420 + $0x74] sm:$0xf]
      %v512 = vld [vmem:[%s420 + $0x78] sm:$0xf]
      %v513 = vld [vmem:[%s420 + $0x7c] sm:$0xf]
      %v514 = vld [vmem:[%s420 + $0x80] sm:$0xf]
      %v515 = vld [vmem:[%s420 + $0x84] sm:$0xf]
      %v516 = vld [vmem:[%s420 + $0x88] sm:$0xf]
      %v517 = vld [vmem:[%s420 + $0x8c] sm:$0xf]
      %v518 = vld [vmem:[%s420 + $0x90] sm:$0xf]
      %v519 = vld [vmem:[%s420 + $0x94] sm:$0xf]
      %v520 = vld [vmem:[%s420 + $0x98] sm:$0xf]
      %v521 = vld [vmem:[%s420 + $0x9c] sm:$0xf]
      %v522 = vld [vmem:[%s420 + $0xa0] sm:$0xf]
      %v523 = vld [vmem:[%s420 + $0xa4] sm:$0xf]
      %v524 = vld [vmem:[%s420 + $0xa8] sm:$0xf]
      %v525 = vld [vmem:[%s420 + $0xac] sm:$0xf]
      %v526 = vld [vmem:[%s420 + $0xb0] sm:$0xf]
      %v527 = vld [vmem:[%s420 + $0xb4] sm:$0xf]
      %v528 = vld [vmem:[%s420 + $0xb8] sm:$0xf]
      %v529 = vld [vmem:[%s420 + $0xbc] sm:$0xf]
      %v530 = vld [vmem:[%s420 + $0xc0] sm:$0xf]
      %v531 = vld [vmem:[%s420 + $0xc4] sm:$0xf]
      %v532 = vld [vmem:[%s420 + $0xc8] sm:$0xf]
      %v533 = vld [vmem:[%s420 + $0xcc] sm:$0xf]
      %v534 = vld [vmem:[%s420 + $0xd0] sm:$0xf]
      %v535 = vld [vmem:[%s420 + $0xd4] sm:$0xf]
      %v536 = vld [vmem:[#allocation2] sm:$0xff]
      %v537 = vld [vmem:[#allocation2 + $0x8] sm:$0xff]
      %v538 = vld [vmem:[#allocation2 + $0x10] sm:$0xff]
      %v539 = vld [vmem:[#allocation2 + $0x18] sm:$0xff]
      %v540 = vld [vmem:[#allocation2 + $0x20] sm:$0xff]
      %v541 = vld [vmem:[#allocation2 + $0x28] sm:$0xff]
      %v542 = vld [vmem:[#allocation2 + $0x30] sm:$0xff]
      %v543 = vld [vmem:[#allocation2 + $0x38] sm:$0xff]
      %v544 = vld [vmem:[#allocation2 + $0x40] sm:$0xff]
      %v545 = vld [vmem:[#allocation2 + $0x48] sm:$0xff]
      %v546 = vld [vmem:[#allocation2 + $0x50] sm:$0xff]
      %v547 = vld [vmem:[#allocation2 + $0x58] sm:$0xff]
      %v548 = vld [vmem:[#allocation2 + $0x60] sm:$0xff]
      %v549 = vld [vmem:[#allocation2 + $0x68] sm:$0xff]
      %v550 = vld [vmem:[#allocation2 + $0x70] sm:$0xff]
      %v551 = vld [vmem:[#allocation2 + $0x78] sm:$0xff]
      %v552 = vld [vmem:[#allocation2 + $0x80] sm:$0xff]
      %v553 = vld [vmem:[#allocation2 + $0x88] sm:$0xff]
      %v554 = vld [vmem:[#allocation2 + $0x90] sm:$0xff]
      %v555 = vld [vmem:[#allocation2 + $0x98] sm:$0xff]
      %v556 = vld [vmem:[#allocation2 + $0xa0] sm:$0xff]
      %v557 = vld [vmem:[#allocation2 + $0xa8] sm:$0xff]
      %v558 = vld [vmem:[#allocation2 + $0xb0] sm:$0xff]
      %v559 = vld [vmem:[#allocation2 + $0xb8] sm:$0xff]
      %v560 = vld [vmem:[#allocation2 + $0xc0] sm:$0xff]
      %v561 = vld [vmem:[#allocation2 + $0xc8] sm:$0xff]
      %v562 = vld [vmem:[#allocation2 + $0xd0] sm:$0xff]
      %v563 = vld [vmem:[#allocation2 + $0xd8] sm:$0xff]
      %v564 = vld [vmem:[#allocation2 + $0xe0] sm:$0xff]
      %v565 = vld [vmem:[#allocation2 + $0xe8] sm:$0xff]
      %v566 = vld [vmem:[#allocation2 + $0xf0] sm:$0xff]
      %v567 = vld [vmem:[#allocation2 + $0xf8] sm:$0xff]
      %v568 = vld [vmem:[#allocation2 + $0x100] sm:$0xff]
      %v569 = vld [vmem:[#allocation2 + $0x108] sm:$0xff]
      %v570 = vld [vmem:[#allocation2 + $0x110] sm:$0xff]
      %v571 = vld [vmem:[#allocation2 + $0x118] sm:$0xff]
      %v572 = vld [vmem:[#allocation2 + $0x120] sm:$0xff]
      %v573 = vld [vmem:[#allocation2 + $0x128] sm:$0xff]
      %v574 = vld [vmem:[#allocation2 + $0x130] sm:$0xff]
      %v575 = vld [vmem:[#allocation2 + $0x138] sm:$0xff]
      %v576 = vld [vmem:[#allocation2 + $0x140] sm:$0xff]
      %v577 = vld [vmem:[#allocation2 + $0x148] sm:$0xff]
      %v578 = vld [vmem:[#allocation2 + $0x150] sm:$0xff]
      %v579 = vld [vmem:[#allocation2 + $0x158] sm:$0xff]
      %v580 = vld [vmem:[#allocation2 + $0x160] sm:$0xff]
      %v581 = vld [vmem:[#allocation2 + $0x168] sm:$0xff]
      %v582 = vld [vmem:[#allocation2 + $0x170] sm:$0xff]
      %v583 = vld [vmem:[#allocation2 + $0x178] sm:$0xff]
      %v584 = vld [vmem:[%s425] sm:$0xf]
      %v585 = vld [vmem:[%s425 + $0x4] sm:$0xf]
      %v586 = vld [vmem:[%s425 + $0x8] sm:$0xf]
      %v587 = vld [vmem:[%s425 + $0xc] sm:$0xf]
      %v588 = vld [vmem:[%s425 + $0x10] sm:$0xf]
      %v589 = vld [vmem:[%s425 + $0x14] sm:$0xf]
      %v590 = vld [vmem:[%s425 + $0x18] sm:$0xf]
      %v591 = vld [vmem:[%s425 + $0x1c] sm:$0xf]
      %v592 = vld [vmem:[%s425 + $0x20] sm:$0xf]
      %v593 = vld [vmem:[%s425 + $0x24] sm:$0xf]
      %v594 = vld [vmem:[%s425 + $0x28] sm:$0xf]
      %v595 = vld [vmem:[%s425 + $0x2c] sm:$0xf]
      %v596 = vld [vmem:[%s425 + $0x30] sm:$0xf]
      %v597 = vld [vmem:[%s425 + $0x34] sm:$0xf]
      %v598 = vld [vmem:[%s425 + $0x38] sm:$0xf]
      %v599 = vld [vmem:[%s425 + $0x3c] sm:$0xf]
      %v648 = vunpack.c.l.b16 %v482
      %v649 = vunpack.c.l.b16 %v483
      %v650 = vunpack.c.l.b16 %v484
      %v651 = vunpack.c.l.b16 %v485
      %v652 = vunpack.c.l.b16 %v486
      %v653 = vunpack.c.l.b16 %v487
      %v654 = vunpack.c.l.b16 %v488
      %v655 = vunpack.c.l.b16 %v489
      %v656 = vunpack.c.l.b16 %v490
      %v657 = vunpack.c.l.b16 %v491
      %v658 = vunpack.c.l.b16 %v492
      %v659 = vunpack.c.l.b16 %v493
      %v660 = vunpack.c.l.b16 %v494
      %v661 = vunpack.c.l.b16 %v495
      %v662 = vunpack.c.l.b16 %v496
      %v663 = vunpack.c.l.b16 %v497
      %v664 = vunpack.c.l.b16 %v498
      %v665 = vunpack.c.l.b16 %v499
      %v666 = vunpack.c.l.b16 %v500
      %v667 = vunpack.c.l.b16 %v501
      %v668 = vunpack.c.l.b16 %v502
      %v669 = vunpack.c.l.b16 %v503
      %v670 = vunpack.c.l.b16 %v504
      %v671 = vunpack.c.l.b16 %v505
      %v672 = vunpack.c.l.b16 %v506
      %v673 = vunpack.c.l.b16 %v507
      %v674 = vunpack.c.l.b16 %v508
      %v675 = vunpack.c.l.b16 %v509
      %v676 = vunpack.c.l.b16 %v510
      %v677 = vunpack.c.l.b16 %v511
      %v678 = vunpack.c.l.b16 %v512
      %v679 = vunpack.c.l.b16 %v513
      %v680 = vunpack.c.l.b16 %v514
      %v681 = vunpack.c.l.b16 %v515
      %v682 = vunpack.c.l.b16 %v516
      %v683 = vunpack.c.l.b16 %v517
      %v684 = vunpack.c.l.b16 %v518
      %v685 = vunpack.c.l.b16 %v519
      %v686 = vunpack.c.l.b16 %v520
      %v687 = vunpack.c.l.b16 %v521
      %v688 = vunpack.c.l.b16 %v522
      %v689 = vunpack.c.l.b16 %v523
      %v690 = vunpack.c.l.b16 %v524
      %v691 = vunpack.c.l.b16 %v525
      %v692 = vunpack.c.l.b16 %v526
      %v693 = vunpack.c.l.b16 %v527
      %v694 = vunpack.c.l.b16 %v528
      %v695 = vunpack.c.l.b16 %v529
      %v696 = vpack.c.b16 %v649, %v648
      %v697 = vpack.c.b16 %v651, %v650
      %v698 = vpack.c.b16 %v653, %v652
      %v699 = vpack.c.b16 %v655, %v654
      %v700 = vpack.c.b16 %v657, %v656
      %v701 = vpack.c.b16 %v659, %v658
      %v702 = vpack.c.b16 %v661, %v660
      %v703 = vpack.c.b16 %v663, %v662
      %v704 = vpack.c.b16 %v665, %v664
      %v705 = vpack.c.b16 %v667, %v666
      %v706 = vpack.c.b16 %v669, %v668
      %v707 = vpack.c.b16 %v671, %v670
      %v708 = vpack.c.b16 %v673, %v672
      %v709 = vpack.c.b16 %v675, %v674
      %v710 = vpack.c.b16 %v677, %v676
      %v711 = vpack.c.b16 %v679, %v678
      %v712 = vpack.c.b16 %v681, %v680
      %v713 = vpack.c.b16 %v683, %v682
      %v714 = vpack.c.b16 %v685, %v684
      %v715 = vpack.c.b16 %v687, %v686
      %v716 = vpack.c.b16 %v689, %v688
      %v717 = vpack.c.b16 %v691, %v690
      %v718 = vpack.c.b16 %v693, %v692
      %v719 = vpack.c.b16 %v695, %v694
      %v760 = vunpack.c.l.b16 %v584
      %v761 = vunpack.c.l.b16 %v585
      %v762 = vunpack.c.l.b16 %v586
      %v763 = vunpack.c.l.b16 %v587
      %v764 = vunpack.c.l.b16 %v588
      %v765 = vunpack.c.l.b16 %v589
      %v766 = vunpack.c.l.b16 %v590
      %v767 = vunpack.c.l.b16 %v591
      %v768 = vunpack.c.l.b16 %v592
      %v769 = vunpack.c.l.b16 %v593
      %v770 = vunpack.c.l.b16 %v594
      %v771 = vunpack.c.l.b16 %v595
      %v772 = vunpack.c.l.b16 %v596
      %v773 = vunpack.c.l.b16 %v597
      %v774 = vunpack.c.l.b16 %v598
      %v775 = vunpack.c.l.b16 %v599
      %v776 = vpack.c.b16 %v761, %v760
      %v777 = vpack.c.b16 %v763, %v762
      %v778 = vpack.c.b16 %v765, %v764
      %v779 = vpack.c.b16 %v767, %v766
      %v780 = vpack.c.b16 %v769, %v768
      %v781 = vpack.c.b16 %v771, %v770
      %v782 = vpack.c.b16 %v773, %v772
      %v783 = vpack.c.b16 %v775, %v774
      %792 = vmatprep.subr.bf16.mxu0 0
      %793 = vmatpush1.bf16.msra.mxu0 %v776
      %794 = vmatprep.subr.bf16.mxu0 0
      %795 = vmatpush1.bf16.msra.mxu0 %v777
      %796 = vmatprep.subr.bf16.mxu0 0
      %797 = vmatpush1.bf16.msra.mxu0 %v778
      %798 = vmatprep.subr.bf16.mxu0 0
      %799 = vmatpush1.bf16.msra.mxu0 %v779
      %800 = vmatprep.subr.bf16.mxu0 0
      %801 = vmatpush1.bf16.msra.mxu0 %v780
      %802 = vmatprep.subr.bf16.mxu0 0
      %803 = vmatpush1.bf16.msra.mxu0 %v781
      %804 = vmatprep.subr.bf16.mxu0 0
      %805 = vmatpush1.bf16.msra.mxu0 %v782
      %806 = vmatprep.subr.bf16.mxu0 0
      %807 = vmatpush1.bf16.msra.mxu0 %v783
      %808 = vmatprep.subr.bf16.mxu0 0
      %809 = vmatpush1.bf16.msra.mxu0 0
      %810 = vmatprep.subr.bf16.mxu0 0
      %811 = vmatpush1.bf16.msra.mxu0 0
      %812 = vmatprep.subr.bf16.mxu0 0
      %813 = vmatpush1.bf16.msra.mxu0 0
      %814 = vmatprep.subr.bf16.mxu0 0
      %815 = vmatpush1.bf16.msra.mxu0 0
      %816 = vmatprep.subr.bf16.mxu0 0
      %817 = vmatpush1.bf16.msra.mxu0 0
      %818 = vmatprep.subr.bf16.mxu0 0
      %819 = vmatpush1.bf16.msra.mxu0 0
      %820 = vmatprep.subr.bf16.mxu0 0
      %821 = vmatpush1.bf16.msra.mxu0 0
      %822 = vmatprep.subr.bf16.mxu0 0
      %823 = vmatpush1.bf16.msra.mxu0 0
      %824 = vmatprep.mubr.bf16.mxu0 0
      %825 = vmatmul.mubr.bf16.gmra.mrb[0].mxu0 %v696
      %v826 = vpop.f32.mrb[0].mxu0
      %v827 = vadd.f32 0.0, %v826
      %v828 = vpop.f32.mrb[0].mxu0
      %v829 = vpop.f32.mrb[0].mxu0
      %v830 = vadd.f32 0.0, %v829
      %v831 = vpop.f32.mrb[0].mxu0
      %832 = vmatprep.mubr.bf16.mxu0 0
      %833 = vmatmul.mubr.bf16.gmra.mrb[0].mxu0 %v697
      %v834 = vpop.f32.mrb[0].mxu0
      %v835 = vadd.f32 0.0, %v834
      %v836 = vpop.f32.mrb[0].mxu0
      %v837 = vpop.f32.mrb[0].mxu0
      %v838 = vadd.f32 0.0, %v837
      %v839 = vpop.f32.mrb[0].mxu0
      %840 = vmatprep.mubr.bf16.mxu0 0
      %841 = vmatmul.mubr.bf16.gmra.mrb[0].mxu0 %v698
      %v842 = vpop.f32.mrb[0].mxu0
      %v843 = vadd.f32 0.0, %v842
      %v844 = vpop.f32.mrb[0].mxu0
      %v845 = vpop.f32.mrb[0].mxu0
      %v846 = vadd.f32 0.0, %v845
      %v847 = vpop.f32.mrb[0].mxu0
      %848 = vmatprep.mubr.bf16.mxu0 0
      %849 = vmatmul.mubr.bf16.gmra.mrb[0].mxu0 %v699
      %v850 = vpop.f32.mrb[0].mxu0
      %v851 = vadd.f32 0.0, %v850
      %v852 = vpop.f32.mrb[0].mxu0
      %v853 = vpop.f32.mrb[0].mxu0
      %v854 = vadd.f32 0.0, %v853
      %v855 = vpop.f32.mrb[0].mxu0
      %856 = vmatprep.mubr.bf16.mxu0 0
      %857 = vmatmul.mubr.bf16.gmra.mrb[0].mxu0 %v700
      %v858 = vpop.f32.mrb[0].mxu0
      %v859 = vadd.f32 0.0, %v858
      %v860 = vpop.f32.mrb[0].mxu0
      %v861 = vpop.f32.mrb[0].mxu0
      %v862 = vadd.f32 0.0, %v861
      %v863 = vpop.f32.mrb[0].mxu0
      %864 = vmatprep.mubr.bf16.mxu0 0
      %865 = vmatmul.mubr.bf16.gmra.mrb[0].mxu0 %v701
      %v866 = vpop.f32.mrb[0].mxu0
      %v867 = vadd.f32 0.0, %v866
      %v868 = vpop.f32.mrb[0].mxu0
      %v869 = vpop.f32.mrb[0].mxu0
      %v870 = vadd.f32 0.0, %v869
      %v871 = vpop.f32.mrb[0].mxu0
      %872 = vmatprep.mubr.bf16.mxu0 0
      %873 = vmatmul.mubr.bf16.gmra.mrb[0].mxu0 %v702
      %v874 = vpop.f32.mrb[0].mxu0
      %v875 = vadd.f32 0.0, %v874
      %v876 = vpop.f32.mrb[0].mxu0
      %v877 = vpop.f32.mrb[0].mxu0
      %v878 = vadd.f32 0.0, %v877
      %v879 = vpop.f32.mrb[0].mxu0
      %880 = vmatprep.mubr.bf16.mxu0 0
      %881 = vmatmul.mubr.bf16.gmra.mrb[0].mxu0 %v703
      %v882 = vpop.f32.mrb[0].mxu0
      %v883 = vadd.f32 0.0, %v882
      %v884 = vpop.f32.mrb[0].mxu0
      %v885 = vpop.f32.mrb[0].mxu0
      %v886 = vadd.f32 0.0, %v885
      %v887 = vpop.f32.mrb[0].mxu0
      %888 = vmatprep.mubr.bf16.mxu0 0
      %889 = vmatmul.mubr.bf16.gmra.mrb[0].mxu0 %v704
      %v890 = vpop.f32.mrb[0].mxu0
      %v891 = vadd.f32 0.0, %v890
      %v892 = vpop.f32.mrb[0].mxu0
      %v893 = vpop.f32.mrb[0].mxu0
      %v894 = vadd.f32 0.0, %v893
      %v895 = vpop.f32.mrb[0].mxu0
      %896 = vmatprep.mubr.bf16.mxu0 0
      %897 = vmatmul.mubr.bf16.gmra.mrb[0].mxu0 %v705
      %v898 = vpop.f32.mrb[0].mxu0
      %v899 = vadd.f32 0.0, %v898
      %v900 = vpop.f32.mrb[0].mxu0
      %v901 = vpop.f32.mrb[0].mxu0
      %v902 = vadd.f32 0.0, %v901
      %v903 = vpop.f32.mrb[0].mxu0
      %904 = vmatprep.mubr.bf16.mxu0 0
      %905 = vmatmul.mubr.bf16.gmra.mrb[0].mxu0 %v706
      %v906 = vpop.f32.mrb[0].mxu0
      %v907 = vadd.f32 0.0, %v906
      %v908 = vpop.f32.mrb[0].mxu0
      %v909 = vpop.f32.mrb[0].mxu0
      %v910 = vadd.f32 0.0, %v909
      %v911 = vpop.f32.mrb[0].mxu0
      %912 = vmatprep.mubr.bf16.mxu0 0
      %913 = vmatmul.mubr.bf16.gmra.mrb[0].mxu0 %v707
      %v914 = vpop.f32.mrb[0].mxu0
      %v915 = vadd.f32 0.0, %v914
      %v916 = vpop.f32.mrb[0].mxu0
      %v917 = vpop.f32.mrb[0].mxu0
      %v918 = vadd.f32 0.0, %v917
      %v919 = vpop.f32.mrb[0].mxu0
      %920 = vmatprep.mubr.bf16.mxu0 0
      %921 = vmatmul.mubr.bf16.gmra.mrb[0].mxu0 %v708
      %v922 = vpop.f32.mrb[0].mxu0
      %v923 = vadd.f32 0.0, %v922
      %v924 = vpop.f32.mrb[0].mxu0
      %v925 = vpop.f32.mrb[0].mxu0
      %v926 = vadd.f32 0.0, %v925
      %v927 = vpop.f32.mrb[0].mxu0
      %928 = vmatprep.mubr.bf16.mxu0 0
      %929 = vmatmul.mubr.bf16.gmra.mrb[0].mxu0 %v709
      %v930 = vpop.f32.mrb[0].mxu0
      %v931 = vadd.f32 0.0, %v930
      %v932 = vpop.f32.mrb[0].mxu0
      %v933 = vpop.f32.mrb[0].mxu0
      %v934 = vadd.f32 0.0, %v933
      %v935 = vpop.f32.mrb[0].mxu0
      %936 = vmatprep.mubr.bf16.mxu0 0
      %937 = vmatmul.mubr.bf16.gmra.mrb[0].mxu0 %v710
      %v938 = vpop.f32.mrb[0].mxu0
      %v939 = vadd.f32 0.0, %v938
      %v940 = vpop.f32.mrb[0].mxu0
      %v941 = vpop.f32.mrb[0].mxu0
      %v942 = vadd.f32 0.0, %v941
      %v943 = vpop.f32.mrb[0].mxu0
      %944 = vmatprep.mubr.bf16.mxu0 0
      %945 = vmatmul.mubr.bf16.gmra.mrb[0].mxu0 %v711
      %v946 = vpop.f32.mrb[0].mxu0
      %v947 = vadd.f32 0.0, %v946
      %v948 = vpop.f32.mrb[0].mxu0
      %v949 = vpop.f32.mrb[0].mxu0
      %v950 = vadd.f32 0.0, %v949
      %v951 = vpop.f32.mrb[0].mxu0
      %952 = vmatprep.mubr.bf16.mxu0 0
      %953 = vmatmul.mubr.bf16.gmra.mrb[0].mxu0 %v712
      %v954 = vpop.f32.mrb[0].mxu0
      %v955 = vadd.f32 0.0, %v954
      %v956 = vpop.f32.mrb[0].mxu0
      %v957 = vpop.f32.mrb[0].mxu0
      %v958 = vadd.f32 0.0, %v957
      %v959 = vpop.f32.mrb[0].mxu0
      %960 = vmatprep.mubr.bf16.mxu0 0
      %961 = vmatmul.mubr.bf16.gmra.mrb[0].mxu0 %v713
      %v962 = vpop.f32.mrb[0].mxu0
      %v963 = vadd.f32 0.0, %v962
      %v964 = vpop.f32.mrb[0].mxu0
      %v965 = vpop.f32.mrb[0].mxu0
      %v966 = vadd.f32 0.0, %v965
      %v967 = vpop.f32.mrb[0].mxu0
      %968 = vmatprep.mubr.bf16.mxu0 0
      %969 = vmatmul.mubr.bf16.gmra.mrb[0].mxu0 %v714
      %v970 = vpop.f32.mrb[0].mxu0
      %v971 = vadd.f32 0.0, %v970
      %v972 = vpop.f32.mrb[0].mxu0
      %v973 = vpop.f32.mrb[0].mxu0
      %v974 = vadd.f32 0.0, %v973
      %v975 = vpop.f32.mrb[0].mxu0
      %976 = vmatprep.mubr.bf16.mxu0 0
      %977 = vmatmul.mubr.bf16.gmra.mrb[0].mxu0 %v715
      %v978 = vpop.f32.mrb[0].mxu0
      %v979 = vadd.f32 0.0, %v978
      %v980 = vpop.f32.mrb[0].mxu0
      %v981 = vpop.f32.mrb[0].mxu0
      %v982 = vadd.f32 0.0, %v981
      %v983 = vpop.f32.mrb[0].mxu0
      %984 = vmatprep.mubr.bf16.mxu0 0
      %985 = vmatmul.mubr.bf16.gmra.mrb[0].mxu0 %v716
      %v986 = vpop.f32.mrb[0].mxu0
      %v987 = vadd.f32 0.0, %v986
      %v988 = vpop.f32.mrb[0].mxu0
      %v989 = vpop.f32.mrb[0].mxu0
      %v990 = vadd.f32 0.0, %v989
      %v991 = vpop.f32.mrb[0].mxu0
      %992 = vmatprep.mubr.bf16.mxu0 0
      %993 = vmatmul.mubr.bf16.gmra.mrb[0].mxu0 %v717
      %v994 = vpop.f32.mrb[0].mxu0
      %v995 = vadd.f32 0.0, %v994
      %v996 = vpop.f32.mrb[0].mxu0
      %v997 = vpop.f32.mrb[0].mxu0
      %v998 = vadd.f32 0.0, %v997
      %v999 = vpop.f32.mrb[0].mxu0
      %1000 = vmatprep.mubr.bf16.mxu0 0
      %1001 = vmatmul.mubr.bf16.gmra.mrb[0].mxu0 %v718
      %v1002 = vpop.f32.mrb[0].mxu0
      %v1003 = vadd.f32 0.0, %v1002
      %v1004 = vpop.f32.mrb[0].mxu0
      %v1005 = vpop.f32.mrb[0].mxu0
      %v1006 = vadd.f32 0.0, %v1005
      %v1007 = vpop.f32.mrb[0].mxu0
      %1008 = vmatprep.mubr.bf16.mxu0 0
      %1009 = vmatmul.mubr.bf16.gmra.mrb[0].mxu0 %v719
      %v1010 = vpop.f32.mrb[0].mxu0
      %v1011 = vadd.f32 0.0, %v1010
      %v1012 = vpop.f32.mrb[0].mxu0
      %v1013 = vpop.f32.mrb[0].mxu0
      %v1014 = vadd.f32 0.0, %v1013
      %v1015 = vpop.f32.mrb[0].mxu0
      %1016 = vdwg.mxu0
      %v1017 = vadd.f32 %v536, %v827
      %v1018 = vadd.f32 %v537, %v830
      %v1019 = vadd.f32 %v538, %v835
      %v1020 = vadd.f32 %v539, %v838
      %v1021 = vadd.f32 %v540, %v843
      %v1022 = vadd.f32 %v541, %v846
      %v1023 = vadd.f32 %v542, %v851
      %v1024 = vadd.f32 %v543, %v854
      %v1025 = vadd.f32 %v544, %v859
      %v1026 = vadd.f32 %v545, %v862
      %v1027 = vadd.f32 %v546, %v867
      %v1028 = vadd.f32 %v547, %v870
      %v1029 = vadd.f32 %v548, %v875
      %v1030 = vadd.f32 %v549, %v878
      %v1031 = vadd.f32 %v550, %v883
      %v1032 = vadd.f32 %v551, %v886
      %v1033 = vadd.f32 %v552, %v891
      %v1034 = vadd.f32 %v553, %v894
      %v1035 = vadd.f32 %v554, %v899
      %v1036 = vadd.f32 %v555, %v902
      %v1037 = vadd.f32 %v556, %v907
      %v1038 = vadd.f32 %v557, %v910
      %v1039 = vadd.f32 %v558, %v915
      %v1040 = vadd.f32 %v559, %v918
      %v1041 = vadd.f32 %v560, %v923
      %v1042 = vadd.f32 %v561, %v926
      %v1043 = vadd.f32 %v562, %v931
      %v1044 = vadd.f32 %v563, %v934
      %v1045 = vadd.f32 %v564, %v939
      %v1046 = vadd.f32 %v565, %v942
      %v1047 = vadd.f32 %v566, %v947
      %v1048 = vadd.f32 %v567, %v950
      %v1049 = vadd.f32 %v568, %v955
      %v1050 = vadd.f32 %v569, %v958
      %v1051 = vadd.f32 %v570, %v963
      %v1052 = vadd.f32 %v571, %v966
      %v1053 = vadd.f32 %v572, %v971
      %v1054 = vadd.f32 %v573, %v974
      %v1055 = vadd.f32 %v574, %v979
      %v1056 = vadd.f32 %v575, %v982
      %v1057 = vadd.f32 %v576, %v987
      %v1058 = vadd.f32 %v577, %v990
      %v1059 = vadd.f32 %v578, %v995
      %v1060 = vadd.f32 %v579, %v998
      %v1061 = vadd.f32 %v580, %v1003
      %v1062 = vadd.f32 %v581, %v1006
      %v1063 = vadd.f32 %v582, %v1011
      %v1064 = vadd.f32 %v583, %v1014
      %1065 = vst.msk [vmem:[#allocation2] sm:$0xff] %vm433, %v1017
      %1066 = vst.msk [vmem:[#allocation2 + $0x8] sm:$0xff] %vm433, %v1018
      %1067 = vst.msk [vmem:[#allocation2 + $0x10] sm:$0xff] %vm433, %v1019
      %1068 = vst.msk [vmem:[#allocation2 + $0x18] sm:$0xff] %vm433, %v1020
      %1069 = vst.msk [vmem:[#allocation2 + $0x20] sm:$0xff] %vm433, %v1021
      %1070 = vst.msk [vmem:[#allocation2 + $0x28] sm:$0xff] %vm433, %v1022
      %1071 = vst.msk [vmem:[#allocation2 + $0x30] sm:$0xff] %vm433, %v1023
      %1072 = vst.msk [vmem:[#allocation2 + $0x38] sm:$0xff] %vm433, %v1024
      %1073 = vst.msk [vmem:[#allocation2 + $0x40] sm:$0xff] %vm433, %v1025
      %1074 = vst.msk [vmem:[#allocation2 + $0x48] sm:$0xff] %vm433, %v1026
      %1075 = vst.msk [vmem:[#allocation2 + $0x50] sm:$0xff] %vm433, %v1027
      %1076 = vst.msk [vmem:[#allocation2 + $0x58] sm:$0xff] %vm433, %v1028
      %1077 = vst.msk [vmem:[#allocation2 + $0x60] sm:$0xff] %vm433, %v1029
      %1078 = vst.msk [vmem:[#allocation2 + $0x68] sm:$0xff] %vm433, %v1030
      %1079 = vst.msk [vmem:[#allocation2 + $0x70] sm:$0xff] %vm433, %v1031
      %1080 = vst.msk [vmem:[#allocation2 + $0x78] sm:$0xff] %vm433, %v1032
      %1081 = vst.msk [vmem:[#allocation2 + $0x80] sm:$0xff] %vm433, %v1033
      %1082 = vst.msk [vmem:[#allocation2 + $0x88] sm:$0xff] %vm433, %v1034
      %1083 = vst.msk [vmem:[#allocation2 + $0x90] sm:$0xff] %vm433, %v1035
      %1084 = vst.msk [vmem:[#allocation2 + $0x98] sm:$0xff] %vm433, %v1036
      %1085 = vst.msk [vmem:[#allocation2 + $0xa0] sm:$0xff] %vm433, %v1037
      %1086 = vst.msk [vmem:[#allocation2 + $0xa8] sm:$0xff] %vm433, %v1038
      %1087 = vst.msk [vmem:[#allocation2 + $0xb0] sm:$0xff] %vm433, %v1039
      %1088 = vst.msk [vmem:[#allocation2 + $0xb8] sm:$0xff] %vm433, %v1040
      %1089 = vst.msk [vmem:[#allocation2 + $0xc0] sm:$0xff] %vm433, %v1041
      %1090 = vst.msk [vmem:[#allocation2 + $0xc8] sm:$0xff] %vm433, %v1042
      %1091 = vst.msk [vmem:[#allocation2 + $0xd0] sm:$0xff] %vm433, %v1043
      %1092 = vst.msk [vmem:[#allocation2 + $0xd8] sm:$0xff] %vm433, %v1044
      %1093 = vst.msk [vmem:[#allocation2 + $0xe0] sm:$0xff] %vm433, %v1045
      %1094 = vst.msk [vmem:[#allocation2 + $0xe8] sm:$0xff] %vm433, %v1046
      %1095 = vst.msk [vmem:[#allocation2 + $0xf0] sm:$0xff] %vm433, %v1047
      %1096 = vst.msk [vmem:[#allocation2 + $0xf8] sm:$0xff] %vm433, %v1048
      %1097 = vst.msk [vmem:[#allocation2 + $0x100] sm:$0xff] %vm433, %v1049
      %1098 = vst.msk [vmem:[#allocation2 + $0x108] sm:$0xff] %vm433, %v1050
      %1099 = vst.msk [vmem:[#allocation2 + $0x110] sm:$0xff] %vm433, %v1051
      %1100 = vst.msk [vmem:[#allocation2 + $0x118] sm:$0xff] %vm433, %v1052
      %1101 = vst.msk [vmem:[#allocation2 + $0x120] sm:$0xff] %vm433, %v1053
      %1102 = vst.msk [vmem:[#allocation2 + $0x128] sm:$0xff] %vm433, %v1054
      %1103 = vst.msk [vmem:[#allocation2 + $0x130] sm:$0xff] %vm433, %v1055
      %1104 = vst.msk [vmem:[#allocation2 + $0x138] sm:$0xff] %vm433, %v1056
      %1105 = vst.msk [vmem:[#allocation2 + $0x140] sm:$0xff] %vm433, %v1057
      %1106 = vst.msk [vmem:[#allocation2 + $0x148] sm:$0xff] %vm433, %v1058
      %1107 = vst.msk [vmem:[#allocation2 + $0x150] sm:$0xff] %vm433, %v1059
      %1108 = vst.msk [vmem:[#allocation2 + $0x158] sm:$0xff] %vm433, %v1060
      %1109 = vst.msk [vmem:[#allocation2 + $0x160] sm:$0xff] %vm433, %v1061
      %1110 = vst.msk [vmem:[#allocation2 + $0x168] sm:$0xff] %vm433, %v1062
      %1111 = vst.msk [vmem:[#allocation2 + $0x170] sm:$0xff] %vm433, %v1063
      %1112 = vst.msk [vmem:[#allocation2 + $0x178] sm:$0xff] %vm433, %v1064
      %v1113 = vld [vmem:[#allocation2] sm:$0xff]
      %v1114 = vld [vmem:[#allocation2 + $0x8] sm:$0xff]
      %v1115 = vld [vmem:[#allocation2 + $0x10] sm:$0xff]
      %v1116 = vld [vmem:[#allocation2 + $0x18] sm:$0xff]
      %v1117 = vld [vmem:[#allocation2 + $0x20] sm:$0xff]
      %v1118 = vld [vmem:[#allocation2 + $0x28] sm:$0xff]
      %v1119 = vld [vmem:[#allocation2 + $0x30] sm:$0xff]
      %v1120 = vld [vmem:[#allocation2 + $0x38] sm:$0xff]
      %v1121 = vld [vmem:[#allocation2 + $0x40] sm:$0xff]
      %v1122 = vld [vmem:[#allocation2 + $0x48] sm:$0xff]
      %v1123 = vld [vmem:[#allocation2 + $0x50] sm:$0xff]
      %v1124 = vld [vmem:[#allocation2 + $0x58] sm:$0xff]
      %v1125 = vld [vmem:[#allocation2 + $0x60] sm:$0xff]
      %v1126 = vld [vmem:[#allocation2 + $0x68] sm:$0xff]
      %v1127 = vld [vmem:[#allocation2 + $0x70] sm:$0xff]
      %v1128 = vld [vmem:[#allocation2 + $0x78] sm:$0xff]
      %v1129 = vld [vmem:[#allocation2 + $0x80] sm:$0xff]
      %v1130 = vld [vmem:[#allocation2 + $0x88] sm:$0xff]
      %v1131 = vld [vmem:[#allocation2 + $0x90] sm:$0xff]
      %v1132 = vld [vmem:[#allocation2 + $0x98] sm:$0xff]
      %v1133 = vld [vmem:[#allocation2 + $0xa0] sm:$0xff]
      %v1134 = vld [vmem:[#allocation2 + $0xa8] sm:$0xff]
      %v1135 = vld [vmem:[#allocation2 + $0xb0] sm:$0xff]
      %v1136 = vld [vmem:[#allocation2 + $0xb8] sm:$0xff]
      %v1137 = vld [vmem:[#allocation2 + $0xc0] sm:$0xff]
      %v1138 = vld [vmem:[#allocation2 + $0xc8] sm:$0xff]
      %v1139 = vld [vmem:[#allocation2 + $0xd0] sm:$0xff]
      %v1140 = vld [vmem:[#allocation2 + $0xd8] sm:$0xff]
      %v1141 = vld [vmem:[#allocation2 + $0xe0] sm:$0xff]
      %v1142 = vld [vmem:[#allocation2 + $0xe8] sm:$0xff]
      %v1143 = vld [vmem:[#allocation2 + $0xf0] sm:$0xff]
      %v1144 = vld [vmem:[#allocation2 + $0xf8] sm:$0xff]
      %v1145 = vld [vmem:[#allocation2 + $0x100] sm:$0xff]
      %v1146 = vld [vmem:[#allocation2 + $0x108] sm:$0xff]
      %v1147 = vld [vmem:[#allocation2 + $0x110] sm:$0xff]
      %v1148 = vld [vmem:[#allocation2 + $0x118] sm:$0xff]
      %v1149 = vld [vmem:[#allocation2 + $0x120] sm:$0xff]
      %v1150 = vld [vmem:[#allocation2 + $0x128] sm:$0xff]
      %v1151 = vld [vmem:[#allocation2 + $0x130] sm:$0xff]
      %v1152 = vld [vmem:[#allocation2 + $0x138] sm:$0xff]
      %v1153 = vld [vmem:[#allocation2 + $0x140] sm:$0xff]
      %v1154 = vld [vmem:[#allocation2 + $0x148] sm:$0xff]
      %v1155 = vld [vmem:[#allocation2 + $0x150] sm:$0xff]
      %v1156 = vld [vmem:[#allocation2 + $0x158] sm:$0xff]
      %v1157 = vld [vmem:[#allocation2 + $0x160] sm:$0xff]
      %v1158 = vld [vmem:[#allocation2 + $0x168] sm:$0xff]
      %v1159 = vld [vmem:[#allocation2 + $0x170] sm:$0xff]
      %v1160 = vld [vmem:[#allocation2 + $0x178] sm:$0xff]
      %s1161 = scalar_lea.vmem %s425, 64
      %v1162 = vld [vmem:[%s1161] sm:$0xf]
      %v1163 = vld [vmem:[%s1161 + $0x4] sm:$0xf]
      %v1164 = vld [vmem:[%s1161 + $0x8] sm:$0xf]
      %v1165 = vld [vmem:[%s1161 + $0xc] sm:$0xf]
      %v1166 = vld [vmem:[%s1161 + $0x10] sm:$0xf]
      %v1167 = vld [vmem:[%s1161 + $0x14] sm:$0xf]
      %v1168 = vld [vmem:[%s1161 + $0x18] sm:$0xf]
      %v1169 = vld [vmem:[%s1161 + $0x1c] sm:$0xf]
      %v1170 = vld [vmem:[%s1161 + $0x20] sm:$0xf]
      %v1171 = vld [vmem:[%s1161 + $0x24] sm:$0xf]
      %v1172 = vld [vmem:[%s1161 + $0x28] sm:$0xf]
      %v1173 = vld [vmem:[%s1161 + $0x2c] sm:$0xf]
      %v1174 = vld [vmem:[%s1161 + $0x30] sm:$0xf]
      %v1175 = vld [vmem:[%s1161 + $0x34] sm:$0xf]
      %v1176 = vld [vmem:[%s1161 + $0x38] sm:$0xf]
      %v1177 = vld [vmem:[%s1161 + $0x3c] sm:$0xf]
      %v1181 = vunpack.c.l.b16 %v530
      %v1182 = vunpack.c.l.b16 %v531
      %v1183 = vunpack.c.l.b16 %v532
      %v1184 = vpack.c.b16 %v652, %v651
      %v1185 = vpack.c.b16 %v654, %v653
      %v1186 = vpack.c.b16 %v656, %v655
      %v1187 = vpack.c.b16 %v658, %v657
      %v1188 = vpack.c.b16 %v660, %v659
      %v1189 = vpack.c.b16 %v662, %v661
      %v1190 = vpack.c.b16 %v664, %v663
      %v1191 = vpack.c.b16 %v666, %v665
      %v1192 = vpack.c.b16 %v668, %v667
      %v1193 = vpack.c.b16 %v670, %v669
      %v1194 = vpack.c.b16 %v672, %v671
      %v1195 = vpack.c.b16 %v674, %v673
      %v1196 = vpack.c.b16 %v676, %v675
      %v1197 = vpack.c.b16 %v678, %v677
      %v1198 = vpack.c.b16 %v680, %v679
      %v1199 = vpack.c.b16 %v682, %v681
      %v1200 = vpack.c.b16 %v684, %v683
      %v1201 = vpack.c.b16 %v686, %v685
      %v1202 = vpack.c.b16 %v688, %v687
      %v1203 = vpack.c.b16 %v690, %v689
      %v1204 = vpack.c.b16 %v692, %v691
      %v1205 = vpack.c.b16 %v694, %v693
      %v1206 = vpack.c.b16 %v1181, %v695
      %v1207 = vpack.c.b16 %v1183, %v1182
      %v1248 = vunpack.c.l.b16 %v1162
      %v1249 = vunpack.c.l.b16 %v1163
      %v1250 = vunpack.c.l.b16 %v1164
      %v1251 = vunpack.c.l.b16 %v1165
      %v1252 = vunpack.c.l.b16 %v1166
      %v1253 = vunpack.c.l.b16 %v1167
      %v1254 = vunpack.c.l.b16 %v1168
      %v1255 = vunpack.c.l.b16 %v1169
      %v1256 = vunpack.c.l.b16 %v1170
      %v1257 = vunpack.c.l.b16 %v1171
      %v1258 = vunpack.c.l.b16 %v1172
      %v1259 = vunpack.c.l.b16 %v1173
      %v1260 = vunpack.c.l.b16 %v1174
      %v1261 = vunpack.c.l.b16 %v1175
      %v1262 = vunpack.c.l.b16 %v1176
      %v1263 = vunpack.c.l.b16 %v1177
      %v1264 = vpack.c.b16 %v1249, %v1248
      %v1265 = vpack.c.b16 %v1251, %v1250
      %v1266 = vpack.c.b16 %v1253, %v1252
      %v1267 = vpack.c.b16 %v1255, %v1254
      %v1268 = vpack.c.b16 %v1257, %v1256
      %v1269 = vpack.c.b16 %v1259, %v1258
      %v1270 = vpack.c.b16 %v1261, %v1260
      %v1271 = vpack.c.b16 %v1263, %v1262
      %1280 = vmatprep.subr.bf16.mxu0 0
      %1281 = vmatpush1.bf16.msra.mxu0 %v1264
      %1282 = vmatprep.subr.bf16.mxu0 0
      %1283 = vmatpush1.bf16.msra.mxu0 %v1265
      %1284 = vmatprep.subr.bf16.mxu0 0
      %1285 = vmatpush1.bf16.msra.mxu0 %v1266
      %1286 = vmatprep.subr.bf16.mxu0 0
      %1287 = vmatpush1.bf16.msra.mxu0 %v1267
      %1288 = vmatprep.subr.bf16.mxu0 0
      %1289 = vmatpush1.bf16.msra.mxu0 %v1268
      %1290 = vmatprep.subr.bf16.mxu0 0
      %1291 = vmatpush1.bf16.msra.mxu0 %v1269
      %1292 = vmatprep.subr.bf16.mxu0 0
      %1293 = vmatpush1.bf16.msra.mxu0 %v1270
      %1294 = vmatprep.subr.bf16.mxu0 0
      %1295 = vmatpush1.bf16.msra.mxu0 %v1271
      %1296 = vmatprep.subr.bf16.mxu0 0
      %1297 = vmatpush1.bf16.msra.mxu0 0
      %1298 = vmatprep.subr.bf16.mxu0 0
      %1299 = vmatpush1.bf16.msra.mxu0 0
      %1300 = vmatprep.subr.bf16.mxu0 0
      %1301 = vmatpush1.bf16.msra.mxu0 0
      %1302 = vmatprep.subr.bf16.mxu0 0
      %1303 = vmatpush1.bf16.msra.mxu0 0
      %1304 = vmatprep.subr.bf16.mxu0 0
      %1305 = vmatpush1.bf16.msra.mxu0 0
      %1306 = vmatprep.subr.bf16.mxu0 0
      %1307 = vmatpush1.bf16.msra.mxu0 0
      %1308 = vmatprep.subr.bf16.mxu0 0
      %1309 = vmatpush1.bf16.msra.mxu0 0
      %1310 = vmatprep.subr.bf16.mxu0 0
      %1311 = vmatpush1.bf16.msra.mxu0 0
      %1312 = vmatprep.mubr.bf16.mxu0 0
      %1313 = vmatmul.mubr.bf16.gmra.mrb[0].mxu0 %v1184
      %v1314 = vpop.f32.mrb[0].mxu0
      %v1315 = vadd.f32 0.0, %v1314
      %v1316 = vpop.f32.mrb[0].mxu0
      %v1317 = vpop.f32.mrb[0].mxu0
      %v1318 = vadd.f32 0.0, %v1317
      %v1319 = vpop.f32.mrb[0].mxu0
      %1320 = vmatprep.mubr.bf16.mxu0 0
      %1321 = vmatmul.mubr.bf16.gmra.mrb[0].mxu0 %v1185
      %v1322 = vpop.f32.mrb[0].mxu0
      %v1323 = vadd.f32 0.0, %v1322
      %v1324 = vpop.f32.mrb[0].mxu0
      %v1325 = vpop.f32.mrb[0].mxu0
      %v1326 = vadd.f32 0.0, %v1325
      %v1327 = vpop.f32.mrb[0].mxu0
      %1328 = vmatprep.mubr.bf16.mxu0 0
      %1329 = vmatmul.mubr.bf16.gmra.mrb[0].mxu0 %v1186
      %v1330 = vpop.f32.mrb[0].mxu0
      %v1331 = vadd.f32 0.0, %v1330
      %v1332 = vpop.f32.mrb[0].mxu0
      %v1333 = vpop.f32.mrb[0].mxu0
      %v1334 = vadd.f32 0.0, %v1333
      %v1335 = vpop.f32.mrb[0].mxu0
      %1336 = vmatprep.mubr.bf16.mxu0 0
      %1337 = vmatmul.mubr.bf16.gmra.mrb[0].mxu0 %v1187
      %v1338 = vpop.f32.mrb[0].mxu0
      %v1339 = vadd.f32 0.0, %v1338
      %v1340 = vpop.f32.mrb[0].mxu0
      %v1341 = vpop.f32.mrb[0].mxu0
      %v1342 = vadd.f32 0.0, %v1341
      %v1343 = vpop.f32.mrb[0].mxu0
      %1344 = vmatprep.mubr.bf16.mxu0 0
      %1345 = vmatmul.mubr.bf16.gmra.mrb[0].mxu0 %v1188
      %v1346 = vpop.f32.mrb[0].mxu0
      %v1347 = vadd.f32 0.0, %v1346
      %v1348 = vpop.f32.mrb[0].mxu0
      %v1349 = vpop.f32.mrb[0].mxu0
      %v1350 = vadd.f32 0.0, %v1349
      %v1351 = vpop.f32.mrb[0].mxu0
      %1352 = vmatprep.mubr.bf16.mxu0 0
      %1353 = vmatmul.mubr.bf16.gmra.mrb[0].mxu0 %v1189
      %v1354 = vpop.f32.mrb[0].mxu0
      %v1355 = vadd.f32 0.0, %v1354
      %v1356 = vpop.f32.mrb[0].mxu0
      %v1357 = vpop.f32.mrb[0].mxu0
      %v1358 = vadd.f32 0.0, %v1357
      %v1359 = vpop.f32.mrb[0].mxu0
      %1360 = vmatprep.mubr.bf16.mxu0 0
      %1361 = vmatmul.mubr.bf16.gmra.mrb[0].mxu0 %v1190
      %v1362 = vpop.f32.mrb[0].mxu0
      %v1363 = vadd.f32 0.0, %v1362
      %v1364 = vpop.f32.mrb[0].mxu0
      %v1365 = vpop.f32.mrb[0].mxu0
      %v1366 = vadd.f32 0.0, %v1365
      %v1367 = vpop.f32.mrb[0].mxu0
      %1368 = vmatprep.mubr.bf16.mxu0 0
      %1369 = vmatmul.mubr.bf16.gmra.mrb[0].mxu0 %v1191
      %v1370 = vpop.f32.mrb[0].mxu0
      %v1371 = vadd.f32 0.0, %v1370
      %v1372 = vpop.f32.mrb[0].mxu0
      %v1373 = vpop.f32.mrb[0].mxu0
      %v1374 = vadd.f32 0.0, %v1373
      %v1375 = vpop.f32.mrb[0].mxu0
      %1376 = vmatprep.mubr.bf16.mxu0 0
      %1377 = vmatmul.mubr.bf16.gmra.mrb[0].mxu0 %v1192
      %v1378 = vpop.f32.mrb[0].mxu0
      %v1379 = vadd.f32 0.0, %v1378
      %v1380 = vpop.f32.mrb[0].mxu0
      %v1381 = vpop.f32.mrb[0].mxu0
      %v1382 = vadd.f32 0.0, %v1381
      %v1383 = vpop.f32.mrb[0].mxu0
      %1384 = vmatprep.mubr.bf16.mxu0 0
      %1385 = vmatmul.mubr.bf16.gmra.mrb[0].mxu0 %v1193
      %v1386 = vpop.f32.mrb[0].mxu0
      %v1387 = vadd.f32 0.0, %v1386
      %v1388 = vpop.f32.mrb[0].mxu0
      %v1389 = vpop.f32.mrb[0].mxu0
      %v1390 = vadd.f32 0.0, %v1389
      %v1391 = vpop.f32.mrb[0].mxu0
      %1392 = vmatprep.mubr.bf16.mxu0 0
      %1393 = vmatmul.mubr.bf16.gmra.mrb[0].mxu0 %v1194
      %v1394 = vpop.f32.mrb[0].mxu0
      %v1395 = vadd.f32 0.0, %v1394
      %v1396 = vpop.f32.mrb[0].mxu0
      %v1397 = vpop.f32.mrb[0].mxu0
      %v1398 = vadd.f32 0.0, %v1397
      %v1399 = vpop.f32.mrb[0].mxu0
      %1400 = vmatprep.mubr.bf16.mxu0 0
      %1401 = vmatmul.mubr.bf16.gmra.mrb[0].mxu0 %v1195
      %v1402 = vpop.f32.mrb[0].mxu0
      %v1403 = vadd.f32 0.0, %v1402
      %v1404 = vpop.f32.mrb[0].mxu0
      %v1405 = vpop.f32.mrb[0].mxu0
      %v1406 = vadd.f32 0.0, %v1405
      %v1407 = vpop.f32.mrb[0].mxu0
      %1408 = vmatprep.mubr.bf16.mxu0 0
      %1409 = vmatmul.mubr.bf16.gmra.mrb[0].mxu0 %v1196
      %v1410 = vpop.f32.mrb[0].mxu0
      %v1411 = vadd.f32 0.0, %v1410
      %v1412 = vpop.f32.mrb[0].mxu0
      %v1413 = vpop.f32.mrb[0].mxu0
      %v1414 = vadd.f32 0.0, %v1413
      %v1415 = vpop.f32.mrb[0].mxu0
      %1416 = vmatprep.mubr.bf16.mxu0 0
      %1417 = vmatmul.mubr.bf16.gmra.mrb[0].mxu0 %v1197
      %v1418 = vpop.f32.mrb[0].mxu0
      %v1419 = vadd.f32 0.0, %v1418
      %v1420 = vpop.f32.mrb[0].mxu0
      %v1421 = vpop.f32.mrb[0].mxu0
      %v1422 = vadd.f32 0.0, %v1421
      %v1423 = vpop.f32.mrb[0].mxu0
      %1424 = vmatprep.mubr.bf16.mxu0 0
      %1425 = vmatmul.mubr.bf16.gmra.mrb[0].mxu0 %v1198
      %v1426 = vpop.f32.mrb[0].mxu0
      %v1427 = vadd.f32 0.0, %v1426
      %v1428 = vpop.f32.mrb[0].mxu0
      %v1429 = vpop.f32.mrb[0].mxu0
      %v1430 = vadd.f32 0.0, %v1429
      %v1431 = vpop.f32.mrb[0].mxu0
      %1432 = vmatprep.mubr.bf16.mxu0 0
      %1433 = vmatmul.mubr.bf16.gmra.mrb[0].mxu0 %v1199
      %v1434 = vpop.f32.mrb[0].mxu0
      %v1435 = vadd.f32 0.0, %v1434
      %v1436 = vpop.f32.mrb[0].mxu0
      %v1437 = vpop.f32.mrb[0].mxu0
      %v1438 = vadd.f32 0.0, %v1437
      %v1439 = vpop.f32.mrb[0].mxu0
      %1440 = vmatprep.mubr.bf16.mxu0 0
      %1441 = vmatmul.mubr.bf16.gmra.mrb[0].mxu0 %v1200
      %v1442 = vpop.f32.mrb[0].mxu0
      %v1443 = vadd.f32 0.0, %v1442
      %v1444 = vpop.f32.mrb[0].mxu0
      %v1445 = vpop.f32.mrb[0].mxu0
      %v1446 = vadd.f32 0.0, %v1445
      %v1447 = vpop.f32.mrb[0].mxu0
      %1448 = vmatprep.mubr.bf16.mxu0 0
      %1449 = vmatmul.mubr.bf16.gmra.mrb[0].mxu0 %v1201
      %v1450 = vpop.f32.mrb[0].mxu0
      %v1451 = vadd.f32 0.0, %v1450
      %v1452 = vpop.f32.mrb[0].mxu0
      %v1453 = vpop.f32.mrb[0].mxu0
      %v1454 = vadd.f32 0.0, %v1453
      %v1455 = vpop.f32.mrb[0].mxu0
      %1456 = vmatprep.mubr.bf16.mxu0 0
      %1457 = vmatmul.mubr.bf16.gmra.mrb[0].mxu0 %v1202
      %v1458 = vpop.f32.mrb[0].mxu0
      %v1459 = vadd.f32 0.0, %v1458
      %v1460 = vpop.f32.mrb[0].mxu0
      %v1461 = vpop.f32.mrb[0].mxu0
      %v1462 = vadd.f32 0.0, %v1461
      %v1463 = vpop.f32.mrb[0].mxu0
      %1464 = vmatprep.mubr.bf16.mxu0 0
      %1465 = vmatmul.mubr.bf16.gmra.mrb[0].mxu0 %v1203
      %v1466 = vpop.f32.mrb[0].mxu0
      %v1467 = vadd.f32 0.0, %v1466
      %v1468 = vpop.f32.mrb[0].mxu0
      %v1469 = vpop.f32.mrb[0].mxu0
      %v1470 = vadd.f32 0.0, %v1469
      %v1471 = vpop.f32.mrb[0].mxu0
      %1472 = vmatprep.mubr.bf16.mxu0 0
      %1473 = vmatmul.mubr.bf16.gmra.mrb[0].mxu0 %v1204
      %v1474 = vpop.f32.mrb[0].mxu0
      %v1475 = vadd.f32 0.0, %v1474
      %v1476 = vpop.f32.mrb[0].mxu0
      %v1477 = vpop.f32.mrb[0].mxu0
      %v1478 = vadd.f32 0.0, %v1477
      %v1479 = vpop.f32.mrb[0].mxu0
      %1480 = vmatprep.mubr.bf16.mxu0 0
      %1481 = vmatmul.mubr.bf16.gmra.mrb[0].mxu0 %v1205
      %v1482 = vpop.f32.mrb[0].mxu0
      %v1483 = vadd.f32 0.0, %v1482
      %v1484 = vpop.f32.mrb[0].mxu0
      %v1485 = vpop.f32.mrb[0].mxu0
      %v1486 = vadd.f32 0.0, %v1485
      %v1487 = vpop.f32.mrb[0].mxu0
      %1488 = vmatprep.mubr.bf16.mxu0 0
      %1489 = vmatmul.mubr.bf16.gmra.mrb[0].mxu0 %v1206
      %v1490 = vpop.f32.mrb[0].mxu0
      %v1491 = vadd.f32 0.0, %v1490
      %v1492 = vpop.f32.mrb[0].mxu0
      %v1493 = vpop.f32.mrb[0].mxu0
      %v1494 = vadd.f32 0.0, %v1493
      %v1495 = vpop.f32.mrb[0].mxu0
      %1496 = vmatprep.mubr.bf16.mxu0 0
      %1497 = vmatmul.mubr.bf16.gmra.mrb[0].mxu0 %v1207
      %v1498 = vpop.f32.mrb[0].mxu0
      %v1499 = vadd.f32 0.0, %v1498
      %v1500 = vpop.f32.mrb[0].mxu0
      %v1501 = vpop.f32.mrb[0].mxu0
      %v1502 = vadd.f32 0.0, %v1501
      %v1503 = vpop.f32.mrb[0].mxu0
      %1504 = vdwg.mxu0
      %v1505 = vadd.f32 %v1113, %v1315
      %v1506 = vadd.f32 %v1114, %v1318
      %v1507 = vadd.f32 %v1115, %v1323
      %v1508 = vadd.f32 %v1116, %v1326
      %v1509 = vadd.f32 %v1117, %v1331
      %v1510 = vadd.f32 %v1118, %v1334
      %v1511 = vadd.f32 %v1119, %v1339
      %v1512 = vadd.f32 %v1120, %v1342
      %v1513 = vadd.f32 %v1121, %v1347
      %v1514 = vadd.f32 %v1122, %v1350
      %v1515 = vadd.f32 %v1123, %v1355
      %v1516 = vadd.f32 %v1124, %v1358
      %v1517 = vadd.f32 %v1125, %v1363
      %v1518 = vadd.f32 %v1126, %v1366
      %v1519 = vadd.f32 %v1127, %v1371
      %v1520 = vadd.f32 %v1128, %v1374
      %v1521 = vadd.f32 %v1129, %v1379
      %v1522 = vadd.f32 %v1130, %v1382
      %v1523 = vadd.f32 %v1131, %v1387
      %v1524 = vadd.f32 %v1132, %v1390
      %v1525 = vadd.f32 %v1133, %v1395
      %v1526 = vadd.f32 %v1134, %v1398
      %v1527 = vadd.f32 %v1135, %v1403
      %v1528 = vadd.f32 %v1136, %v1406
      %v1529 = vadd.f32 %v1137, %v1411
      %v1530 = vadd.f32 %v1138, %v1414
      %v1531 = vadd.f32 %v1139, %v1419
      %v1532 = vadd.f32 %v1140, %v1422
      %v1533 = vadd.f32 %v1141, %v1427
      %v1534 = vadd.f32 %v1142, %v1430
      %v1535 = vadd.f32 %v1143, %v1435
      %v1536 = vadd.f32 %v1144, %v1438
      %v1537 = vadd.f32 %v1145, %v1443
      %v1538 = vadd.f32 %v1146, %v1446
      %v1539 = vadd.f32 %v1147, %v1451
      %v1540 = vadd.f32 %v1148, %v1454
      %v1541 = vadd.f32 %v1149, %v1459
      %v1542 = vadd.f32 %v1150, %v1462
      %v1543 = vadd.f32 %v1151, %v1467
      %v1544 = vadd.f32 %v1152, %v1470
      %v1545 = vadd.f32 %v1153, %v1475
      %v1546 = vadd.f32 %v1154, %v1478
      %v1547 = vadd.f32 %v1155, %v1483
      %v1548 = vadd.f32 %v1156, %v1486
      %v1549 = vadd.f32 %v1157, %v1491
      %v1550 = vadd.f32 %v1158, %v1494
      %v1551 = vadd.f32 %v1159, %v1499
      %v1552 = vadd.f32 %v1160, %v1502
      %1553 = vst.msk [vmem:[#allocation2] sm:$0xff] %vm433, %v1505
      %1554 = vst.msk [vmem:[#allocation2 + $0x8] sm:$0xff] %vm433, %v1506
      %1555 = vst.msk [vmem:[#allocation2 + $0x10] sm:$0xff] %vm433, %v1507
      %1556 = vst.msk [vmem:[#allocation2 + $0x18] sm:$0xff] %vm433, %v1508
      %1557 = vst.msk [vmem:[#allocation2 + $0x20] sm:$0xff] %vm433, %v1509
      %1558 = vst.msk [vmem:[#allocation2 + $0x28] sm:$0xff] %vm433, %v1510
      %1559 = vst.msk [vmem:[#allocation2 + $0x30] sm:$0xff] %vm433, %v1511
      %1560 = vst.msk [vmem:[#allocation2 + $0x38] sm:$0xff] %vm433, %v1512
      %1561 = vst.msk [vmem:[#allocation2 + $0x40] sm:$0xff] %vm433, %v1513
      %1562 = vst.msk [vmem:[#allocation2 + $0x48] sm:$0xff] %vm433, %v1514
      %1563 = vst.msk [vmem:[#allocation2 + $0x50] sm:$0xff] %vm433, %v1515
      %1564 = vst.msk [vmem:[#allocation2 + $0x58] sm:$0xff] %vm433, %v1516
      %1565 = vst.msk [vmem:[#allocation2 + $0x60] sm:$0xff] %vm433, %v1517
      %1566 = vst.msk [vmem:[#allocation2 + $0x68] sm:$0xff] %vm433, %v1518
      %1567 = vst.msk [vmem:[#allocation2 + $0x70] sm:$0xff] %vm433, %v1519
      %1568 = vst.msk [vmem:[#allocation2 + $0x78] sm:$0xff] %vm433, %v1520
      %1569 = vst.msk [vmem:[#allocation2 + $0x80] sm:$0xff] %vm433, %v1521
      %1570 = vst.msk [vmem:[#allocation2 + $0x88] sm:$0xff] %vm433, %v1522
      %1571 = vst.msk [vmem:[#allocation2 + $0x90] sm:$0xff] %vm433, %v1523
      %1572 = vst.msk [vmem:[#allocation2 + $0x98] sm:$0xff] %vm433, %v1524
      %1573 = vst.msk [vmem:[#allocation2 + $0xa0] sm:$0xff] %vm433, %v1525
      %1574 = vst.msk [vmem:[#allocation2 + $0xa8] sm:$0xff] %vm433, %v1526
      %1575 = vst.msk [vmem:[#allocation2 + $0xb0] sm:$0xff] %vm433, %v1527
      %1576 = vst.msk [vmem:[#allocation2 + $0xb8] sm:$0xff] %vm433, %v1528
      %1577 = vst.msk [vmem:[#allocation2 + $0xc0] sm:$0xff] %vm433, %v1529
      %1578 = vst.msk [vmem:[#allocation2 + $0xc8] sm:$0xff] %vm433, %v1530
      %1579 = vst.msk [vmem:[#allocation2 + $0xd0] sm:$0xff] %vm433, %v1531
      %1580 = vst.msk [vmem:[#allocation2 + $0xd8] sm:$0xff] %vm433, %v1532
      %1581 = vst.msk [vmem:[#allocation2 + $0xe0] sm:$0xff] %vm433, %v1533
      %1582 = vst.msk [vmem:[#allocation2 + $0xe8] sm:$0xff] %vm433, %v1534
      %1583 = vst.msk [vmem:[#allocation2 + $0xf0] sm:$0xff] %vm433, %v1535
      %1584 = vst.msk [vmem:[#allocation2 + $0xf8] sm:$0xff] %vm433, %v1536
      %1585 = vst.msk [vmem:[#allocation2 + $0x100] sm:$0xff] %vm433, %v1537
      %1586 = vst.msk [vmem:[#allocation2 + $0x108] sm:$0xff] %vm433, %v1538
      %1587 = vst.msk [vmem:[#allocation2 + $0x110] sm:$0xff] %vm433, %v1539
      %1588 = vst.msk [vmem:[#allocation2 + $0x118] sm:$0xff] %vm433, %v1540
      %1589 = vst.msk [vmem:[#allocation2 + $0x120] sm:$0xff] %vm433, %v1541
      %1590 = vst.msk [vmem:[#allocation2 + $0x128] sm:$0xff] %vm433, %v1542
      %1591 = vst.msk [vmem:[#allocation2 + $0x130] sm:$0xff] %vm433, %v1543
      %1592 = vst.msk [vmem:[#allocation2 + $0x138] sm:$0xff] %vm433, %v1544
      %1593 = vst.msk [vmem:[#allocation2 + $0x140] sm:$0xff] %vm433, %v1545
      %1594 = vst.msk [vmem:[#allocation2 + $0x148] sm:$0xff] %vm433, %v1546
      %1595 = vst.msk [vmem:[#allocation2 + $0x150] sm:$0xff] %vm433, %v1547
      %1596 = vst.msk [vmem:[#allocation2 + $0x158] sm:$0xff] %vm433, %v1548
      %1597 = vst.msk [vmem:[#allocation2 + $0x160] sm:$0xff] %vm433, %v1549
      %1598 = vst.msk [vmem:[#allocation2 + $0x168] sm:$0xff] %vm433, %v1550
      %1599 = vst.msk [vmem:[#allocation2 + $0x170] sm:$0xff] %vm433, %v1551
      %1600 = vst.msk [vmem:[#allocation2 + $0x178] sm:$0xff] %vm433, %v1552
      %v1601 = vld [vmem:[#allocation2] sm:$0xff]
      %v1602 = vld [vmem:[#allocation2 + $0x8] sm:$0xff]
      %v1603 = vld [vmem:[#allocation2 + $0x10] sm:$0xff]
      %v1604 = vld [vmem:[#allocation2 + $0x18] sm:$0xff]
      %v1605 = vld [vmem:[#allocation2 + $0x20] sm:$0xff]
      %v1606 = vld [vmem:[#allocation2 + $0x28] sm:$0xff]
      %v1607 = vld [vmem:[#allocation2 + $0x30] sm:$0xff]
      %v1608 = vld [vmem:[#allocation2 + $0x38] sm:$0xff]
      %v1609 = vld [vmem:[#allocation2 + $0x40] sm:$0xff]
      %v1610 = vld [vmem:[#allocation2 + $0x48] sm:$0xff]
      %v1611 = vld [vmem:[#allocation2 + $0x50] sm:$0xff]
      %v1612 = vld [vmem:[#allocation2 + $0x58] sm:$0xff]
      %v1613 = vld [vmem:[#allocation2 + $0x60] sm:$0xff]
      %v1614 = vld [vmem:[#allocation2 + $0x68] sm:$0xff]
      %v1615 = vld [vmem:[#allocation2 + $0x70] sm:$0xff]
      %v1616 = vld [vmem:[#allocation2 + $0x78] sm:$0xff]
      %v1617 = vld [vmem:[#allocation2 + $0x80] sm:$0xff]
      %v1618 = vld [vmem:[#allocation2 + $0x88] sm:$0xff]
      %v1619 = vld [vmem:[#allocation2 + $0x90] sm:$0xff]
      %v1620 = vld [vmem:[#allocation2 + $0x98] sm:$0xff]
      %v1621 = vld [vmem:[#allocation2 + $0xa0] sm:$0xff]
      %v1622 = vld [vmem:[#allocation2 + $0xa8] sm:$0xff]
      %v1623 = vld [vmem:[#allocation2 + $0xb0] sm:$0xff]
      %v1624 = vld [vmem:[#allocation2 + $0xb8] sm:$0xff]
      %v1625 = vld [vmem:[#allocation2 + $0xc0] sm:$0xff]
      %v1626 = vld [vmem:[#allocation2 + $0xc8] sm:$0xff]
      %v1627 = vld [vmem:[#allocation2 + $0xd0] sm:$0xff]
      %v1628 = vld [vmem:[#allocation2 + $0xd8] sm:$0xff]
      %v1629 = vld [vmem:[#allocation2 + $0xe0] sm:$0xff]
      %v1630 = vld [vmem:[#allocation2 + $0xe8] sm:$0xff]
      %v1631 = vld [vmem:[#allocation2 + $0xf0] sm:$0xff]
      %v1632 = vld [vmem:[#allocation2 + $0xf8] sm:$0xff]
      %v1633 = vld [vmem:[#allocation2 + $0x100] sm:$0xff]
      %v1634 = vld [vmem:[#allocation2 + $0x108] sm:$0xff]
      %v1635 = vld [vmem:[#allocation2 + $0x110] sm:$0xff]
      %v1636 = vld [vmem:[#allocation2 + $0x118] sm:$0xff]
      %v1637 = vld [vmem:[#allocation2 + $0x120] sm:$0xff]
      %v1638 = vld [vmem:[#allocation2 + $0x128] sm:$0xff]
      %v1639 = vld [vmem:[#allocation2 + $0x130] sm:$0xff]
      %v1640 = vld [vmem:[#allocation2 + $0x138] sm:$0xff]
      %v1641 = vld [vmem:[#allocation2 + $0x140] sm:$0xff]
      %v1642 = vld [vmem:[#allocation2 + $0x148] sm:$0xff]
      %v1643 = vld [vmem:[#allocation2 + $0x150] sm:$0xff]
      %v1644 = vld [vmem:[#allocation2 + $0x158] sm:$0xff]
      %v1645 = vld [vmem:[#allocation2 + $0x160] sm:$0xff]
      %v1646 = vld [vmem:[#allocation2 + $0x168] sm:$0xff]
      %v1647 = vld [vmem:[#allocation2 + $0x170] sm:$0xff]
      %v1648 = vld [vmem:[#allocation2 + $0x178] sm:$0xff]
      %s1649 = scalar_lea.vmem %s425, 128
      %v1650 = vld [vmem:[%s1649] sm:$0xf]
      %v1651 = vld [vmem:[%s1649 + $0x4] sm:$0xf]
      %v1652 = vld [vmem:[%s1649 + $0x8] sm:$0xf]
      %v1653 = vld [vmem:[%s1649 + $0xc] sm:$0xf]
      %v1654 = vld [vmem:[%s1649 + $0x10] sm:$0xf]
      %v1655 = vld [vmem:[%s1649 + $0x14] sm:$0xf]
      %v1656 = vld [vmem:[%s1649 + $0x18] sm:$0xf]
      %v1657 = vld [vmem:[%s1649 + $0x1c] sm:$0xf]
      %v1658 = vld [vmem:[%s1649 + $0x20] sm:$0xf]
      %v1659 = vld [vmem:[%s1649 + $0x24] sm:$0xf]
      %v1660 = vld [vmem:[%s1649 + $0x28] sm:$0xf]
      %v1661 = vld [vmem:[%s1649 + $0x2c] sm:$0xf]
      %v1662 = vld [vmem:[%s1649 + $0x30] sm:$0xf]
      %v1663 = vld [vmem:[%s1649 + $0x34] sm:$0xf]
      %v1664 = vld [vmem:[%s1649 + $0x38] sm:$0xf]
      %v1665 = vld [vmem:[%s1649 + $0x3c] sm:$0xf]
      %v1669 = vunpack.c.l.b16 %v533
      %v1670 = vunpack.c.l.b16 %v534
      %v1671 = vunpack.c.l.b16 %v535
      %v1672 = vpack.c.b16 %v1182, %v1181
      %v1673 = vpack.c.b16 %v1669, %v1183
      %v1674 = vpack.c.b16 %v1671, %v1670
      %v1694 = vunpack.c.l.b16 %v1650
      %v1695 = vunpack.c.l.b16 %v1651
      %v1696 = vunpack.c.l.b16 %v1652
      %v1697 = vunpack.c.l.b16 %v1653
      %v1698 = vunpack.c.l.b16 %v1654
      %v1699 = vunpack.c.l.b16 %v1655
      %v1700 = vunpack.c.l.b16 %v1656
      %v1701 = vunpack.c.l.b16 %v1657
      %v1702 = vunpack.c.l.b16 %v1658
      %v1703 = vunpack.c.l.b16 %v1659
      %v1704 = vunpack.c.l.b16 %v1660
      %v1705 = vunpack.c.l.b16 %v1661
      %v1706 = vunpack.c.l.b16 %v1662
      %v1707 = vunpack.c.l.b16 %v1663
      %v1708 = vunpack.c.l.b16 %v1664
      %v1709 = vunpack.c.l.b16 %v1665
      %v1710 = vpack.c.b16 %v1695, %v1694
      %v1711 = vpack.c.b16 %v1697, %v1696
      %v1712 = vpack.c.b16 %v1699, %v1698
      %v1713 = vpack.c.b16 %v1701, %v1700
      %v1714 = vpack.c.b16 %v1703, %v1702
      %v1715 = vpack.c.b16 %v1705, %v1704
      %v1716 = vpack.c.b16 %v1707, %v1706
      %v1717 = vpack.c.b16 %v1709, %v1708
      %1726 = vmatprep.subr.bf16.mxu0 0
      %1727 = vmatpush1.bf16.msra.mxu0 %v1710
      %1728 = vmatprep.subr.bf16.mxu0 0
      %1729 = vmatpush1.bf16.msra.mxu0 %v1711
      %1730 = vmatprep.subr.bf16.mxu0 0
      %1731 = vmatpush1.bf16.msra.mxu0 %v1712
      %1732 = vmatprep.subr.bf16.mxu0 0
      %1733 = vmatpush1.bf16.msra.mxu0 %v1713
      %1734 = vmatprep.subr.bf16.mxu0 0
      %1735 = vmatpush1.bf16.msra.mxu0 %v1714
      %1736 = vmatprep.subr.bf16.mxu0 0
      %1737 = vmatpush1.bf16.msra.mxu0 %v1715
      %1738 = vmatprep.subr.bf16.mxu0 0
      %1739 = vmatpush1.bf16.msra.mxu0 %v1716
      %1740 = vmatprep.subr.bf16.mxu0 0
      %1741 = vmatpush1.bf16.msra.mxu0 %v1717
      %1742 = vmatprep.subr.bf16.mxu0 0
      %1743 = vmatpush1.bf16.msra.mxu0 0
      %1744 = vmatprep.subr.bf16.mxu0 0
      %1745 = vmatpush1.bf16.msra.mxu0 0
      %1746 = vmatprep.subr.bf16.mxu0 0
      %1747 = vmatpush1.bf16.msra.mxu0 0
      %1748 = vmatprep.subr.bf16.mxu0 0
      %1749 = vmatpush1.bf16.msra.mxu0 0
      %1750 = vmatprep.subr.bf16.mxu0 0
      %1751 = vmatpush1.bf16.msra.mxu0 0
      %1752 = vmatprep.subr.bf16.mxu0 0
      %1753 = vmatpush1.bf16.msra.mxu0 0
      %1754 = vmatprep.subr.bf16.mxu0 0
      %1755 = vmatpush1.bf16.msra.mxu0 0
      %1756 = vmatprep.subr.bf16.mxu0 0
      %1757 = vmatpush1.bf16.msra.mxu0 0
      %1758 = vmatprep.mubr.bf16.mxu0 0
      %1759 = vmatmul.mubr.bf16.gmra.mrb[0].mxu0 %v699
      %v1760 = vpop.f32.mrb[0].mxu0
      %v1761 = vadd.f32 0.0, %v1760
      %v1762 = vpop.f32.mrb[0].mxu0
      %v1763 = vpop.f32.mrb[0].mxu0
      %v1764 = vadd.f32 0.0, %v1763
      %v1765 = vpop.f32.mrb[0].mxu0
      %1766 = vmatprep.mubr.bf16.mxu0 0
      %1767 = vmatmul.mubr.bf16.gmra.mrb[0].mxu0 %v700
      %v1768 = vpop.f32.mrb[0].mxu0
      %v1769 = vadd.f32 0.0, %v1768
      %v1770 = vpop.f32.mrb[0].mxu0
      %v1771 = vpop.f32.mrb[0].mxu0
      %v1772 = vadd.f32 0.0, %v1771
      %v1773 = vpop.f32.mrb[0].mxu0
      %1774 = vmatprep.mubr.bf16.mxu0 0
      %1775 = vmatmul.mubr.bf16.gmra.mrb[0].mxu0 %v701
      %v1776 = vpop.f32.mrb[0].mxu0
      %v1777 = vadd.f32 0.0, %v1776
      %v1778 = vpop.f32.mrb[0].mxu0
      %v1779 = vpop.f32.mrb[0].mxu0
      %v1780 = vadd.f32 0.0, %v1779
      %v1781 = vpop.f32.mrb[0].mxu0
      %1782 = vmatprep.mubr.bf16.mxu0 0
      %1783 = vmatmul.mubr.bf16.gmra.mrb[0].mxu0 %v702
      %v1784 = vpop.f32.mrb[0].mxu0
      %v1785 = vadd.f32 0.0, %v1784
      %v1786 = vpop.f32.mrb[0].mxu0
      %v1787 = vpop.f32.mrb[0].mxu0
      %v1788 = vadd.f32 0.0, %v1787
      %v1789 = vpop.f32.mrb[0].mxu0
      %1790 = vmatprep.mubr.bf16.mxu0 0
      %1791 = vmatmul.mubr.bf16.gmra.mrb[0].mxu0 %v703
      %v1792 = vpop.f32.mrb[0].mxu0
      %v1793 = vadd.f32 0.0, %v1792
      %v1794 = vpop.f32.mrb[0].mxu0
      %v1795 = vpop.f32.mrb[0].mxu0
      %v1796 = vadd.f32 0.0, %v1795
      %v1797 = vpop.f32.mrb[0].mxu0
      %1798 = vmatprep.mubr.bf16.mxu0 0
      %1799 = vmatmul.mubr.bf16.gmra.mrb[0].mxu0 %v704
      %v1800 = vpop.f32.mrb[0].mxu0
      %v1801 = vadd.f32 0.0, %v1800
      %v1802 = vpop.f32.mrb[0].mxu0
      %v1803 = vpop.f32.mrb[0].mxu0
      %v1804 = vadd.f32 0.0, %v1803
      %v1805 = vpop.f32.mrb[0].mxu0
      %1806 = vmatprep.mubr.bf16.mxu0 0
      %1807 = vmatmul.mubr.bf16.gmra.mrb[0].mxu0 %v705
      %v1808 = vpop.f32.mrb[0].mxu0
      %v1809 = vadd.f32 0.0, %v1808
      %v1810 = vpop.f32.mrb[0].mxu0
      %v1811 = vpop.f32.mrb[0].mxu0
      %v1812 = vadd.f32 0.0, %v1811
      %v1813 = vpop.f32.mrb[0].mxu0
      %1814 = vmatprep.mubr.bf16.mxu0 0
      %1815 = vmatmul.mubr.bf16.gmra.mrb[0].mxu0 %v706
      %v1816 = vpop.f32.mrb[0].mxu0
      %v1817 = vadd.f32 0.0, %v1816
      %v1818 = vpop.f32.mrb[0].mxu0
      %v1819 = vpop.f32.mrb[0].mxu0
      %v1820 = vadd.f32 0.0, %v1819
      %v1821 = vpop.f32.mrb[0].mxu0
      %1822 = vmatprep.mubr.bf16.mxu0 0
      %1823 = vmatmul.mubr.bf16.gmra.mrb[0].mxu0 %v707
      %v1824 = vpop.f32.mrb[0].mxu0
      %v1825 = vadd.f32 0.0, %v1824
      %v1826 = vpop.f32.mrb[0].mxu0
      %v1827 = vpop.f32.mrb[0].mxu0
      %v1828 = vadd.f32 0.0, %v1827
      %v1829 = vpop.f32.mrb[0].mxu0
      %1830 = vmatprep.mubr.bf16.mxu0 0
      %1831 = vmatmul.mubr.bf16.gmra.mrb[0].mxu0 %v708
      %v1832 = vpop.f32.mrb[0].mxu0
      %v1833 = vadd.f32 0.0, %v1832
      %v1834 = vpop.f32.mrb[0].mxu0
      %v1835 = vpop.f32.mrb[0].mxu0
      %v1836 = vadd.f32 0.0, %v1835
      %v1837 = vpop.f32.mrb[0].mxu0
      %1838 = vmatprep.mubr.bf16.mxu0 0
      %1839 = vmatmul.mubr.bf16.gmra.mrb[0].mxu0 %v709
      %v1840 = vpop.f32.mrb[0].mxu0
      %v1841 = vadd.f32 0.0, %v1840
      %v1842 = vpop.f32.mrb[0].mxu0
      %v1843 = vpop.f32.mrb[0].mxu0
      %v1844 = vadd.f32 0.0, %v1843
      %v1845 = vpop.f32.mrb[0].mxu0
      %1846 = vmatprep.mubr.bf16.mxu0 0
      %1847 = vmatmul.mubr.bf16.gmra.mrb[0].mxu0 %v710
      %v1848 = vpop.f32.mrb[0].mxu0
      %v1849 = vadd.f32 0.0, %v1848
      %v1850 = vpop.f32.mrb[0].mxu0
      %v1851 = vpop.f32.mrb[0].mxu0
      %v1852 = vadd.f32 0.0, %v1851
      %v1853 = vpop.f32.mrb[0].mxu0
      %1854 = vmatprep.mubr.bf16.mxu0 0
      %1855 = vmatmul.mubr.bf16.gmra.mrb[0].mxu0 %v711
      %v1856 = vpop.f32.mrb[0].mxu0
      %v1857 = vadd.f32 0.0, %v1856
      %v1858 = vpop.f32.mrb[0].mxu0
      %v1859 = vpop.f32.mrb[0].mxu0
      %v1860 = vadd.f32 0.0, %v1859
      %v1861 = vpop.f32.mrb[0].mxu0
      %1862 = vmatprep.mubr.bf16.mxu0 0
      %1863 = vmatmul.mubr.bf16.gmra.mrb[0].mxu0 %v712
      %v1864 = vpop.f32.mrb[0].mxu0
      %v1865 = vadd.f32 0.0, %v1864
      %v1866 = vpop.f32.mrb[0].mxu0
      %v1867 = vpop.f32.mrb[0].mxu0
      %v1868 = vadd.f32 0.0, %v1867
      %v1869 = vpop.f32.mrb[0].mxu0
      %1870 = vmatprep.mubr.bf16.mxu0 0
      %1871 = vmatmul.mubr.bf16.gmra.mrb[0].mxu0 %v713
      %v1872 = vpop.f32.mrb[0].mxu0
      %v1873 = vadd.f32 0.0, %v1872
      %v1874 = vpop.f32.mrb[0].mxu0
      %v1875 = vpop.f32.mrb[0].mxu0
      %v1876 = vadd.f32 0.0, %v1875
      %v1877 = vpop.f32.mrb[0].mxu0
      %1878 = vmatprep.mubr.bf16.mxu0 0
      %1879 = vmatmul.mubr.bf16.gmra.mrb[0].mxu0 %v714
      %v1880 = vpop.f32.mrb[0].mxu0
      %v1881 = vadd.f32 0.0, %v1880
      %v1882 = vpop.f32.mrb[0].mxu0
      %v1883 = vpop.f32.mrb[0].mxu0
      %v1884 = vadd.f32 0.0, %v1883
      %v1885 = vpop.f32.mrb[0].mxu0
      %1886 = vmatprep.mubr.bf16.mxu0 0
      %1887 = vmatmul.mubr.bf16.gmra.mrb[0].mxu0 %v715
      %v1888 = vpop.f32.mrb[0].mxu0
      %v1889 = vadd.f32 0.0, %v1888
      %v1890 = vpop.f32.mrb[0].mxu0
      %v1891 = vpop.f32.mrb[0].mxu0
      %v1892 = vadd.f32 0.0, %v1891
      %v1893 = vpop.f32.mrb[0].mxu0
      %1894 = vmatprep.mubr.bf16.mxu0 0
      %1895 = vmatmul.mubr.bf16.gmra.mrb[0].mxu0 %v716
      %v1896 = vpop.f32.mrb[0].mxu0
      %v1897 = vadd.f32 0.0, %v1896
      %v1898 = vpop.f32.mrb[0].mxu0
      %v1899 = vpop.f32.mrb[0].mxu0
      %v1900 = vadd.f32 0.0, %v1899
      %v1901 = vpop.f32.mrb[0].mxu0
      %1902 = vmatprep.mubr.bf16.mxu0 0
      %1903 = vmatmul.mubr.bf16.gmra.mrb[0].mxu0 %v717
      %v1904 = vpop.f32.mrb[0].mxu0
      %v1905 = vadd.f32 0.0, %v1904
      %v1906 = vpop.f32.mrb[0].mxu0
      %v1907 = vpop.f32.mrb[0].mxu0
      %v1908 = vadd.f32 0.0, %v1907
      %v1909 = vpop.f32.mrb[0].mxu0
      %1910 = vmatprep.mubr.bf16.mxu0 0
      %1911 = vmatmul.mubr.bf16.gmra.mrb[0].mxu0 %v718
      %v1912 = vpop.f32.mrb[0].mxu0
      %v1913 = vadd.f32 0.0, %v1912
      %v1914 = vpop.f32.mrb[0].mxu0
      %v1915 = vpop.f32.mrb[0].mxu0
      %v1916 = vadd.f32 0.0, %v1915
      %v1917 = vpop.f32.mrb[0].mxu0
      %1918 = vmatprep.mubr.bf16.mxu0 0
      %1919 = vmatmul.mubr.bf16.gmra.mrb[0].mxu0 %v719
      %v1920 = vpop.f32.mrb[0].mxu0
      %v1921 = vadd.f32 0.0, %v1920
      %v1922 = vpop.f32.mrb[0].mxu0
      %v1923 = vpop.f32.mrb[0].mxu0
      %v1924 = vadd.f32 0.0, %v1923
      %v1925 = vpop.f32.mrb[0].mxu0
      %1926 = vmatprep.mubr.bf16.mxu0 0
      %1927 = vmatmul.mubr.bf16.gmra.mrb[0].mxu0 %v1672
      %v1928 = vpop.f32.mrb[0].mxu0
      %v1929 = vadd.f32 0.0, %v1928
      %v1930 = vpop.f32.mrb[0].mxu0
      %v1931 = vpop.f32.mrb[0].mxu0
      %v1932 = vadd.f32 0.0, %v1931
      %v1933 = vpop.f32.mrb[0].mxu0
      %1934 = vmatprep.mubr.bf16.mxu0 0
      %1935 = vmatmul.mubr.bf16.gmra.mrb[0].mxu0 %v1673
      %v1936 = vpop.f32.mrb[0].mxu0
      %v1937 = vadd.f32 0.0, %v1936
      %v1938 = vpop.f32.mrb[0].mxu0
      %v1939 = vpop.f32.mrb[0].mxu0
      %v1940 = vadd.f32 0.0, %v1939
      %v1941 = vpop.f32.mrb[0].mxu0
      %1942 = vmatprep.mubr.bf16.mxu0 0
      %1943 = vmatmul.mubr.bf16.gmra.mrb[0].mxu0 %v1674
      %v1944 = vpop.f32.mrb[0].mxu0
      %v1945 = vadd.f32 0.0, %v1944
      %v1946 = vpop.f32.mrb[0].mxu0
      %v1947 = vpop.f32.mrb[0].mxu0
      %v1948 = vadd.f32 0.0, %v1947
      %v1949 = vpop.f32.mrb[0].mxu0
      %1950 = vdwg.mxu0
      %v1951 = vadd.f32 %v1601, %v1761
      %v1952 = vadd.f32 %v1602, %v1764
      %v1953 = vadd.f32 %v1603, %v1769
      %v1954 = vadd.f32 %v1604, %v1772
      %v1955 = vadd.f32 %v1605, %v1777
      %v1956 = vadd.f32 %v1606, %v1780
      %v1957 = vadd.f32 %v1607, %v1785
      %v1958 = vadd.f32 %v1608, %v1788
      %v1959 = vadd.f32 %v1609, %v1793
      %v1960 = vadd.f32 %v1610, %v1796
      %v1961 = vadd.f32 %v1611, %v1801
      %v1962 = vadd.f32 %v1612, %v1804
      %v1963 = vadd.f32 %v1613, %v1809
      %v1964 = vadd.f32 %v1614, %v1812
      %v1965 = vadd.f32 %v1615, %v1817
      %v1966 = vadd.f32 %v1616, %v1820
      %v1967 = vadd.f32 %v1617, %v1825
      %v1968 = vadd.f32 %v1618, %v1828
      %v1969 = vadd.f32 %v1619, %v1833
      %v1970 = vadd.f32 %v1620, %v1836
      %v1971 = vadd.f32 %v1621, %v1841
      %v1972 = vadd.f32 %v1622, %v1844
      %v1973 = vadd.f32 %v1623, %v1849
      %v1974 = vadd.f32 %v1624, %v1852
      %v1975 = vadd.f32 %v1625, %v1857
      %v1976 = vadd.f32 %v1626, %v1860
      %v1977 = vadd.f32 %v1627, %v1865
      %v1978 = vadd.f32 %v1628, %v1868
      %v1979 = vadd.f32 %v1629, %v1873
      %v1980 = vadd.f32 %v1630, %v1876
      %v1981 = vadd.f32 %v1631, %v1881
      %v1982 = vadd.f32 %v1632, %v1884
      %v1983 = vadd.f32 %v1633, %v1889
      %v1984 = vadd.f32 %v1634, %v1892
      %v1985 = vadd.f32 %v1635, %v1897
      %v1986 = vadd.f32 %v1636, %v1900
      %v1987 = vadd.f32 %v1637, %v1905
      %v1988 = vadd.f32 %v1638, %v1908
      %v1989 = vadd.f32 %v1639, %v1913
      %v1990 = vadd.f32 %v1640, %v1916
      %v1991 = vadd.f32 %v1641, %v1921
      %v1992 = vadd.f32 %v1642, %v1924
      %v1993 = vadd.f32 %v1643, %v1929
      %v1994 = vadd.f32 %v1644, %v1932
      %v1995 = vadd.f32 %v1645, %v1937
      %v1996 = vadd.f32 %v1646, %v1940
      %v1997 = vadd.f32 %v1647, %v1945
      %v1998 = vadd.f32 %v1648, %v1948
      %1999 = vst.msk [vmem:[#allocation2] sm:$0xff] %vm433, %v1951
      %2000 = vst.msk [vmem:[#allocation2 + $0x8] sm:$0xff] %vm433, %v1952
      %2001 = vst.msk [vmem:[#allocation2 + $0x10] sm:$0xff] %vm433, %v1953
      %2002 = vst.msk [vmem:[#allocation2 + $0x18] sm:$0xff] %vm433, %v1954
      %2003 = vst.msk [vmem:[#allocation2 + $0x20] sm:$0xff] %vm433, %v1955
      %2004 = vst.msk [vmem:[#allocation2 + $0x28] sm:$0xff] %vm433, %v1956
      %2005 = vst.msk [vmem:[#allocation2 + $0x30] sm:$0xff] %vm433, %v1957
      %2006 = vst.msk [vmem:[#allocation2 + $0x38] sm:$0xff] %vm433, %v1958
      %2007 = vst.msk [vmem:[#allocation2 + $0x40] sm:$0xff] %vm433, %v1959
      %2008 = vst.msk [vmem:[#allocation2 + $0x48] sm:$0xff] %vm433, %v1960
      %2009 = vst.msk [vmem:[#allocation2 + $0x50] sm:$0xff] %vm433, %v1961
      %2010 = vst.msk [vmem:[#allocation2 + $0x58] sm:$0xff] %vm433, %v1962
      %2011 = vst.msk [vmem:[#allocation2 + $0x60] sm:$0xff] %vm433, %v1963
      %2012 = vst.msk [vmem:[#allocation2 + $0x68] sm:$0xff] %vm433, %v1964
      %2013 = vst.msk [vmem:[#allocation2 + $0x70] sm:$0xff] %vm433, %v1965
      %2014 = vst.msk [vmem:[#allocation2 + $0x78] sm:$0xff] %vm433, %v1966
      %2015 = vst.msk [vmem:[#allocation2 + $0x80] sm:$0xff] %vm433, %v1967
      %2016 = vst.msk [vmem:[#allocation2 + $0x88] sm:$0xff] %vm433, %v1968
      %2017 = vst.msk [vmem:[#allocation2 + $0x90] sm:$0xff] %vm433, %v1969
      %2018 = vst.msk [vmem:[#allocation2 + $0x98] sm:$0xff] %vm433, %v1970
      %2019 = vst.msk [vmem:[#allocation2 + $0xa0] sm:$0xff] %vm433, %v1971
      %2020 = vst.msk [vmem:[#allocation2 + $0xa8] sm:$0xff] %vm433, %v1972
      %2021 = vst.msk [vmem:[#allocation2 + $0xb0] sm:$0xff] %vm433, %v1973
      %2022 = vst.msk [vmem:[#allocation2 + $0xb8] sm:$0xff] %vm433, %v1974
      %2023 = vst.msk [vmem:[#allocation2 + $0xc0] sm:$0xff] %vm433, %v1975
      %2024 = vst.msk [vmem:[#allocation2 + $0xc8] sm:$0xff] %vm433, %v1976
      %2025 = vst.msk [vmem:[#allocation2 + $0xd0] sm:$0xff] %vm433, %v1977
      %2026 = vst.msk [vmem:[#allocation2 + $0xd8] sm:$0xff] %vm433, %v1978
      %2027 = vst.msk [vmem:[#allocation2 + $0xe0] sm:$0xff] %vm433, %v1979
      %2028 = vst.msk [vmem:[#allocation2 + $0xe8] sm:$0xff] %vm433, %v1980
      %2029 = vst.msk [vmem:[#allocation2 + $0xf0] sm:$0xff] %vm433, %v1981
      %2030 = vst.msk [vmem:[#allocation2 + $0xf8] sm:$0xff] %vm433, %v1982
      %2031 = vst.msk [vmem:[#allocation2 + $0x100] sm:$0xff] %vm433, %v1983
      %2032 = vst.msk [vmem:[#allocation2 + $0x108] sm:$0xff] %vm433, %v1984
      %2033 = vst.msk [vmem:[#allocation2 + $0x110] sm:$0xff] %vm433, %v1985
      %2034 = vst.msk [vmem:[#allocation2 + $0x118] sm:$0xff] %vm433, %v1986
      %2035 = vst.msk [vmem:[#allocation2 + $0x120] sm:$0xff] %vm433, %v1987
      %2036 = vst.msk [vmem:[#allocation2 + $0x128] sm:$0xff] %vm433, %v1988
      %2037 = vst.msk [vmem:[#allocation2 + $0x130] sm:$0xff] %vm433, %v1989
      %2038 = vst.msk [vmem:[#allocation2 + $0x138] sm:$0xff] %vm433, %v1990
      %2039 = vst.msk [vmem:[#allocation2 + $0x140] sm:$0xff] %vm433, %v1991
      %2040 = vst.msk [vmem:[#allocation2 + $0x148] sm:$0xff] %vm433, %v1992
      %2041 = vst.msk [vmem:[#allocation2 + $0x150] sm:$0xff] %vm433, %v1993
      %2042 = vst.msk [vmem:[#allocation2 + $0x158] sm:$0xff] %vm433, %v1994
      %2043 = vst.msk [vmem:[#allocation2 + $0x160] sm:$0xff] %vm433, %v1995
      %2044 = vst.msk [vmem:[#allocation2 + $0x168] sm:$0xff] %vm433, %v1996
      %2045 = vst.msk [vmem:[#allocation2 + $0x170] sm:$0xff] %vm433, %v1997
      %2046 = vst.msk [vmem:[#allocation2 + $0x178] sm:$0xff] %vm433, %v1998
      %v2047 = vld [vmem:[#allocation2] sm:$0xff]
      %v2048 = vld [vmem:[#allocation2 + $0x8] sm:$0xff]
      %v2049 = vld [vmem:[#allocation2 + $0x10] sm:$0xff]
      %v2050 = vld [vmem:[#allocation2 + $0x18] sm:$0xff]
      %v2051 = vld [vmem:[#allocation2 + $0x20] sm:$0xff]
      %v2052 = vld [vmem:[#allocation2 + $0x28] sm:$0xff]
      %v2053 = vld [vmem:[#allocation2 + $0x30] sm:$0xff]
      %v2054 = vld [vmem:[#allocation2 + $0x38] sm:$0xff]
      %v2055 = vld [vmem:[#allocation2 + $0x40] sm:$0xff]
      %v2056 = vld [vmem:[#allocation2 + $0x48] sm:$0xff]
      %v2057 = vld [vmem:[#allocation2 + $0x50] sm:$0xff]
      %v2058 = vld [vmem:[#allocation2 + $0x58] sm:$0xff]
      %v2059 = vld [vmem:[#allocation2 + $0x60] sm:$0xff]
      %v2060 = vld [vmem:[#allocation2 + $0x68] sm:$0xff]
      %v2061 = vld [vmem:[#allocation2 + $0x70] sm:$0xff]
      %v2062 = vld [vmem:[#allocation2 + $0x78] sm:$0xff]
      %v2063 = vld [vmem:[#allocation2 + $0x80] sm:$0xff]
      %v2064 = vld [vmem:[#allocation2 + $0x88] sm:$0xff]
      %v2065 = vld [vmem:[#allocation2 + $0x90] sm:$0xff]
      %v2066 = vld [vmem:[#allocation2 + $0x98] sm:$0xff]
      %v2067 = vld [vmem:[#allocation2 + $0xa0] sm:$0xff]
      %v2068 = vld [vmem:[#allocation2 + $0xa8] sm:$0xff]
      %v2069 = vld [vmem:[#allocation2 + $0xb0] sm:$0xff]
      %v2070 = vld [vmem:[#allocation2 + $0xb8] sm:$0xff]
      %v2071 = vld [vmem:[#allocation2 + $0xc0] sm:$0xff]
      %v2072 = vld [vmem:[#allocation2 + $0xc8] sm:$0xff]
      %v2073 = vld [vmem:[#allocation2 + $0xd0] sm:$0xff]
      %v2074 = vld [vmem:[#allocation2 + $0xd8] sm:$0xff]
      %v2075 = vld [vmem:[#allocation2 + $0xe0] sm:$0xff]
      %v2076 = vld [vmem:[#allocation2 + $0xe8] sm:$0xff]
      %v2077 = vld [vmem:[#allocation2 + $0xf0] sm:$0xff]
      %v2078 = vld [vmem:[#allocation2 + $0xf8] sm:$0xff]
      %v2079 = vld [vmem:[#allocation2 + $0x100] sm:$0xff]
      %v2080 = vld [vmem:[#allocation2 + $0x108] sm:$0xff]
      %v2081 = vld [vmem:[#allocation2 + $0x110] sm:$0xff]
      %v2082 = vld [vmem:[#allocation2 + $0x118] sm:$0xff]
      %v2083 = vld [vmem:[#allocation2 + $0x120] sm:$0xff]
      %v2084 = vld [vmem:[#allocation2 + $0x128] sm:$0xff]
      %v2085 = vld [vmem:[#allocation2 + $0x130] sm:$0xff]
      %v2086 = vld [vmem:[#allocation2 + $0x138] sm:$0xff]
      %v2087 = vld [vmem:[#allocation2 + $0x140] sm:$0xff]
      %v2088 = vld [vmem:[#allocation2 + $0x148] sm:$0xff]
      %v2089 = vld [vmem:[#allocation2 + $0x150] sm:$0xff]
      %v2090 = vld [vmem:[#allocation2 + $0x158] sm:$0xff]
      %v2091 = vld [vmem:[#allocation2 + $0x160] sm:$0xff]
      %v2092 = vld [vmem:[#allocation2 + $0x168] sm:$0xff]
      %v2093 = vld [vmem:[#allocation2 + $0x170] sm:$0xff]
      %v2094 = vld [vmem:[#allocation2 + $0x178] sm:$0xff]
      %vm2143 = vcmask 1046528
      %v2144 = vrot.slane %v2047, 1
      %v2145 = vrot.slane %v2048, 1
      %v2146 = vsel %vm2143, %v2144, %v2145
      %v2147 = vrot.slane %v2049, 1
      %v2148 = vsel %vm2143, %v2145, %v2147
      %v2149 = vrot.slane %v2050, 1
      %v2150 = vrot.slane %v2051, 1
      %v2151 = vsel %vm2143, %v2149, %v2150
      %v2152 = vrot.slane %v2052, 1
      %v2153 = vsel %vm2143, %v2150, %v2152
      %v2154 = vrot.slane %v2053, 1
      %v2155 = vrot.slane %v2054, 1
      %v2156 = vsel %vm2143, %v2154, %v2155
      %v2157 = vrot.slane %v2055, 1
      %v2158 = vsel %vm2143, %v2155, %v2157
      %v2159 = vrot.slane %v2056, 1
      %v2160 = vrot.slane %v2057, 1
      %v2161 = vsel %vm2143, %v2159, %v2160
      %v2162 = vrot.slane %v2058, 1
      %v2163 = vsel %vm2143, %v2160, %v2162
      %v2164 = vrot.slane %v2059, 1
      %v2165 = vrot.slane %v2060, 1
      %v2166 = vsel %vm2143, %v2164, %v2165
      %v2167 = vrot.slane %v2061, 1
      %v2168 = vsel %vm2143, %v2165, %v2167
      %v2169 = vrot.slane %v2062, 1
      %v2170 = vrot.slane %v2063, 1
      %v2171 = vsel %vm2143, %v2169, %v2170
      %v2172 = vrot.slane %v2064, 1
      %v2173 = vsel %vm2143, %v2170, %v2172
      %v2174 = vrot.slane %v2065, 1
      %v2175 = vrot.slane %v2066, 1
      %v2176 = vsel %vm2143, %v2174, %v2175
      %v2177 = vrot.slane %v2067, 1
      %v2178 = vsel %vm2143, %v2175, %v2177
      %v2179 = vrot.slane %v2068, 1
      %v2180 = vrot.slane %v2069, 1
      %v2181 = vsel %vm2143, %v2179, %v2180
      %v2182 = vrot.slane %v2070, 1
      %v2183 = vsel %vm2143, %v2180, %v2182
      %v2184 = vrot.slane %v2071, 1
      %v2185 = vrot.slane %v2072, 1
      %v2186 = vsel %vm2143, %v2184, %v2185
      %v2187 = vrot.slane %v2073, 1
      %v2188 = vsel %vm2143, %v2185, %v2187
      %v2189 = vrot.slane %v2074, 1
      %v2190 = vrot.slane %v2075, 1
      %v2191 = vsel %vm2143, %v2189, %v2190
      %v2192 = vrot.slane %v2076, 1
      %v2193 = vsel %vm2143, %v2190, %v2192
      %v2194 = vrot.slane %v2077, 1
      %v2195 = vrot.slane %v2078, 1
      %v2196 = vsel %vm2143, %v2194, %v2195
      %v2197 = vrot.slane %v2079, 1
      %v2198 = vsel %vm2143, %v2195, %v2197
      %v2199 = vrot.slane %v2080, 1
      %v2200 = vrot.slane %v2081, 1
      %v2201 = vsel %vm2143, %v2199, %v2200
      %v2202 = vrot.slane %v2082, 1
      %v2203 = vsel %vm2143, %v2200, %v2202
      %v2204 = vrot.slane %v2083, 1
      %v2205 = vrot.slane %v2084, 1
      %v2206 = vsel %vm2143, %v2204, %v2205
      %v2207 = vrot.slane %v2085, 1
      %v2208 = vsel %vm2143, %v2205, %v2207
      %v2209 = vrot.slane %v2086, 1
      %v2210 = vrot.slane %v2087, 1
      %v2211 = vsel %vm2143, %v2209, %v2210
      %v2212 = vrot.slane %v2088, 1
      %v2213 = vsel %vm2143, %v2210, %v2212
      %v2214 = vrot.slane %v2089, 1
      %v2215 = vrot.slane %v2090, 1
      %v2216 = vsel %vm2143, %v2214, %v2215
      %v2217 = vrot.slane %v2091, 1
      %v2218 = vsel %vm2143, %v2215, %v2217
      %v2219 = vrot.slane %v2092, 1
      %v2220 = vrot.slane %v2093, 1
      %v2221 = vsel %vm2143, %v2219, %v2220
      %v2222 = vrot.slane %v2094, 1
      %v2223 = vsel %vm2143, %v2220, %v2222
      %2224 = vrot.lane.b32.xlu0 %v2146, 96
      %v2225 = vpop.permute.xlu0 %2224
      %2226 = vrot.lane.b32.xlu0 %v2148, 96
      %v2227 = vpop.permute.xlu0 %2226
      %2228 = vrot.lane.b32.xlu0 %v2151, 96
      %v2229 = vpop.permute.xlu0 %2228
      %2230 = vrot.lane.b32.xlu0 %v2153, 96
      %v2231 = vpop.permute.xlu0 %2230
      %2232 = vrot.lane.b32.xlu0 %v2156, 96
      %v2233 = vpop.permute.xlu0 %2232
      %2234 = vrot.lane.b32.xlu0 %v2158, 96
      %v2235 = vpop.permute.xlu0 %2234
      %2236 = vrot.lane.b32.xlu0 %v2161, 96
      %v2237 = vpop.permute.xlu0 %2236
      %2238 = vrot.lane.b32.xlu0 %v2163, 96
      %v2239 = vpop.permute.xlu0 %2238
      %2240 = vrot.lane.b32.xlu0 %v2166, 96
      %v2241 = vpop.permute.xlu0 %2240
      %2242 = vrot.lane.b32.xlu0 %v2168, 96
      %v2243 = vpop.permute.xlu0 %2242
      %2244 = vrot.lane.b32.xlu0 %v2171, 96
      %v2245 = vpop.permute.xlu0 %2244
      %2246 = vrot.lane.b32.xlu0 %v2173, 96
      %v2247 = vpop.permute.xlu0 %2246
      %2248 = vrot.lane.b32.xlu0 %v2176, 96
      %v2249 = vpop.permute.xlu0 %2248
      %2250 = vrot.lane.b32.xlu0 %v2178, 96
      %v2251 = vpop.permute.xlu0 %2250
      %2252 = vrot.lane.b32.xlu0 %v2181, 96
      %v2253 = vpop.permute.xlu0 %2252
      %2254 = vrot.lane.b32.xlu0 %v2183, 96
      %v2255 = vpop.permute.xlu0 %2254
      %2256 = vrot.lane.b32.xlu0 %v2186, 96
      %v2257 = vpop.permute.xlu0 %2256
      %2258 = vrot.lane.b32.xlu0 %v2188, 96
      %v2259 = vpop.permute.xlu0 %2258
      %2260 = vrot.lane.b32.xlu0 %v2191, 96
      %v2261 = vpop.permute.xlu0 %2260
      %2262 = vrot.lane.b32.xlu0 %v2193, 96
      %v2263 = vpop.permute.xlu0 %2262
      %2264 = vrot.lane.b32.xlu0 %v2196, 96
      %v2265 = vpop.permute.xlu0 %2264
      %2266 = vrot.lane.b32.xlu0 %v2198, 96
      %v2267 = vpop.permute.xlu0 %2266
      %2268 = vrot.lane.b32.xlu0 %v2201, 96
      %v2269 = vpop.permute.xlu0 %2268
      %2270 = vrot.lane.b32.xlu0 %v2203, 96
      %v2271 = vpop.permute.xlu0 %2270
      %2272 = vrot.lane.b32.xlu0 %v2206, 96
      %v2273 = vpop.permute.xlu0 %2272
      %2274 = vrot.lane.b32.xlu0 %v2208, 96
      %v2275 = vpop.permute.xlu0 %2274
      %2276 = vrot.lane.b32.xlu0 %v2211, 96
      %v2277 = vpop.permute.xlu0 %2276
      %2278 = vrot.lane.b32.xlu0 %v2213, 96
      %v2279 = vpop.permute.xlu0 %2278
      %2280 = vrot.lane.b32.xlu0 %v2216, 96
      %v2281 = vpop.permute.xlu0 %2280
      %2282 = vrot.lane.b32.xlu0 %v2218, 96
      %v2283 = vpop.permute.xlu0 %2282
      %2284 = vrot.lane.b32.xlu0 %v2221, 96
      %v2285 = vpop.permute.xlu0 %2284
      %2286 = vrot.lane.b32.xlu0 %v2223, 96
      %v2287 = vpop.permute.xlu0 %2286
      %v2320 = vadd.f32 %v2047, %v2225
      %v2321 = vadd.f32 %v2048, %v2227
      %v2322 = vadd.f32 %v2050, %v2229
      %v2323 = vadd.f32 %v2051, %v2231
      %v2324 = vadd.f32 %v2053, %v2233
      %v2325 = vadd.f32 %v2054, %v2235
      %v2326 = vadd.f32 %v2056, %v2237
      %v2327 = vadd.f32 %v2057, %v2239
      %v2328 = vadd.f32 %v2059, %v2241
      %v2329 = vadd.f32 %v2060, %v2243
      %v2330 = vadd.f32 %v2062, %v2245
      %v2331 = vadd.f32 %v2063, %v2247
      %v2332 = vadd.f32 %v2065, %v2249
      %v2333 = vadd.f32 %v2066, %v2251
      %v2334 = vadd.f32 %v2068, %v2253
      %v2335 = vadd.f32 %v2069, %v2255
      %v2336 = vadd.f32 %v2071, %v2257
      %v2337 = vadd.f32 %v2072, %v2259
      %v2338 = vadd.f32 %v2074, %v2261
      %v2339 = vadd.f32 %v2075, %v2263
      %v2340 = vadd.f32 %v2077, %v2265
      %v2341 = vadd.f32 %v2078, %v2267
      %v2342 = vadd.f32 %v2080, %v2269
      %v2343 = vadd.f32 %v2081, %v2271
      %v2344 = vadd.f32 %v2083, %v2273
      %v2345 = vadd.f32 %v2084, %v2275
      %v2346 = vadd.f32 %v2086, %v2277
      %v2347 = vadd.f32 %v2087, %v2279
      %v2348 = vadd.f32 %v2089, %v2281
      %v2349 = vadd.f32 %v2090, %v2283
      %v2350 = vadd.f32 %v2092, %v2285
      %v2351 = vadd.f32 %v2093, %v2287
      %vm2352 = vcmask 1045504
      %v2353 = vrot.slane %v2047, 2
      %v2354 = vrot.slane %v2048, 2
      %v2355 = vsel %vm2352, %v2353, %v2354
      %v2356 = vrot.slane %v2049, 2
      %v2357 = vsel %vm2352, %v2354, %v2356
      %v2358 = vrot.slane %v2050, 2
      %v2359 = vrot.slane %v2051, 2
      %v2360 = vsel %vm2352, %v2358, %v2359
      %v2361 = vrot.slane %v2052, 2
      %v2362 = vsel %vm2352, %v2359, %v2361
      %v2363 = vrot.slane %v2053, 2
      %v2364 = vrot.slane %v2054, 2
      %v2365 = vsel %vm2352, %v2363, %v2364
      %v2366 = vrot.slane %v2055, 2
      %v2367 = vsel %vm2352, %v2364, %v2366
      %v2368 = vrot.slane %v2056, 2
      %v2369 = vrot.slane %v2057, 2
      %v2370 = vsel %vm2352, %v2368, %v2369
      %v2371 = vrot.slane %v2058, 2
      %v2372 = vsel %vm2352, %v2369, %v2371
      %v2373 = vrot.slane %v2059, 2
      %v2374 = vrot.slane %v2060, 2
      %v2375 = vsel %vm2352, %v2373, %v2374
      %v2376 = vrot.slane %v2061, 2
      %v2377 = vsel %vm2352, %v2374, %v2376
      %v2378 = vrot.slane %v2062, 2
      %v2379 = vrot.slane %v2063, 2
      %v2380 = vsel %vm2352, %v2378, %v2379
      %v2381 = vrot.slane %v2064, 2
      %v2382 = vsel %vm2352, %v2379, %v2381
      %v2383 = vrot.slane %v2065, 2
      %v2384 = vrot.slane %v2066, 2
      %v2385 = vsel %vm2352, %v2383, %v2384
      %v2386 = vrot.slane %v2067, 2
      %v2387 = vsel %vm2352, %v2384, %v2386
      %v2388 = vrot.slane %v2068, 2
      %v2389 = vrot.slane %v2069, 2
      %v2390 = vsel %vm2352, %v2388, %v2389
      %v2391 = vrot.slane %v2070, 2
      %v2392 = vsel %vm2352, %v2389, %v2391
      %v2393 = vrot.slane %v2071, 2
      %v2394 = vrot.slane %v2072, 2
      %v2395 = vsel %vm2352, %v2393, %v2394
      %v2396 = vrot.slane %v2073, 2
      %v2397 = vsel %vm2352, %v2394, %v2396
      %v2398 = vrot.slane %v2074, 2
      %v2399 = vrot.slane %v2075, 2
      %v2400 = vsel %vm2352, %v2398, %v2399
      %v2401 = vrot.slane %v2076, 2
      %v2402 = vsel %vm2352, %v2399, %v2401
      %v2403 = vrot.slane %v2077, 2
      %v2404 = vrot.slane %v2078, 2
      %v2405 = vsel %vm2352, %v2403, %v2404
      %v2406 = vrot.slane %v2079, 2
      %v2407 = vsel %vm2352, %v2404, %v2406
      %v2408 = vrot.slane %v2080, 2
      %v2409 = vrot.slane %v2081, 2
      %v2410 = vsel %vm2352, %v2408, %v2409
      %v2411 = vrot.slane %v2082, 2
      %v2412 = vsel %vm2352, %v2409, %v2411
      %v2413 = vrot.slane %v2083, 2
      %v2414 = vrot.slane %v2084, 2
      %v2415 = vsel %vm2352, %v2413, %v2414
      %v2416 = vrot.slane %v2085, 2
      %v2417 = vsel %vm2352, %v2414, %v2416
      %v2418 = vrot.slane %v2086, 2
      %v2419 = vrot.slane %v2087, 2
      %v2420 = vsel %vm2352, %v2418, %v2419
      %v2421 = vrot.slane %v2088, 2
      %v2422 = vsel %vm2352, %v2419, %v2421
      %v2423 = vrot.slane %v2089, 2
      %v2424 = vrot.slane %v2090, 2
      %v2425 = vsel %vm2352, %v2423, %v2424
      %v2426 = vrot.slane %v2091, 2
      %v2427 = vsel %vm2352, %v2424, %v2426
      %v2428 = vrot.slane %v2092, 2
      %v2429 = vrot.slane %v2093, 2
      %v2430 = vsel %vm2352, %v2428, %v2429
      %v2431 = vrot.slane %v2094, 2
      %v2432 = vsel %vm2352, %v2429, %v2431
      %2433 = vrot.lane.b32.xlu0 %v2355, 64
      %v2434 = vpop.permute.xlu0 %2433
      %2435 = vrot.lane.b32.xlu0 %v2357, 64
      %v2436 = vpop.permute.xlu0 %2435
      %2437 = vrot.lane.b32.xlu0 %v2360, 64
      %v2438 = vpop.permute.xlu0 %2437
      %2439 = vrot.lane.b32.xlu0 %v2362, 64
      %v2440 = vpop.permute.xlu0 %2439
      %2441 = vrot.lane.b32.xlu0 %v2365, 64
      %v2442 = vpop.permute.xlu0 %2441
      %2443 = vrot.lane.b32.xlu0 %v2367, 64
      %v2444 = vpop.permute.xlu0 %2443
      %2445 = vrot.lane.b32.xlu0 %v2370, 64
      %v2446 = vpop.permute.xlu0 %2445
      %2447 = vrot.lane.b32.xlu0 %v2372, 64
      %v2448 = vpop.permute.xlu0 %2447
      %2449 = vrot.lane.b32.xlu0 %v2375, 64
      %v2450 = vpop.permute.xlu0 %2449
      %2451 = vrot.lane.b32.xlu0 %v2377, 64
      %v2452 = vpop.permute.xlu0 %2451
      %2453 = vrot.lane.b32.xlu0 %v2380, 64
      %v2454 = vpop.permute.xlu0 %2453
      %2455 = vrot.lane.b32.xlu0 %v2382, 64
      %v2456 = vpop.permute.xlu0 %2455
      %2457 = vrot.lane.b32.xlu0 %v2385, 64
      %v2458 = vpop.permute.xlu0 %2457
      %2459 = vrot.lane.b32.xlu0 %v2387, 64
      %v2460 = vpop.permute.xlu0 %2459
      %2461 = vrot.lane.b32.xlu0 %v2390, 64
      %v2462 = vpop.permute.xlu0 %2461
      %2463 = vrot.lane.b32.xlu0 %v2392, 64
      %v2464 = vpop.permute.xlu0 %2463
      %2465 = vrot.lane.b32.xlu0 %v2395, 64
      %v2466 = vpop.permute.xlu0 %2465
      %2467 = vrot.lane.b32.xlu0 %v2397, 64
      %v2468 = vpop.permute.xlu0 %2467
      %2469 = vrot.lane.b32.xlu0 %v2400, 64
      %v2470 = vpop.permute.xlu0 %2469
      %2471 = vrot.lane.b32.xlu0 %v2402, 64
      %v2472 = vpop.permute.xlu0 %2471
      %2473 = vrot.lane.b32.xlu0 %v2405, 64
      %v2474 = vpop.permute.xlu0 %2473
      %2475 = vrot.lane.b32.xlu0 %v2407, 64
      %v2476 = vpop.permute.xlu0 %2475
      %2477 = vrot.lane.b32.xlu0 %v2410, 64
      %v2478 = vpop.permute.xlu0 %2477
      %2479 = vrot.lane.b32.xlu0 %v2412, 64
      %v2480 = vpop.permute.xlu0 %2479
      %2481 = vrot.lane.b32.xlu0 %v2415, 64
      %v2482 = vpop.permute.xlu0 %2481
      %2483 = vrot.lane.b32.xlu0 %v2417, 64
      %v2484 = vpop.permute.xlu0 %2483
      %2485 = vrot.lane.b32.xlu0 %v2420, 64
      %v2486 = vpop.permute.xlu0 %2485
      %2487 = vrot.lane.b32.xlu0 %v2422, 64
      %v2488 = vpop.permute.xlu0 %2487
      %2489 = vrot.lane.b32.xlu0 %v2425, 64
      %v2490 = vpop.permute.xlu0 %2489
      %2491 = vrot.lane.b32.xlu0 %v2427, 64
      %v2492 = vpop.permute.xlu0 %2491
      %2493 = vrot.lane.b32.xlu0 %v2430, 64
      %v2494 = vpop.permute.xlu0 %2493
      %2495 = vrot.lane.b32.xlu0 %v2432, 64
      %v2496 = vpop.permute.xlu0 %2495
      %v2529 = vadd.f32 %v2320, %v2434
      %v2530 = vadd.f32 %v2321, %v2436
      %v2531 = vadd.f32 %v2322, %v2438
      %v2532 = vadd.f32 %v2323, %v2440
      %v2533 = vadd.f32 %v2324, %v2442
      %v2534 = vadd.f32 %v2325, %v2444
      %v2535 = vadd.f32 %v2326, %v2446
      %v2536 = vadd.f32 %v2327, %v2448
      %v2537 = vadd.f32 %v2328, %v2450
      %v2538 = vadd.f32 %v2329, %v2452
      %v2539 = vadd.f32 %v2330, %v2454
      %v2540 = vadd.f32 %v2331, %v2456
      %v2541 = vadd.f32 %v2332, %v2458
      %v2542 = vadd.f32 %v2333, %v2460
      %v2543 = vadd.f32 %v2334, %v2462
      %v2544 = vadd.f32 %v2335, %v2464
      %v2545 = vadd.f32 %v2336, %v2466
      %v2546 = vadd.f32 %v2337, %v2468
      %v2547 = vadd.f32 %v2338, %v2470
      %v2548 = vadd.f32 %v2339, %v2472
      %v2549 = vadd.f32 %v2340, %v2474
      %v2550 = vadd.f32 %v2341, %v2476
      %v2551 = vadd.f32 %v2342, %v2478
      %v2552 = vadd.f32 %v2343, %v2480
      %v2553 = vadd.f32 %v2344, %v2482
      %v2554 = vadd.f32 %v2345, %v2484
      %v2555 = vadd.f32 %v2346, %v2486
      %v2556 = vadd.f32 %v2347, %v2488
      %v2557 = vadd.f32 %v2348, %v2490
      %v2558 = vadd.f32 %v2349, %v2492
      %v2559 = vadd.f32 %v2350, %v2494
      %v2560 = vadd.f32 %v2351, %v2496
      %v2561 = vld [vmem:[%s2] sm:$0x1]
      %v2563 = vlaneseq
      %v2564 = vshrl.u32 %v2563, 7
      %v2565 = vsub.s32 0, %v2564
      %v2566 = vrot.slane %v2561, %v2565
      %v2568 = vadd.f32 %v2529, %v2566
      %v2569 = vadd.f32 %v2530, %v2566
      %v2570 = vadd.f32 %v2531, %v2566
      %v2571 = vadd.f32 %v2532, %v2566
      %v2572 = vadd.f32 %v2533, %v2566
      %v2573 = vadd.f32 %v2534, %v2566
      %v2574 = vadd.f32 %v2535, %v2566
      %v2575 = vadd.f32 %v2536, %v2566
      %v2576 = vadd.f32 %v2537, %v2566
      %v2577 = vadd.f32 %v2538, %v2566
      %v2578 = vadd.f32 %v2539, %v2566
      %v2579 = vadd.f32 %v2540, %v2566
      %v2580 = vadd.f32 %v2541, %v2566
      %v2581 = vadd.f32 %v2542, %v2566
      %v2582 = vadd.f32 %v2543, %v2566
      %v2583 = vadd.f32 %v2544, %v2566
      %v2584 = vadd.f32 %v2545, %v2566
      %v2585 = vadd.f32 %v2546, %v2566
      %v2586 = vadd.f32 %v2547, %v2566
      %v2587 = vadd.f32 %v2548, %v2566
      %v2588 = vadd.f32 %v2549, %v2566
      %v2589 = vadd.f32 %v2550, %v2566
      %v2590 = vadd.f32 %v2551, %v2566
      %v2591 = vadd.f32 %v2552, %v2566
      %v2592 = vadd.f32 %v2553, %v2566
      %v2593 = vadd.f32 %v2554, %v2566
      %v2594 = vadd.f32 %v2555, %v2566
      %v2595 = vadd.f32 %v2556, %v2566
      %v2596 = vadd.f32 %v2557, %v2566
      %v2597 = vadd.f32 %v2558, %v2566
      %v2598 = vadd.f32 %v2559, %v2566
      %v2599 = vadd.f32 %v2560, %v2566
      %v2600 = vmax.f32 %v2568, 0.0
      %v2601 = vmax.f32 %v2569, 0.0
      %v2602 = vmax.f32 %v2570, 0.0
      %v2603 = vmax.f32 %v2571, 0.0
      %v2604 = vmax.f32 %v2572, 0.0
      %v2605 = vmax.f32 %v2573, 0.0
      %v2606 = vmax.f32 %v2574, 0.0
      %v2607 = vmax.f32 %v2575, 0.0
      %v2608 = vmax.f32 %v2576, 0.0
      %v2609 = vmax.f32 %v2577, 0.0
      %v2610 = vmax.f32 %v2578, 0.0
      %v2611 = vmax.f32 %v2579, 0.0
      %v2612 = vmax.f32 %v2580, 0.0
      %v2613 = vmax.f32 %v2581, 0.0
      %v2614 = vmax.f32 %v2582, 0.0
      %v2615 = vmax.f32 %v2583, 0.0
      %v2616 = vmax.f32 %v2584, 0.0
      %v2617 = vmax.f32 %v2585, 0.0
      %v2618 = vmax.f32 %v2586, 0.0
      %v2619 = vmax.f32 %v2587, 0.0
      %v2620 = vmax.f32 %v2588, 0.0
      %v2621 = vmax.f32 %v2589, 0.0
      %v2622 = vmax.f32 %v2590, 0.0
      %v2623 = vmax.f32 %v2591, 0.0
      %v2624 = vmax.f32 %v2592, 0.0
      %v2625 = vmax.f32 %v2593, 0.0
      %v2626 = vmax.f32 %v2594, 0.0
      %v2627 = vmax.f32 %v2595, 0.0
      %v2628 = vmax.f32 %v2596, 0.0
      %v2629 = vmax.f32 %v2597, 0.0
      %v2630 = vmax.f32 %v2598, 0.0
      %v2631 = vmax.f32 %v2599, 0.0
      %v2632 = vpack.c.bf16 %v2601, %v2600
      %v2633 = vpack.c.bf16 %v2603, %v2602
      %v2634 = vpack.c.bf16 %v2605, %v2604
      %v2635 = vpack.c.bf16 %v2607, %v2606
      %v2636 = vpack.c.bf16 %v2609, %v2608
      %v2637 = vpack.c.bf16 %v2611, %v2610
      %v2638 = vpack.c.bf16 %v2613, %v2612
      %v2639 = vpack.c.bf16 %v2615, %v2614
      %v2640 = vpack.c.bf16 %v2617, %v2616
      %v2641 = vpack.c.bf16 %v2619, %v2618
      %v2642 = vpack.c.bf16 %v2621, %v2620
      %v2643 = vpack.c.bf16 %v2623, %v2622
      %v2644 = vpack.c.bf16 %v2625, %v2624
      %v2645 = vpack.c.bf16 %v2627, %v2626
      %v2646 = vpack.c.bf16 %v2629, %v2628
      %v2647 = vpack.c.bf16 %v2631, %v2630
      %v2648 = vld [vmem:[%s3] sm:$0xff]
      %v2649 = vld [vmem:[%s3 + $0x8] sm:$0xf]
      %v2650 = vld [vmem:[%s3 + $0xc] sm:$0xff]
      %v2651 = vld [vmem:[%s3 + $0x14] sm:$0xf]
      %v2652 = vld [vmem:[%s3 + $0x18] sm:$0xff]
      %v2653 = vld [vmem:[%s3 + $0x20] sm:$0xf]
      %v2654 = vld [vmem:[%s3 + $0x24] sm:$0xff]
      %v2655 = vld [vmem:[%s3 + $0x2c] sm:$0xf]
      %v2656 = vld [vmem:[%s4] sm:$0x7]
      %v2658 = vlaneseq
      %v2659 = vshrl.u32 %v2658, 7
      %v2660 = vsub.s32 0, %v2659
      %v2661 = vrot.slane %v2656, %v2660
      %v2662 = vlaneseq
      %v2663 = vshrl.u32 %v2662, 7
      %v2664 = vsub.s32 1, %v2663
      %v2665 = vrot.slane %v2656, %v2664
      %v2666 = vlaneseq
      %v2667 = vshrl.u32 %v2666, 7
      %v2668 = vsub.s32 2, %v2667
      %v2669 = vrot.slane %v2656, %v2668
      %v2681 = vunpack.c.l.b16 %v2648
      %v2682 = vunpack.c.h.b16 %v2648
      %v2683 = vunpack.c.l.b16 %v2649
      %v2684 = vunpack.c.l.b16 %v2650
      %v2685 = vunpack.c.h.b16 %v2650
      %v2686 = vunpack.c.l.b16 %v2651
      %v2687 = vunpack.c.l.b16 %v2652
      %v2688 = vunpack.c.h.b16 %v2652
      %v2689 = vunpack.c.l.b16 %v2653
      %v2690 = vunpack.c.l.b16 %v2654
      %v2691 = vunpack.c.h.b16 %v2654
      %v2692 = vunpack.c.l.b16 %v2655
      %v2693 = vpack.c.b16 %v2684, %v2681
      %v2694 = vpack.c.b16 %v2685, %v2682
      %v2695 = vpack.c.b16 %v2686, %v2683
      %v2696 = vpack.c.b16 %v2690, %v2687
      %v2697 = vpack.c.b16 %v2691, %v2688
      %v2698 = vpack.c.b16 %v2692, %v2689
      %vm2705 = vcmask 261120
      %v2707 = vsel %vm2705, %v2632, 0
      %v2710 = vsel %vm2705, %v2633, 0
      %v2713 = vsel %vm2705, %v2634, 0
      %v2716 = vsel %vm2705, %v2635, 0
      %v2719 = vsel %vm2705, %v2636, 0
      %v2722 = vsel %vm2705, %v2637, 0
      %v2725 = vsel %vm2705, %v2638, 0
      %v2728 = vsel %vm2705, %v2639, 0
      %v2731 = vsel %vm2705, %v2640, 0
      %v2734 = vsel %vm2705, %v2641, 0
      %v2737 = vsel %vm2705, %v2642, 0
      %v2740 = vsel %vm2705, %v2643, 0
      %v2743 = vsel %vm2705, %v2644, 0
      %v2746 = vsel %vm2705, %v2645, 0
      %v2749 = vsel %vm2705, %v2646, 0
      %v2752 = vsel %vm2705, %v2647, 0
      %2754 = vmatprep.subr.bf16.mxu0 %v2694
      %2755 = vmatpush1.bf16.msra.mxu0 %v2693
      %2756 = vmatprep.subr.bf16.mxu0 %v2697
      %2757 = vmatpush1.bf16.msra.mxu0 %v2696
      %2758 = vmatprep.subr.bf16.mxu0 0
      %2759 = vmatpush1.bf16.msra.mxu0 0
      %2760 = vmatprep.subr.bf16.mxu0 0
      %2761 = vmatpush1.bf16.msra.mxu0 0
      %2762 = vmatprep.subr.bf16.mxu0 0
      %2763 = vmatpush1.bf16.msra.mxu0 0
      %2764 = vmatprep.subr.bf16.mxu0 0
      %2765 = vmatpush1.bf16.msra.mxu0 0
      %2766 = vmatprep.subr.bf16.mxu0 0
      %2767 = vmatpush1.bf16.msra.mxu0 0
      %2768 = vmatprep.subr.bf16.mxu0 0
      %2769 = vmatpush1.bf16.msra.mxu0 0
      %2770 = vmatprep.subr.bf16.mxu0 0
      %2771 = vmatpush1.bf16.msra.mxu0 0
      %2772 = vmatprep.subr.bf16.mxu0 0
      %2773 = vmatpush1.bf16.msra.mxu0 0
      %2774 = vmatprep.subr.bf16.mxu0 0
      %2775 = vmatpush1.bf16.msra.mxu0 0
      %2776 = vmatprep.subr.bf16.mxu0 0
      %2777 = vmatpush1.bf16.msra.mxu0 0
      %2778 = vmatprep.subr.bf16.mxu0 0
      %2779 = vmatpush1.bf16.msra.mxu0 0
      %2780 = vmatprep.subr.bf16.mxu0 0
      %2781 = vmatpush1.bf16.msra.mxu0 0
      %2782 = vmatprep.subr.bf16.mxu0 0
      %2783 = vmatpush1.bf16.msra.mxu0 0
      %2784 = vmatprep.subr.bf16.mxu0 0
      %2785 = vmatpush1.bf16.msra.mxu0 0
      %2786 = vmatprep.mubr.bf16.mxu0 0
      %2787 = vmatmul.mubr.bf16.gmra.mrb[0].mxu0 %v2707
      %v2788 = vpop.f32.mrb[0].mxu0
      %v2789 = vadd.f32 %v2661, %v2788
      %v2790 = vpop.f32.mrb[0].mxu0
      %v2791 = vadd.f32 %v2665, %v2790
      %v2792 = vpop.f32.mrb[0].mxu0
      %v2793 = vadd.f32 %v2661, %v2792
      %v2794 = vpop.f32.mrb[0].mxu0
      %v2795 = vadd.f32 %v2665, %v2794
      %2796 = vmatprep.mubr.bf16.mxu0 0
      %2797 = vmatmul.mubr.bf16.gmra.mrb[0].mxu0 %v2710
      %v2798 = vpop.f32.mrb[0].mxu0
      %v2799 = vadd.f32 %v2661, %v2798
      %v2800 = vpop.f32.mrb[0].mxu0
      %v2801 = vadd.f32 %v2665, %v2800
      %v2802 = vpop.f32.mrb[0].mxu0
      %v2803 = vadd.f32 %v2661, %v2802
      %v2804 = vpop.f32.mrb[0].mxu0
      %v2805 = vadd.f32 %v2665, %v2804
      %2806 = vmatprep.mubr.bf16.mxu0 0
      %2807 = vmatmul.mubr.bf16.gmra.mrb[0].mxu0 %v2713
      %v2808 = vpop.f32.mrb[0].mxu0
      %v2809 = vadd.f32 %v2661, %v2808
      %v2810 = vpop.f32.mrb[0].mxu0
      %v2811 = vadd.f32 %v2665, %v2810
      %v2812 = vpop.f32.mrb[0].mxu0
      %v2813 = vadd.f32 %v2661, %v2812
      %v2814 = vpop.f32.mrb[0].mxu0
      %v2815 = vadd.f32 %v2665, %v2814
      %2816 = vmatprep.mubr.bf16.mxu0 0
      %2817 = vmatmul.mubr.bf16.gmra.mrb[0].mxu0 %v2716
      %v2818 = vpop.f32.mrb[0].mxu0
      %v2819 = vadd.f32 %v2661, %v2818
      %v2820 = vpop.f32.mrb[0].mxu0
      %v2821 = vadd.f32 %v2665, %v2820
      %v2822 = vpop.f32.mrb[0].mxu0
      %v2823 = vadd.f32 %v2661, %v2822
      %v2824 = vpop.f32.mrb[0].mxu0
      %v2825 = vadd.f32 %v2665, %v2824
      %2826 = vmatprep.mubr.bf16.mxu0 0
      %2827 = vmatmul.mubr.bf16.gmra.mrb[0].mxu0 %v2719
      %v2828 = vpop.f32.mrb[0].mxu0
      %v2829 = vadd.f32 %v2661, %v2828
      %v2830 = vpop.f32.mrb[0].mxu0
      %v2831 = vadd.f32 %v2665, %v2830
      %v2832 = vpop.f32.mrb[0].mxu0
      %v2833 = vadd.f32 %v2661, %v2832
      %v2834 = vpop.f32.mrb[0].mxu0
      %v2835 = vadd.f32 %v2665, %v2834
      %2836 = vmatprep.mubr.bf16.mxu0 0
      %2837 = vmatmul.mubr.bf16.gmra.mrb[0].mxu0 %v2722
      %v2838 = vpop.f32.mrb[0].mxu0
      %v2839 = vadd.f32 %v2661, %v2838
      %v2840 = vpop.f32.mrb[0].mxu0
      %v2841 = vadd.f32 %v2665, %v2840
      %v2842 = vpop.f32.mrb[0].mxu0
      %v2843 = vadd.f32 %v2661, %v2842
      %v2844 = vpop.f32.mrb[0].mxu0
      %v2845 = vadd.f32 %v2665, %v2844
      %2846 = vmatprep.mubr.bf16.mxu0 0
      %2847 = vmatmul.mubr.bf16.gmra.mrb[0].mxu0 %v2725
      %v2848 = vpop.f32.mrb[0].mxu0
      %v2849 = vadd.f32 %v2661, %v2848
      %v2850 = vpop.f32.mrb[0].mxu0
      %v2851 = vadd.f32 %v2665, %v2850
      %v2852 = vpop.f32.mrb[0].mxu0
      %v2853 = vadd.f32 %v2661, %v2852
      %v2854 = vpop.f32.mrb[0].mxu0
      %v2855 = vadd.f32 %v2665, %v2854
      %2856 = vmatprep.mubr.bf16.mxu0 0
      %2857 = vmatmul.mubr.bf16.gmra.mrb[0].mxu0 %v2728
      %v2858 = vpop.f32.mrb[0].mxu0
      %v2859 = vadd.f32 %v2661, %v2858
      %v2860 = vpop.f32.mrb[0].mxu0
      %v2861 = vadd.f32 %v2665, %v2860
      %v2862 = vpop.f32.mrb[0].mxu0
      %v2863 = vadd.f32 %v2661, %v2862
      %v2864 = vpop.f32.mrb[0].mxu0
      %v2865 = vadd.f32 %v2665, %v2864
      %2866 = vmatprep.mubr.bf16.mxu0 0
      %2867 = vmatmul.mubr.bf16.gmra.mrb[0].mxu0 %v2731
      %v2868 = vpop.f32.mrb[0].mxu0
      %v2869 = vadd.f32 %v2661, %v2868
      %v2870 = vpop.f32.mrb[0].mxu0
      %v2871 = vadd.f32 %v2665, %v2870
      %v2872 = vpop.f32.mrb[0].mxu0
      %v2873 = vadd.f32 %v2661, %v2872
      %v2874 = vpop.f32.mrb[0].mxu0
      %v2875 = vadd.f32 %v2665, %v2874
      %2876 = vmatprep.mubr.bf16.mxu0 0
      %2877 = vmatmul.mubr.bf16.gmra.mrb[0].mxu0 %v2734
      %v2878 = vpop.f32.mrb[0].mxu0
      %v2879 = vadd.f32 %v2661, %v2878
      %v2880 = vpop.f32.mrb[0].mxu0
      %v2881 = vadd.f32 %v2665, %v2880
      %v2882 = vpop.f32.mrb[0].mxu0
      %v2883 = vadd.f32 %v2661, %v2882
      %v2884 = vpop.f32.mrb[0].mxu0
      %v2885 = vadd.f32 %v2665, %v2884
      %2886 = vmatprep.mubr.bf16.mxu0 0
      %2887 = vmatmul.mubr.bf16.gmra.mrb[0].mxu0 %v2737
      %v2888 = vpop.f32.mrb[0].mxu0
      %v2889 = vadd.f32 %v2661, %v2888
      %v2890 = vpop.f32.mrb[0].mxu0
      %v2891 = vadd.f32 %v2665, %v2890
      %v2892 = vpop.f32.mrb[0].mxu0
      %v2893 = vadd.f32 %v2661, %v2892
      %v2894 = vpop.f32.mrb[0].mxu0
      %v2895 = vadd.f32 %v2665, %v2894
      %2896 = vmatprep.mubr.bf16.mxu0 0
      %2897 = vmatmul.mubr.bf16.gmra.mrb[0].mxu0 %v2740
      %v2898 = vpop.f32.mrb[0].mxu0
      %v2899 = vadd.f32 %v2661, %v2898
      %v2900 = vpop.f32.mrb[0].mxu0
      %v2901 = vadd.f32 %v2665, %v2900
      %v2902 = vpop.f32.mrb[0].mxu0
      %v2903 = vadd.f32 %v2661, %v2902
      %v2904 = vpop.f32.mrb[0].mxu0
      %v2905 = vadd.f32 %v2665, %v2904
      %2906 = vmatprep.mubr.bf16.mxu0 0
      %2907 = vmatmul.mubr.bf16.gmra.mrb[0].mxu0 %v2743
      %v2908 = vpop.f32.mrb[0].mxu0
      %v2909 = vadd.f32 %v2661, %v2908
      %v2910 = vpop.f32.mrb[0].mxu0
      %v2911 = vadd.f32 %v2665, %v2910
      %v2912 = vpop.f32.mrb[0].mxu0
      %v2913 = vadd.f32 %v2661, %v2912
      %v2914 = vpop.f32.mrb[0].mxu0
      %v2915 = vadd.f32 %v2665, %v2914
      %2916 = vmatprep.mubr.bf16.mxu0 0
      %2917 = vmatmul.mubr.bf16.gmra.mrb[0].mxu0 %v2746
      %v2918 = vpop.f32.mrb[0].mxu0
      %v2919 = vadd.f32 %v2661, %v2918
      %v2920 = vpop.f32.mrb[0].mxu0
      %v2921 = vadd.f32 %v2665, %v2920
      %v2922 = vpop.f32.mrb[0].mxu0
      %v2923 = vadd.f32 %v2661, %v2922
      %v2924 = vpop.f32.mrb[0].mxu0
      %v2925 = vadd.f32 %v2665, %v2924
      %2926 = vmatprep.mubr.bf16.mxu0 0
      %2927 = vmatmul.mubr.bf16.gmra.mrb[0].mxu0 %v2749
      %v2928 = vpop.f32.mrb[0].mxu0
      %v2929 = vadd.f32 %v2661, %v2928
      %v2930 = vpop.f32.mrb[0].mxu0
      %v2931 = vadd.f32 %v2665, %v2930
      %v2932 = vpop.f32.mrb[0].mxu0
      %v2933 = vadd.f32 %v2661, %v2932
      %v2934 = vpop.f32.mrb[0].mxu0
      %v2935 = vadd.f32 %v2665, %v2934
      %2936 = vmatprep.mubr.bf16.mxu0 0
      %2937 = vmatmul.mubr.bf16.gmra.mrb[0].mxu0 %v2752
      %v2938 = vpop.f32.mrb[0].mxu0
      %v2939 = vadd.f32 %v2661, %v2938
      %v2940 = vpop.f32.mrb[0].mxu0
      %v2941 = vadd.f32 %v2665, %v2940
      %v2942 = vpop.f32.mrb[0].mxu0
      %v2943 = vadd.f32 %v2661, %v2942
      %v2944 = vpop.f32.mrb[0].mxu0
      %v2945 = vadd.f32 %v2665, %v2944
      %2946 = vdwg.mxu0
      %2947 = vmatprep.subr.bf16.mxu0 0
      %2948 = vmatpush1.bf16.msra.mxu0 %v2695
      %2949 = vmatprep.subr.bf16.mxu0 0
      %2950 = vmatpush1.bf16.msra.mxu0 %v2698
      %2951 = vmatprep.subr.bf16.mxu0 0
      %2952 = vmatpush1.bf16.msra.mxu0 0
      %2953 = vmatprep.subr.bf16.mxu0 0
      %2954 = vmatpush1.bf16.msra.mxu0 0
      %2955 = vmatprep.subr.bf16.mxu0 0
      %2956 = vmatpush1.bf16.msra.mxu0 0
      %2957 = vmatprep.subr.bf16.mxu0 0
      %2958 = vmatpush1.bf16.msra.mxu0 0
      %2959 = vmatprep.subr.bf16.mxu0 0
      %2960 = vmatpush1.bf16.msra.mxu0 0
      %2961 = vmatprep.subr.bf16.mxu0 0
      %2962 = vmatpush1.bf16.msra.mxu0 0
      %2963 = vmatprep.subr.bf16.mxu0 0
      %2964 = vmatpush1.bf16.msra.mxu0 0
      %2965 = vmatprep.subr.bf16.mxu0 0
      %2966 = vmatpush1.bf16.msra.mxu0 0
      %2967 = vmatprep.subr.bf16.mxu0 0
      %2968 = vmatpush1.bf16.msra.mxu0 0
      %2969 = vmatprep.subr.bf16.mxu0 0
      %2970 = vmatpush1.bf16.msra.mxu0 0
      %2971 = vmatprep.subr.bf16.mxu0 0
      %2972 = vmatpush1.bf16.msra.mxu0 0
      %2973 = vmatprep.subr.bf16.mxu0 0
      %2974 = vmatpush1.bf16.msra.mxu0 0
      %2975 = vmatprep.subr.bf16.mxu0 0
      %2976 = vmatpush1.bf16.msra.mxu0 0
      %2977 = vmatprep.subr.bf16.mxu0 0
      %2978 = vmatpush1.bf16.msra.mxu0 0
      %2979 = vmatprep.mubr.bf16.mxu0 0
      %2980 = vmatmul.mubr.bf16.gmra.mrb[0].mxu0 %v2707
      %v2981 = vpop.f32.mrb[0].mxu0
      %v2982 = vadd.f32 %v2669, %v2981
      %v2983 = vpop.f32.mrb[0].mxu0
      %v2984 = vpop.f32.mrb[0].mxu0
      %v2985 = vadd.f32 %v2669, %v2984
      %v2986 = vpop.f32.mrb[0].mxu0
      %2987 = vmatprep.mubr.bf16.mxu0 0
      %2988 = vmatmul.mubr.bf16.gmra.mrb[0].mxu0 %v2710
      %v2989 = vpop.f32.mrb[0].mxu0
      %v2990 = vadd.f32 %v2669, %v2989
      %v2991 = vpop.f32.mrb[0].mxu0
      %v2992 = vpop.f32.mrb[0].mxu0
      %v2993 = vadd.f32 %v2669, %v2992
      %v2994 = vpop.f32.mrb[0].mxu0
      %2995 = vmatprep.mubr.bf16.mxu0 0
      %2996 = vmatmul.mubr.bf16.gmra.mrb[0].mxu0 %v2713
      %v2997 = vpop.f32.mrb[0].mxu0
      %v2998 = vadd.f32 %v2669, %v2997
      %v2999 = vpop.f32.mrb[0].mxu0
      %v3000 = vpop.f32.mrb[0].mxu0
      %v3001 = vadd.f32 %v2669, %v3000
      %v3002 = vpop.f32.mrb[0].mxu0
      %3003 = vmatprep.mubr.bf16.mxu0 0
      %3004 = vmatmul.mubr.bf16.gmra.mrb[0].mxu0 %v2716
      %v3005 = vpop.f32.mrb[0].mxu0
      %v3006 = vadd.f32 %v2669, %v3005
      %v3007 = vpop.f32.mrb[0].mxu0
      %v3008 = vpop.f32.mrb[0].mxu0
      %v3009 = vadd.f32 %v2669, %v3008
      %v3010 = vpop.f32.mrb[0].mxu0
      %3011 = vmatprep.mubr.bf16.mxu0 0
      %3012 = vmatmul.mubr.bf16.gmra.mrb[0].mxu0 %v2719
      %v3013 = vpop.f32.mrb[0].mxu0
      %v3014 = vadd.f32 %v2669, %v3013
      %v3015 = vpop.f32.mrb[0].mxu0
      %v3016 = vpop.f32.mrb[0].mxu0
      %v3017 = vadd.f32 %v2669, %v3016
      %v3018 = vpop.f32.mrb[0].mxu0
      %3019 = vmatprep.mubr.bf16.mxu0 0
      %3020 = vmatmul.mubr.bf16.gmra.mrb[0].mxu0 %v2722
      %v3021 = vpop.f32.mrb[0].mxu0
      %v3022 = vadd.f32 %v2669, %v3021
      %v3023 = vpop.f32.mrb[0].mxu0
      %v3024 = vpop.f32.mrb[0].mxu0
      %v3025 = vadd.f32 %v2669, %v3024
      %v3026 = vpop.f32.mrb[0].mxu0
      %3027 = vmatprep.mubr.bf16.mxu0 0
      %3028 = vmatmul.mubr.bf16.gmra.mrb[0].mxu0 %v2725
      %v3029 = vpop.f32.mrb[0].mxu0
      %v3030 = vadd.f32 %v2669, %v3029
      %v3031 = vpop.f32.mrb[0].mxu0
      %v3032 = vpop.f32.mrb[0].mxu0
      %v3033 = vadd.f32 %v2669, %v3032
      %v3034 = vpop.f32.mrb[0].mxu0
      %3035 = vmatprep.mubr.bf16.mxu0 0
      %3036 = vmatmul.mubr.bf16.gmra.mrb[0].mxu0 %v2728
      %v3037 = vpop.f32.mrb[0].mxu0
      %v3038 = vadd.f32 %v2669, %v3037
      %v3039 = vpop.f32.mrb[0].mxu0
      %v3040 = vpop.f32.mrb[0].mxu0
      %v3041 = vadd.f32 %v2669, %v3040
      %v3042 = vpop.f32.mrb[0].mxu0
      %3043 = vmatprep.mubr.bf16.mxu0 0
      %3044 = vmatmul.mubr.bf16.gmra.mrb[0].mxu0 %v2731
      %v3045 = vpop.f32.mrb[0].mxu0
      %v3046 = vadd.f32 %v2669, %v3045
      %v3047 = vpop.f32.mrb[0].mxu0
      %v3048 = vpop.f32.mrb[0].mxu0
      %v3049 = vadd.f32 %v2669, %v3048
      %v3050 = vpop.f32.mrb[0].mxu0
      %3051 = vmatprep.mubr.bf16.mxu0 0
      %3052 = vmatmul.mubr.bf16.gmra.mrb[0].mxu0 %v2734
      %v3053 = vpop.f32.mrb[0].mxu0
      %v3054 = vadd.f32 %v2669, %v3053
      %v3055 = vpop.f32.mrb[0].mxu0
      %v3056 = vpop.f32.mrb[0].mxu0
      %v3057 = vadd.f32 %v2669, %v3056
      %v3058 = vpop.f32.mrb[0].mxu0
      %3059 = vmatprep.mubr.bf16.mxu0 0
      %3060 = vmatmul.mubr.bf16.gmra.mrb[0].mxu0 %v2737
      %v3061 = vpop.f32.mrb[0].mxu0
      %v3062 = vadd.f32 %v2669, %v3061
      %v3063 = vpop.f32.mrb[0].mxu0
      %v3064 = vpop.f32.mrb[0].mxu0
      %v3065 = vadd.f32 %v2669, %v3064
      %v3066 = vpop.f32.mrb[0].mxu0
      %3067 = vmatprep.mubr.bf16.mxu0 0
      %3068 = vmatmul.mubr.bf16.gmra.mrb[0].mxu0 %v2740
      %v3069 = vpop.f32.mrb[0].mxu0
      %v3070 = vadd.f32 %v2669, %v3069
      %v3071 = vpop.f32.mrb[0].mxu0
      %v3072 = vpop.f32.mrb[0].mxu0
      %v3073 = vadd.f32 %v2669, %v3072
      %v3074 = vpop.f32.mrb[0].mxu0
      %3075 = vmatprep.mubr.bf16.mxu0 0
      %3076 = vmatmul.mubr.bf16.gmra.mrb[0].mxu0 %v2743
      %v3077 = vpop.f32.mrb[0].mxu0
      %v3078 = vadd.f32 %v2669, %v3077
      %v3079 = vpop.f32.mrb[0].mxu0
      %v3080 = vpop.f32.mrb[0].mxu0
      %v3081 = vadd.f32 %v2669, %v3080
      %v3082 = vpop.f32.mrb[0].mxu0
      %3083 = vmatprep.mubr.bf16.mxu0 0
      %3084 = vmatmul.mubr.bf16.gmra.mrb[0].mxu0 %v2746
      %v3085 = vpop.f32.mrb[0].mxu0
      %v3086 = vadd.f32 %v2669, %v3085
      %v3087 = vpop.f32.mrb[0].mxu0
      %v3088 = vpop.f32.mrb[0].mxu0
      %v3089 = vadd.f32 %v2669, %v3088
      %v3090 = vpop.f32.mrb[0].mxu0
      %3091 = vmatprep.mubr.bf16.mxu0 0
      %3092 = vmatmul.mubr.bf16.gmra.mrb[0].mxu0 %v2749
      %v3093 = vpop.f32.mrb[0].mxu0
      %v3094 = vadd.f32 %v2669, %v3093
      %v3095 = vpop.f32.mrb[0].mxu0
      %v3096 = vpop.f32.mrb[0].mxu0
      %v3097 = vadd.f32 %v2669, %v3096
      %v3098 = vpop.f32.mrb[0].mxu0
      %3099 = vmatprep.mubr.bf16.mxu0 0
      %3100 = vmatmul.mubr.bf16.gmra.mrb[0].mxu0 %v2752
      %v3101 = vpop.f32.mrb[0].mxu0
      %v3102 = vadd.f32 %v2669, %v3101
      %v3103 = vpop.f32.mrb[0].mxu0
      %v3104 = vpop.f32.mrb[0].mxu0
      %v3105 = vadd.f32 %v2669, %v3104
      %v3106 = vpop.f32.mrb[0].mxu0
      %3107 = vdwg.mxu0
      %3108 = vxpose.xlu0.b32.start [1/16] %v2789, 128
      %3109 = vxpose.xlu0.b32.cont [2/16] %v2793, 128
      %3110 = vxpose.xlu0.b32.cont [3/16] %v2799, 128
      %3111 = vxpose.xlu0.b32.cont [4/16] %v2803, 128
      %3112 = vxpose.xlu0.b32.cont [5/16] %v2809, 128
      %3113 = vxpose.xlu0.b32.cont [6/16] %v2813, 128
      %3114 = vxpose.xlu0.b32.cont [7/16] %v2819, 128
      %3115 = vxpose.xlu0.b32.cont [8/16] %v2823, 128
      %3116 = vxpose.xlu0.b32.cont [9/16] %v2829, 128
      %3117 = vxpose.xlu0.b32.cont [10/16] %v2833, 128
      %3118 = vxpose.xlu0.b32.cont [11/16] %v2839, 128
      %3119 = vxpose.xlu0.b32.cont [12/16] %v2843, 128
      %3120 = vxpose.xlu0.b32.cont [13/16] %v2849, 128
      %3121 = vxpose.xlu0.b32.cont [14/16] %v2853, 128
      %3122 = vxpose.xlu0.b32.cont [15/16] %v2859, 128
      %3123 = vxpose.xlu0.b32.end [16/16] %v2863, 128
      %v3124 = vpop.trf.xlu0
      %v3125 = vpop.trf.xlu0
      %v3126 = vpop.trf.xlu0
      %v3127 = vpop.trf.xlu0
      %v3128 = vpop.trf.xlu0
      %v3129 = vpop.trf.xlu0
      %v3130 = vpop.trf.xlu0
      %v3131 = vpop.trf.xlu0
      %v3132 = vpop.trf.xlu0
      %v3133 = vpop.trf.xlu0
      %v3134 = vpop.trf.xlu0
      %v3135 = vpop.trf.xlu0
      %v3136 = vpop.trf.xlu0
      %v3137 = vpop.trf.xlu0
      %v3138 = vpop.trf.xlu0
      %v3139 = vpop.trf.xlu0
      %3140 = vxpose.xlu0.b32.start [1/16] %v2869, 128
      %3141 = vxpose.xlu0.b32.cont [2/16] %v2873, 128
      %3142 = vxpose.xlu0.b32.cont [3/16] %v2879, 128
      %3143 = vxpose.xlu0.b32.cont [4/16] %v2883, 128
      %3144 = vxpose.xlu0.b32.cont [5/16] %v2889, 128
      %3145 = vxpose.xlu0.b32.cont [6/16] %v2893, 128
      %3146 = vxpose.xlu0.b32.cont [7/16] %v2899, 128
      %3147 = vxpose.xlu0.b32.cont [8/16] %v2903, 128
      %3148 = vxpose.xlu0.b32.cont [9/16] %v2909, 128
      %3149 = vxpose.xlu0.b32.cont [10/16] %v2913, 128
      %3150 = vxpose.xlu0.b32.cont [11/16] %v2919, 128
      %3151 = vxpose.xlu0.b32.cont [12/16] %v2923, 128
      %3152 = vxpose.xlu0.b32.cont [13/16] %v2929, 128
      %3153 = vxpose.xlu0.b32.cont [14/16] %v2933, 128
      %3154 = vxpose.xlu0.b32.cont [15/16] %v2939, 128
      %3155 = vxpose.xlu0.b32.end [16/16] %v2943, 128
      %v3156 = vpop.trf.xlu0
      %v3157 = vpop.trf.xlu0
      %v3158 = vpop.trf.xlu0
      %v3159 = vpop.trf.xlu0
      %v3160 = vpop.trf.xlu0
      %v3161 = vpop.trf.xlu0
      %v3162 = vpop.trf.xlu0
      %v3163 = vpop.trf.xlu0
      %v3164 = vpop.trf.xlu0
      %v3165 = vpop.trf.xlu0
      %v3166 = vpop.trf.xlu0
      %v3167 = vpop.trf.xlu0
      %v3168 = vpop.trf.xlu0
      %v3169 = vpop.trf.xlu0
      %v3170 = vpop.trf.xlu0
      %v3171 = vpop.trf.xlu0
      %3172 = vmatprep.subr.mxu0 %v2982
      %3173 = vmatpush1.msra.mxu0 %v2791
      %3174 = vmatprep.subr.mxu0 %v2985
      %3175 = vmatpush1.msra.mxu0 %v2795
      %3176 = vmatprep.subr.mxu0 %v2990
      %3177 = vmatpush1.msra.mxu0 %v2801
      %3178 = vmatprep.subr.mxu0 %v2993
      %3179 = vmatpush1.msra.mxu0 %v2805
      %3180 = vmatprep.subr.mxu0 %v2998
      %3181 = vmatpush1.msra.mxu0 %v2811
      %3182 = vmatprep.subr.mxu0 %v3001
      %3183 = vmatpush1.msra.mxu0 %v2815
      %3184 = vmatprep.subr.mxu0 %v3006
      %3185 = vmatpush1.msra.mxu0 %v2821
      %3186 = vmatprep.subr.mxu0 %v3009
      %3187 = vmatpush1.msra.mxu0 %v2825
      %3188 = vmatprep.subr.mxu0 %v3014
      %3189 = vmatpush1.msra.mxu0 %v2831
      %3190 = vmatprep.subr.mxu0 %v3017
      %3191 = vmatpush1.msra.mxu0 %v2835
      %3192 = vmatprep.subr.mxu0 %v3022
      %3193 = vmatpush1.msra.mxu0 %v2841
      %3194 = vmatprep.subr.mxu0 %v3025
      %3195 = vmatpush1.msra.mxu0 %v2845
      %3196 = vmatprep.subr.mxu0 %v3030
      %3197 = vmatpush1.msra.mxu0 %v2851
      %3198 = vmatprep.subr.mxu0 %v3033
      %3199 = vmatpush1.msra.mxu0 %v2855
      %3200 = vmatprep.subr.mxu0 %v3038
      %3201 = vmatpush1.msra.mxu0 %v2861
      %3202 = vmatprep.subr.mxu0 %v3041
      %3203 = vmatpush1.msra.mxu0 %v2865
      %3204 = vmatprep.subr.mxu0 %v3046
      %3205 = vmatpush1.msra.mxu0 %v2871
      %3206 = vmatprep.subr.mxu0 %v3049
      %3207 = vmatpush1.msra.mxu0 %v2875
      %3208 = vmatprep.subr.mxu0 %v3054
      %3209 = vmatpush1.msra.mxu0 %v2881
      %3210 = vmatprep.subr.mxu0 %v3057
      %3211 = vmatpush1.msra.mxu0 %v2885
      %3212 = vmatprep.subr.mxu0 %v3062
      %3213 = vmatpush1.msra.mxu0 %v2891
      %3214 = vmatprep.subr.mxu0 %v3065
      %3215 = vmatpush1.msra.mxu0 %v2895
      %3216 = vmatprep.subr.mxu0 %v3070
      %3217 = vmatpush1.msra.mxu0 %v2901
      %3218 = vmatprep.subr.mxu0 %v3073
      %3219 = vmatpush1.msra.mxu0 %v2905
      %3220 = vmatprep.subr.mxu0 %v3078
      %3221 = vmatpush1.msra.mxu0 %v2911
      %3222 = vmatprep.subr.mxu0 %v3081
      %3223 = vmatpush1.msra.mxu0 %v2915
      %3224 = vmatprep.subr.mxu0 %v3086
      %3225 = vmatpush1.msra.mxu0 %v2921
      %3226 = vmatprep.subr.mxu0 %v3089
      %3227 = vmatpush1.msra.mxu0 %v2925
      %3228 = vmatprep.subr.mxu0 %v3094
      %3229 = vmatpush1.msra.mxu0 %v2931
      %3230 = vmatprep.subr.mxu0 %v3097
      %3231 = vmatpush1.msra.mxu0 %v2935
      %3232 = vmatprep.subr.mxu0 %v3102
      %3233 = vmatpush1.msra.mxu0 %v2941
      %3234 = vmatprep.subr.mxu0 %v3105
      %3235 = vmatpush1.msra.mxu0 %v2945
      %3236 = vmatprep.mubr.f32.mxu0 %v3156
      %3237 = vmatmul.mubr.f32.gmra.mrb[0].mxu0 %v3124
      %v3238 = vpop.f32.mrb[0].mxu0
      %v3239 = vadd.f32 0.0, %v3238
      %v3240 = vpop.f32.mrb[0].mxu0
      %v3241 = vadd.f32 0.0, %v3240
      %3242 = vmatprep.mubr.f32.mxu0 %v3157
      %3243 = vmatmul.mubr.f32.gmra.mrb[0].mxu0 %v3125
      %v3244 = vpop.f32.mrb[0].mxu0
      %v3245 = vadd.f32 0.0, %v3244
      %v3246 = vpop.f32.mrb[0].mxu0
      %v3247 = vadd.f32 0.0, %v3246
      %3248 = vmatprep.mubr.f32.mxu0 %v3158
      %3249 = vmatmul.mubr.f32.gmra.mrb[0].mxu0 %v3126
      %v3250 = vpop.f32.mrb[0].mxu0
      %v3251 = vadd.f32 0.0, %v3250
      %v3252 = vpop.f32.mrb[0].mxu0
      %v3253 = vadd.f32 0.0, %v3252
      %3254 = vmatprep.mubr.f32.mxu0 %v3159
      %3255 = vmatmul.mubr.f32.gmra.mrb[0].mxu0 %v3127
      %v3256 = vpop.f32.mrb[0].mxu0
      %v3257 = vadd.f32 0.0, %v3256
      %v3258 = vpop.f32.mrb[0].mxu0
      %v3259 = vadd.f32 0.0, %v3258
      %3260 = vmatprep.mubr.f32.mxu0 %v3160
      %3261 = vmatmul.mubr.f32.gmra.mrb[0].mxu0 %v3128
      %v3262 = vpop.f32.mrb[0].mxu0
      %v3263 = vadd.f32 0.0, %v3262
      %v3264 = vpop.f32.mrb[0].mxu0
      %v3265 = vadd.f32 0.0, %v3264
      %3266 = vmatprep.mubr.f32.mxu0 %v3161
      %3267 = vmatmul.mubr.f32.gmra.mrb[0].mxu0 %v3129
      %v3268 = vpop.f32.mrb[0].mxu0
      %v3269 = vadd.f32 0.0, %v3268
      %v3270 = vpop.f32.mrb[0].mxu0
      %v3271 = vadd.f32 0.0, %v3270
      %3272 = vmatprep.mubr.f32.mxu0 %v3162
      %3273 = vmatmul.mubr.f32.gmra.mrb[0].mxu0 %v3130
      %v3274 = vpop.f32.mrb[0].mxu0
      %v3275 = vadd.f32 0.0, %v3274
      %v3276 = vpop.f32.mrb[0].mxu0
      %v3277 = vadd.f32 0.0, %v3276
      %3278 = vmatprep.mubr.f32.mxu0 %v3163
      %3279 = vmatmul.mubr.f32.gmra.mrb[0].mxu0 %v3131
      %v3280 = vpop.f32.mrb[0].mxu0
      %v3281 = vadd.f32 0.0, %v3280
      %v3282 = vpop.f32.mrb[0].mxu0
      %v3283 = vadd.f32 0.0, %v3282
      %3284 = vmatprep.mubr.f32.mxu0 %v3164
      %3285 = vmatmul.mubr.f32.gmra.mrb[0].mxu0 %v3132
      %v3286 = vpop.f32.mrb[0].mxu0
      %v3287 = vadd.f32 0.0, %v3286
      %v3288 = vpop.f32.mrb[0].mxu0
      %v3289 = vadd.f32 0.0, %v3288
      %3290 = vmatprep.mubr.f32.mxu0 %v3165
      %3291 = vmatmul.mubr.f32.gmra.mrb[0].mxu0 %v3133
      %v3292 = vpop.f32.mrb[0].mxu0
      %v3293 = vadd.f32 0.0, %v3292
      %v3294 = vpop.f32.mrb[0].mxu0
      %v3295 = vadd.f32 0.0, %v3294
      %3296 = vmatprep.mubr.f32.mxu0 %v3166
      %3297 = vmatmul.mubr.f32.gmra.mrb[0].mxu0 %v3134
      %v3298 = vpop.f32.mrb[0].mxu0
      %v3299 = vadd.f32 0.0, %v3298
      %v3300 = vpop.f32.mrb[0].mxu0
      %v3301 = vadd.f32 0.0, %v3300
      %3302 = vmatprep.mubr.f32.mxu0 %v3167
      %3303 = vmatmul.mubr.f32.gmra.mrb[0].mxu0 %v3135
      %v3304 = vpop.f32.mrb[0].mxu0
      %v3305 = vadd.f32 0.0, %v3304
      %v3306 = vpop.f32.mrb[0].mxu0
      %v3307 = vadd.f32 0.0, %v3306
      %3308 = vmatprep.mubr.f32.mxu0 %v3168
      %3309 = vmatmul.mubr.f32.gmra.mrb[0].mxu0 %v3136
      %v3310 = vpop.f32.mrb[0].mxu0
      %v3311 = vadd.f32 0.0, %v3310
      %v3312 = vpop.f32.mrb[0].mxu0
      %v3313 = vadd.f32 0.0, %v3312
      %3314 = vmatprep.mubr.f32.mxu0 %v3169
      %3315 = vmatmul.mubr.f32.gmra.mrb[0].mxu0 %v3137
      %v3316 = vpop.f32.mrb[0].mxu0
      %v3317 = vadd.f32 0.0, %v3316
      %v3318 = vpop.f32.mrb[0].mxu0
      %v3319 = vadd.f32 0.0, %v3318
      %3320 = vmatprep.mubr.f32.mxu0 %v3170
      %3321 = vmatmul.mubr.f32.gmra.mrb[0].mxu0 %v3138
      %v3322 = vpop.f32.mrb[0].mxu0
      %v3323 = vadd.f32 0.0, %v3322
      %v3324 = vpop.f32.mrb[0].mxu0
      %v3325 = vadd.f32 0.0, %v3324
      %3326 = vmatprep.mubr.f32.mxu0 %v3171
      %3327 = vmatmul.mubr.f32.gmra.mrb[0].mxu0 %v3139
      %v3328 = vpop.f32.mrb[0].mxu0
      %v3329 = vadd.f32 0.0, %v3328
      %v3330 = vpop.f32.mrb[0].mxu0
      %v3331 = vadd.f32 0.0, %v3330
      %3332 = vdwg.mxu0
      %v3333 = vmul.f32 %v3239, 0.00390625
      %v3334 = vmul.f32 %v3241, 0.00390625
      %v3335 = vmul.f32 %v3245, 0.00390625
      %v3336 = vmul.f32 %v3247, 0.00390625
      %v3337 = vmul.f32 %v3251, 0.00390625
      %v3338 = vmul.f32 %v3253, 0.00390625
      %v3339 = vmul.f32 %v3257, 0.00390625
      %v3340 = vmul.f32 %v3259, 0.00390625
      %v3341 = vmul.f32 %v3263, 0.00390625
      %v3342 = vmul.f32 %v3265, 0.00390625
      %v3343 = vmul.f32 %v3269, 0.00390625
      %v3344 = vmul.f32 %v3271, 0.00390625
      %v3345 = vmul.f32 %v3275, 0.00390625
      %v3346 = vmul.f32 %v3277, 0.00390625
      %v3347 = vmul.f32 %v3281, 0.00390625
      %v3348 = vmul.f32 %v3283, 0.00390625
      %v3349 = vmul.f32 %v3287, 0.00390625
      %v3350 = vmul.f32 %v3289, 0.00390625
      %v3351 = vmul.f32 %v3293, 0.00390625
      %v3352 = vmul.f32 %v3295, 0.00390625
      %v3353 = vmul.f32 %v3299, 0.00390625
      %v3354 = vmul.f32 %v3301, 0.00390625
      %v3355 = vmul.f32 %v3305, 0.00390625
      %v3356 = vmul.f32 %v3307, 0.00390625
      %v3357 = vmul.f32 %v3311, 0.00390625
      %v3358 = vmul.f32 %v3313, 0.00390625
      %v3359 = vmul.f32 %v3317, 0.00390625
      %v3360 = vmul.f32 %v3319, 0.00390625
      %v3361 = vmul.f32 %v3323, 0.00390625
      %v3362 = vmul.f32 %v3325, 0.00390625
      %v3363 = vmul.f32 %v3329, 0.00390625
      %v3364 = vmul.f32 %v3331, 0.00390625
      %v3365 = vmul.f32 %v3333, %v3333
      %v3366 = vmul.f32 %v3334, %v3334
      %v3367 = vmul.f32 %v3335, %v3335
      %v3368 = vmul.f32 %v3336, %v3336
      %v3369 = vmul.f32 %v3337, %v3337
      %v3370 = vmul.f32 %v3338, %v3338
      %v3371 = vmul.f32 %v3339, %v3339
      %v3372 = vmul.f32 %v3340, %v3340
      %v3373 = vmul.f32 %v3341, %v3341
      %v3374 = vmul.f32 %v3342, %v3342
      %v3375 = vmul.f32 %v3343, %v3343
      %v3376 = vmul.f32 %v3344, %v3344
      %v3377 = vmul.f32 %v3345, %v3345
      %v3378 = vmul.f32 %v3346, %v3346
      %v3379 = vmul.f32 %v3347, %v3347
      %v3380 = vmul.f32 %v3348, %v3348
      %v3381 = vmul.f32 %v3349, %v3349
      %v3382 = vmul.f32 %v3350, %v3350
      %v3383 = vmul.f32 %v3351, %v3351
      %v3384 = vmul.f32 %v3352, %v3352
      %v3385 = vmul.f32 %v3353, %v3353
      %v3386 = vmul.f32 %v3354, %v3354
      %v3387 = vmul.f32 %v3355, %v3355
      %v3388 = vmul.f32 %v3356, %v3356
      %v3389 = vmul.f32 %v3357, %v3357
      %v3390 = vmul.f32 %v3358, %v3358
      %v3391 = vmul.f32 %v3359, %v3359
      %v3392 = vmul.f32 %v3360, %v3360
      %v3393 = vmul.f32 %v3361, %v3361
      %v3394 = vmul.f32 %v3362, %v3362
      %v3395 = vmul.f32 %v3363, %v3363
      %v3396 = vmul.f32 %v3364, %v3364
      %v3397 = vadd.f32 %v3365, %v3366
      %3398 = vadd.xlane.f32.xlu0 %v3397
      %v3399 = vpop.xlane.xlu0 %3398
      %v3400 = vadd.f32 %v3367, %v3368
      %3401 = vadd.xlane.f32.xlu0 %v3400
      %v3402 = vpop.xlane.xlu0 %3401
      %v3403 = vadd.f32 %v3369, %v3370
      %3404 = vadd.xlane.f32.xlu0 %v3403
      %v3405 = vpop.xlane.xlu0 %3404
      %v3406 = vadd.f32 %v3371, %v3372
      %3407 = vadd.xlane.f32.xlu0 %v3406
      %v3408 = vpop.xlane.xlu0 %3407
      %v3409 = vadd.f32 %v3373, %v3374
      %3410 = vadd.xlane.f32.xlu0 %v3409
      %v3411 = vpop.xlane.xlu0 %3410
      %v3412 = vadd.f32 %v3375, %v3376
      %3413 = vadd.xlane.f32.xlu0 %v3412
      %v3414 = vpop.xlane.xlu0 %3413
      %v3415 = vadd.f32 %v3377, %v3378
      %3416 = vadd.xlane.f32.xlu0 %v3415
      %v3417 = vpop.xlane.xlu0 %3416
      %v3418 = vadd.f32 %v3379, %v3380
      %3419 = vadd.xlane.f32.xlu0 %v3418
      %v3420 = vpop.xlane.xlu0 %3419
      %v3421 = vadd.f32 %v3381, %v3382
      %3422 = vadd.xlane.f32.xlu0 %v3421
      %v3423 = vpop.xlane.xlu0 %3422
      %v3424 = vadd.f32 %v3383, %v3384
      %3425 = vadd.xlane.f32.xlu0 %v3424
      %v3426 = vpop.xlane.xlu0 %3425
      %v3427 = vadd.f32 %v3385, %v3386
      %3428 = vadd.xlane.f32.xlu0 %v3427
      %v3429 = vpop.xlane.xlu0 %3428
      %v3430 = vadd.f32 %v3387, %v3388
      %3431 = vadd.xlane.f32.xlu0 %v3430
      %v3432 = vpop.xlane.xlu0 %3431
      %v3433 = vadd.f32 %v3389, %v3390
      %3434 = vadd.xlane.f32.xlu0 %v3433
      %v3435 = vpop.xlane.xlu0 %3434
      %v3436 = vadd.f32 %v3391, %v3392
      %3437 = vadd.xlane.f32.xlu0 %v3436
      %v3438 = vpop.xlane.xlu0 %3437
      %v3439 = vadd.f32 %v3393, %v3394
      %3440 = vadd.xlane.f32.xlu0 %v3439
      %v3441 = vpop.xlane.xlu0 %3440
      %v3442 = vadd.f32 %v3395, %v3396
      %3443 = vadd.xlane.f32.xlu0 %v3442
      %v3444 = vpop.xlane.xlu0 %3443
      %v3445 = vadd.f32 %v3399, 1e-24
      %v3446 = vadd.f32 %v3402, 1e-24
      %v3447 = vadd.f32 %v3405, 1e-24
      %v3448 = vadd.f32 %v3408, 1e-24
      %v3449 = vadd.f32 %v3411, 1e-24
      %v3450 = vadd.f32 %v3414, 1e-24
      %v3451 = vadd.f32 %v3417, 1e-24
      %v3452 = vadd.f32 %v3420, 1e-24
      %v3453 = vadd.f32 %v3423, 1e-24
      %v3454 = vadd.f32 %v3426, 1e-24
      %v3455 = vadd.f32 %v3429, 1e-24
      %v3456 = vadd.f32 %v3432, 1e-24
      %v3457 = vadd.f32 %v3435, 1e-24
      %v3458 = vadd.f32 %v3438, 1e-24
      %v3459 = vadd.f32 %v3441, 1e-24
      %v3460 = vadd.f32 %v3444, 1e-24
      %v3461 = vrsqrt.pop %v3445
      %v3462 = vrsqrt.pop %v3446
      %v3463 = vrsqrt.pop %v3447
      %v3464 = vrsqrt.pop %v3448
      %v3465 = vrsqrt.pop %v3449
      %v3466 = vrsqrt.pop %v3450
      %v3467 = vrsqrt.pop %v3451
      %v3468 = vrsqrt.pop %v3452
      %v3469 = vrsqrt.pop %v3453
      %v3470 = vrsqrt.pop %v3454
      %v3471 = vrsqrt.pop %v3455
      %v3472 = vrsqrt.pop %v3456
      %v3473 = vrsqrt.pop %v3457
      %v3474 = vrsqrt.pop %v3458
      %v3475 = vrsqrt.pop %v3459
      %v3476 = vrsqrt.pop %v3460
      %v3477 = vmul.f32 %v3333, %v3461
      %v3478 = vmul.f32 %v3334, %v3461
      %v3479 = vmul.f32 %v3335, %v3462
      %v3480 = vmul.f32 %v3336, %v3462
      %v3481 = vmul.f32 %v3337, %v3463
      %v3482 = vmul.f32 %v3338, %v3463
      %v3483 = vmul.f32 %v3339, %v3464
      %v3484 = vmul.f32 %v3340, %v3464
      %v3485 = vmul.f32 %v3341, %v3465
      %v3486 = vmul.f32 %v3342, %v3465
      %v3487 = vmul.f32 %v3343, %v3466
      %v3488 = vmul.f32 %v3344, %v3466
      %v3489 = vmul.f32 %v3345, %v3467
      %v3490 = vmul.f32 %v3346, %v3467
      %v3491 = vmul.f32 %v3347, %v3468
      %v3492 = vmul.f32 %v3348, %v3468
      %v3493 = vmul.f32 %v3349, %v3469
      %v3494 = vmul.f32 %v3350, %v3469
      %v3495 = vmul.f32 %v3351, %v3470
      %v3496 = vmul.f32 %v3352, %v3470
      %v3497 = vmul.f32 %v3353, %v3471
      %v3498 = vmul.f32 %v3354, %v3471
      %v3499 = vmul.f32 %v3355, %v3472
      %v3500 = vmul.f32 %v3356, %v3472
      %v3501 = vmul.f32 %v3357, %v3473
      %v3502 = vmul.f32 %v3358, %v3473
      %v3503 = vmul.f32 %v3359, %v3474
      %v3504 = vmul.f32 %v3360, %v3474
      %v3505 = vmul.f32 %v3361, %v3475
      %v3506 = vmul.f32 %v3362, %v3475
      %v3507 = vmul.f32 %v3363, %v3476
      %v3508 = vmul.f32 %v3364, %v3476
      %3509 = vmatprep.subr.mxu0 %v3478
      %3510 = vmatpush1.xpose.msra.mxu0 %v3477
      %3511 = vmatprep.subr.mxu0 %v3480
      %3512 = vmatpush1.xpose.msra.mxu0 %v3479
      %3513 = vmatprep.subr.mxu0 %v3482
      %3514 = vmatpush1.xpose.msra.mxu0 %v3481
      %3515 = vmatprep.subr.mxu0 %v3484
      %3516 = vmatpush1.xpose.msra.mxu0 %v3483
      %3517 = vmatprep.subr.mxu0 %v3486
      %3518 = vmatpush1.xpose.msra.mxu0 %v3485
      %3519 = vmatprep.subr.mxu0 %v3488
      %3520 = vmatpush1.xpose.msra.mxu0 %v3487
      %3521 = vmatprep.subr.mxu0 %v3490
      %3522 = vmatpush1.xpose.msra.mxu0 %v3489
      %3523 = vmatprep.subr.mxu0 %v3492
      %3524 = vmatpush1.xpose.msra.mxu0 %v3491
      %3525 = vmatprep.subr.mxu0 %v3494
      %3526 = vmatpush1.xpose.msra.mxu0 %v3493
      %3527 = vmatprep.subr.mxu0 %v3496
      %3528 = vmatpush1.xpose.msra.mxu0 %v3495
      %3529 = vmatprep.subr.mxu0 %v3498
      %3530 = vmatpush1.xpose.msra.mxu0 %v3497
      %3531 = vmatprep.subr.mxu0 %v3500
      %3532 = vmatpush1.xpose.msra.mxu0 %v3499
      %3533 = vmatprep.subr.mxu0 %v3502
      %3534 = vmatpush1.xpose.msra.mxu0 %v3501
      %3535 = vmatprep.subr.mxu0 %v3504
      %3536 = vmatpush1.xpose.msra.mxu0 %v3503
      %3537 = vmatprep.subr.mxu0 %v3506
      %3538 = vmatpush1.xpose.msra.mxu0 %v3505
      %3539 = vmatprep.subr.mxu0 %v3508
      %3540 = vmatpush1.xpose.msra.mxu0 %v3507
      %3541 = vmatprep.subr.mxu0 0.0
      %3542 = vmatpush1.xpose.msra.mxu0 0.0
      %3543 = vmatprep.subr.mxu0 0.0
      %3544 = vmatpush1.xpose.msra.mxu0 0.0
      %3545 = vmatprep.subr.mxu0 0.0
      %3546 = vmatpush1.xpose.msra.mxu0 0.0
      %3547 = vmatprep.subr.mxu0 0.0
      %3548 = vmatpush1.xpose.msra.mxu0 0.0
      %3549 = vmatprep.subr.mxu0 0.0
      %3550 = vmatpush1.xpose.msra.mxu0 0.0
      %3551 = vmatprep.subr.mxu0 0.0
      %3552 = vmatpush1.xpose.msra.mxu0 0.0
      %3553 = vmatprep.subr.mxu0 0.0
      %3554 = vmatpush1.xpose.msra.mxu0 0.0
      %3555 = vmatprep.subr.mxu0 0.0
      %3556 = vmatpush1.xpose.msra.mxu0 0.0
      %3557 = vmatprep.subr.mxu0 0.0
      %3558 = vmatpush1.xpose.msra.mxu0 0.0
      %3559 = vmatprep.subr.mxu0 0.0
      %3560 = vmatpush1.xpose.msra.mxu0 0.0
      %3561 = vmatprep.subr.mxu0 0.0
      %3562 = vmatpush1.xpose.msra.mxu0 0.0
      %3563 = vmatprep.subr.mxu0 0.0
      %3564 = vmatpush1.xpose.msra.mxu0 0.0
      %3565 = vmatprep.subr.mxu0 0.0
      %3566 = vmatpush1.xpose.msra.mxu0 0.0
      %3567 = vmatprep.subr.mxu0 0.0
      %3568 = vmatpush1.xpose.msra.mxu0 0.0
      %3569 = vmatprep.subr.mxu0 0.0
      %3570 = vmatpush1.xpose.msra.mxu0 0.0
      %3571 = vmatprep.subr.mxu0 0.0
      %3572 = vmatpush1.xpose.msra.mxu0 0.0
      %3573 = vmatprep.mubr.f32.mxu0 %v3478
      %3574 = vmatmul.mubr.f32.gmra.mrb[0].mxu0 %v3477
      %v3575 = vpop.f32.mrb[0].mxu0
      %v3576 = vadd.f32 0.0, %v3575
      %v3577 = vpop.f32.mrb[0].mxu0
      %3578 = vmatprep.mubr.f32.mxu0 %v3480
      %3579 = vmatmul.mubr.f32.gmra.mrb[0].mxu0 %v3479
      %v3580 = vpop.f32.mrb[0].mxu0
      %v3581 = vadd.f32 0.0, %v3580
      %v3582 = vpop.f32.mrb[0].mxu0
      %3583 = vmatprep.mubr.f32.mxu0 %v3482
      %3584 = vmatmul.mubr.f32.gmra.mrb[0].mxu0 %v3481
      %v3585 = vpop.f32.mrb[0].mxu0
      %v3586 = vadd.f32 0.0, %v3585
      %v3587 = vpop.f32.mrb[0].mxu0
      %3588 = vmatprep.mubr.f32.mxu0 %v3484
      %3589 = vmatmul.mubr.f32.gmra.mrb[0].mxu0 %v3483
      %v3590 = vpop.f32.mrb[0].mxu0
      %v3591 = vadd.f32 0.0, %v3590
      %v3592 = vpop.f32.mrb[0].mxu0
      %3593 = vmatprep.mubr.f32.mxu0 %v3486
      %3594 = vmatmul.mubr.f32.gmra.mrb[0].mxu0 %v3485
      %v3595 = vpop.f32.mrb[0].mxu0
      %v3596 = vadd.f32 0.0, %v3595
      %v3597 = vpop.f32.mrb[0].mxu0
      %3598 = vmatprep.mubr.f32.mxu0 %v3488
      %3599 = vmatmul.mubr.f32.gmra.mrb[0].mxu0 %v3487
      %v3600 = vpop.f32.mrb[0].mxu0
      %v3601 = vadd.f32 0.0, %v3600
      %v3602 = vpop.f32.mrb[0].mxu0
      %3603 = vmatprep.mubr.f32.mxu0 %v3490
      %3604 = vmatmul.mubr.f32.gmra.mrb[0].mxu0 %v3489
      %v3605 = vpop.f32.mrb[0].mxu0
      %v3606 = vadd.f32 0.0, %v3605
      %v3607 = vpop.f32.mrb[0].mxu0
      %3608 = vmatprep.mubr.f32.mxu0 %v3492
      %3609 = vmatmul.mubr.f32.gmra.mrb[0].mxu0 %v3491
      %v3610 = vpop.f32.mrb[0].mxu0
      %v3611 = vadd.f32 0.0, %v3610
      %v3612 = vpop.f32.mrb[0].mxu0
      %3613 = vmatprep.mubr.f32.mxu0 %v3494
      %3614 = vmatmul.mubr.f32.gmra.mrb[0].mxu0 %v3493
      %v3615 = vpop.f32.mrb[0].mxu0
      %v3616 = vadd.f32 0.0, %v3615
      %v3617 = vpop.f32.mrb[0].mxu0
      %3618 = vmatprep.mubr.f32.mxu0 %v3496
      %3619 = vmatmul.mubr.f32.gmra.mrb[0].mxu0 %v3495
      %v3620 = vpop.f32.mrb[0].mxu0
      %v3621 = vadd.f32 0.0, %v3620
      %v3622 = vpop.f32.mrb[0].mxu0
      %3623 = vmatprep.mubr.f32.mxu0 %v3498
      %3624 = vmatmul.mubr.f32.gmra.mrb[0].mxu0 %v3497
      %v3625 = vpop.f32.mrb[0].mxu0
      %v3626 = vadd.f32 0.0, %v3625
      %v3627 = vpop.f32.mrb[0].mxu0
      %3628 = vmatprep.mubr.f32.mxu0 %v3500
      %3629 = vmatmul.mubr.f32.gmra.mrb[0].mxu0 %v3499
      %v3630 = vpop.f32.mrb[0].mxu0
      %v3631 = vadd.f32 0.0, %v3630
      %v3632 = vpop.f32.mrb[0].mxu0
      %3633 = vmatprep.mubr.f32.mxu0 %v3502
      %3634 = vmatmul.mubr.f32.gmra.mrb[0].mxu0 %v3501
      %v3635 = vpop.f32.mrb[0].mxu0
      %v3636 = vadd.f32 0.0, %v3635
      %v3637 = vpop.f32.mrb[0].mxu0
      %3638 = vmatprep.mubr.f32.mxu0 %v3504
      %3639 = vmatmul.mubr.f32.gmra.mrb[0].mxu0 %v3503
      %v3640 = vpop.f32.mrb[0].mxu0
      %v3641 = vadd.f32 0.0, %v3640
      %v3642 = vpop.f32.mrb[0].mxu0
      %3643 = vmatprep.mubr.f32.mxu0 %v3506
      %3644 = vmatmul.mubr.f32.gmra.mrb[0].mxu0 %v3505
      %v3645 = vpop.f32.mrb[0].mxu0
      %v3646 = vadd.f32 0.0, %v3645
      %v3647 = vpop.f32.mrb[0].mxu0
      %3648 = vmatprep.mubr.f32.mxu0 %v3508
      %3649 = vmatmul.mubr.f32.gmra.mrb[0].mxu0 %v3507
      %v3650 = vpop.f32.mrb[0].mxu0
      %v3651 = vadd.f32 0.0, %v3650
      %v3652 = vpop.f32.mrb[0].mxu0
      %3653 = vdwg.mxu0
      %v3654 = vlaneseq
      %v3655 = vand.u32 %v3654, 127
      %vm3656 = vcmp.lt.s32.totalorder %v3655, 84
      %v3657 = vsel %vm3656, %v3576, -inf
      %v3658 = vsel %vm3656, %v3581, -inf
      %v3659 = vsel %vm3656, %v3586, -inf
      %v3660 = vsel %vm3656, %v3591, -inf
      %v3661 = vsel %vm3656, %v3596, -inf
      %v3662 = vsel %vm3656, %v3601, -inf
      %v3663 = vsel %vm3656, %v3606, -inf
      %v3664 = vsel %vm3656, %v3611, -inf
      %v3665 = vsel %vm3656, %v3616, -inf
      %v3666 = vsel %vm3656, %v3621, -inf
      %v3667 = vsel %vm3656, %v3626, -inf
      %v3668 = vsel %vm3656, %v3631, -inf
      %v3669 = vsel %vm3656, %v3636, -inf
      %v3670 = vsel %vm3656, %v3641, -inf
      %v3671 = vsel %vm3656, %v3646, -inf
      %v3672 = vsel %vm3656, %v3651, -inf
      %3673 = vmax.xlane.f32.xlu0 %v3657
      %v3674 = vpop.xlane.xlu0 %3673
      %3675 = vmax.xlane.f32.xlu0 %v3658
      %v3676 = vpop.xlane.xlu0 %3675
      %3677 = vmax.xlane.f32.xlu0 %v3659
      %v3678 = vpop.xlane.xlu0 %3677
      %3679 = vmax.xlane.f32.xlu0 %v3660
      %v3680 = vpop.xlane.xlu0 %3679
      %3681 = vmax.xlane.f32.xlu0 %v3661
      %v3682 = vpop.xlane.xlu0 %3681
      %3683 = vmax.xlane.f32.xlu0 %v3662
      %v3684 = vpop.xlane.xlu0 %3683
      %3685 = vmax.xlane.f32.xlu0 %v3663
      %v3686 = vpop.xlane.xlu0 %3685
      %3687 = vmax.xlane.f32.xlu0 %v3664
      %v3688 = vpop.xlane.xlu0 %3687
      %3689 = vmax.xlane.f32.xlu0 %v3665
      %v3690 = vpop.xlane.xlu0 %3689
      %3691 = vmax.xlane.f32.xlu0 %v3666
      %v3692 = vpop.xlane.xlu0 %3691
      %3693 = vmax.xlane.f32.xlu0 %v3667
      %v3694 = vpop.xlane.xlu0 %3693
      %3695 = vmax.xlane.f32.xlu0 %v3668
      %v3696 = vpop.xlane.xlu0 %3695
      %3697 = vmax.xlane.f32.xlu0 %v3669
      %v3698 = vpop.xlane.xlu0 %3697
      %3699 = vmax.xlane.f32.xlu0 %v3670
      %v3700 = vpop.xlane.xlu0 %3699
      %3701 = vmax.xlane.f32.xlu0 %v3671
      %v3702 = vpop.xlane.xlu0 %3701
      %3703 = vmax.xlane.f32.xlu0 %v3672
      %v3704 = vpop.xlane.xlu0 %3703
      %v3705 = vsub.f32 %v3657, %v3674
      %v3706 = vsub.f32 %v3658, %v3676
      %v3707 = vsub.f32 %v3659, %v3678
      %v3708 = vsub.f32 %v3660, %v3680
      %v3709 = vsub.f32 %v3661, %v3682
      %v3710 = vsub.f32 %v3662, %v3684
      %v3711 = vsub.f32 %v3663, %v3686
      %v3712 = vsub.f32 %v3664, %v3688
      %v3713 = vsub.f32 %v3665, %v3690
      %v3714 = vsub.f32 %v3666, %v3692
      %v3715 = vsub.f32 %v3667, %v3694
      %v3716 = vsub.f32 %v3668, %v3696
      %v3717 = vsub.f32 %v3669, %v3698
      %v3718 = vsub.f32 %v3670, %v3700
      %v3719 = vsub.f32 %v3671, %v3702
      %v3720 = vsub.f32 %v3672, %v3704
      %v3721 = vmul.f32 %v3705, 1.442695
      %v3722 = vpow.pop %v3721
      %v3723 = vmul.f32 %v3706, 1.442695
      %v3724 = vpow.pop %v3723
      %v3725 = vmul.f32 %v3707, 1.442695
      %v3726 = vpow.pop %v3725
      %v3727 = vmul.f32 %v3708, 1.442695
      %v3728 = vpow.pop %v3727
      %v3729 = vmul.f32 %v3709, 1.442695
      %v3730 = vpow.pop %v3729
      %v3731 = vmul.f32 %v3710, 1.442695
      %v3732 = vpow.pop %v3731
      %v3733 = vmul.f32 %v3711, 1.442695
      %v3734 = vpow.pop %v3733
      %v3735 = vmul.f32 %v3712, 1.442695
      %v3736 = vpow.pop %v3735
      %v3737 = vmul.f32 %v3713, 1.442695
      %v3738 = vpow.pop %v3737
      %v3739 = vmul.f32 %v3714, 1.442695
      %v3740 = vpow.pop %v3739
      %v3741 = vmul.f32 %v3715, 1.442695
      %v3742 = vpow.pop %v3741
      %v3743 = vmul.f32 %v3716, 1.442695
      %v3744 = vpow.pop %v3743
      %v3745 = vmul.f32 %v3717, 1.442695
      %v3746 = vpow.pop %v3745
      %v3747 = vmul.f32 %v3718, 1.442695
      %v3748 = vpow.pop %v3747
      %v3749 = vmul.f32 %v3719, 1.442695
      %v3750 = vpow.pop %v3749
      %v3751 = vmul.f32 %v3720, 1.442695
      %v3752 = vpow.pop %v3751
      %3753 = vadd.xlane.f32.xlu0 %v3722
      %v3754 = vpop.xlane.xlu0 %3753
      %3755 = vadd.xlane.f32.xlu0 %v3724
      %v3756 = vpop.xlane.xlu0 %3755
      %3757 = vadd.xlane.f32.xlu0 %v3726
      %v3758 = vpop.xlane.xlu0 %3757
      %3759 = vadd.xlane.f32.xlu0 %v3728
      %v3760 = vpop.xlane.xlu0 %3759
      %3761 = vadd.xlane.f32.xlu0 %v3730
      %v3762 = vpop.xlane.xlu0 %3761
      %3763 = vadd.xlane.f32.xlu0 %v3732
      %v3764 = vpop.xlane.xlu0 %3763
      %3765 = vadd.xlane.f32.xlu0 %v3734
      %v3766 = vpop.xlane.xlu0 %3765
      %3767 = vadd.xlane.f32.xlu0 %v3736
      %v3768 = vpop.xlane.xlu0 %3767
      %3769 = vadd.xlane.f32.xlu0 %v3738
      %v3770 = vpop.xlane.xlu0 %3769
      %3771 = vadd.xlane.f32.xlu0 %v3740
      %v3772 = vpop.xlane.xlu0 %3771
      %3773 = vadd.xlane.f32.xlu0 %v3742
      %v3774 = vpop.xlane.xlu0 %3773
      %3775 = vadd.xlane.f32.xlu0 %v3744
      %v3776 = vpop.xlane.xlu0 %3775
      %3777 = vadd.xlane.f32.xlu0 %v3746
      %v3778 = vpop.xlane.xlu0 %3777
      %3779 = vadd.xlane.f32.xlu0 %v3748
      %v3780 = vpop.xlane.xlu0 %3779
      %3781 = vadd.xlane.f32.xlu0 %v3750
      %v3782 = vpop.xlane.xlu0 %3781
      %3783 = vadd.xlane.f32.xlu0 %v3752
      %v3784 = vpop.xlane.xlu0 %3783
      %v3785 = vrcp.pop %v3754
      %v3786 = vrcp.pop %v3756
      %v3787 = vrcp.pop %v3758
      %v3788 = vrcp.pop %v3760
      %v3789 = vrcp.pop %v3762
      %v3790 = vrcp.pop %v3764
      %v3791 = vrcp.pop %v3766
      %v3792 = vrcp.pop %v3768
      %v3793 = vrcp.pop %v3770
      %v3794 = vrcp.pop %v3772
      %v3795 = vrcp.pop %v3774
      %v3796 = vrcp.pop %v3776
      %v3797 = vrcp.pop %v3778
      %v3798 = vrcp.pop %v3780
      %v3799 = vrcp.pop %v3782
      %v3800 = vrcp.pop %v3784
      %v3801 = vmul.f32 %v3722, %v3785
      %v3802 = vmul.f32 %v3724, %v3786
      %v3803 = vmul.f32 %v3726, %v3787
      %v3804 = vmul.f32 %v3728, %v3788
      %v3805 = vmul.f32 %v3730, %v3789
      %v3806 = vmul.f32 %v3732, %v3790
      %v3807 = vmul.f32 %v3734, %v3791
      %v3808 = vmul.f32 %v3736, %v3792
      %v3809 = vmul.f32 %v3738, %v3793
      %v3810 = vmul.f32 %v3740, %v3794
      %v3811 = vmul.f32 %v3742, %v3795
      %v3812 = vmul.f32 %v3744, %v3796
      %v3813 = vmul.f32 %v3746, %v3797
      %v3814 = vmul.f32 %v3748, %v3798
      %v3815 = vmul.f32 %v3750, %v3799
      %v3816 = vmul.f32 %v3752, %v3800
      %v3817 = vld [vmem:[%s5] sm:$0xff]
      %v3818 = vld [vmem:[%s5 + $0x8] sm:$0xff]
      %v3819 = vld [vmem:[%s5 + $0x10] sm:$0xff]
      %v3820 = vld [vmem:[%s5 + $0x18] sm:$0xff]
      %v3821 = vld [vmem:[%s5 + $0x20] sm:$0xff]
      %v3822 = vld [vmem:[%s5 + $0x28] sm:$0xff]
      %v3823 = vld [vmem:[%s5 + $0x30] sm:$0xff]
      %v3824 = vld [vmem:[%s5 + $0x38] sm:$0xff]
      %v3825 = vld [vmem:[%s5 + $0x40] sm:$0xff]
      %v3826 = vld [vmem:[%s5 + $0x48] sm:$0xff]
      %v3827 = vld [vmem:[%s5 + $0x50] sm:$0xff]
      %v3828 = vld [vmem:[%s5 + $0x58] sm:$0xff]
      %v3829 = vld [vmem:[%s5 + $0x60] sm:$0xff]
      %v3830 = vld [vmem:[%s5 + $0x68] sm:$0xff]
      %v3831 = vld [vmem:[%s5 + $0x70] sm:$0xff]
      %v3832 = vld [vmem:[%s5 + $0x78] sm:$0xff]
      %v3833 = vld [vmem:[%s5 + $0x80] sm:$0xff]
      %v3834 = vld [vmem:[%s5 + $0x88] sm:$0xff]
      %v3835 = vld [vmem:[%s5 + $0x90] sm:$0xff]
      %v3836 = vld [vmem:[%s5 + $0x98] sm:$0xff]
      %v3837 = vld [vmem:[%s5 + $0xa0] sm:$0xff]
      %v3838 = vld [vmem:[%s5 + $0xa8] sm:$0xff]
      %v3839 = vld [vmem:[%s5 + $0xb0] sm:$0xff]
      %v3840 = vld [vmem:[%s5 + $0xb8] sm:$0xff]
      %v3841 = vld [vmem:[%s5 + $0xc0] sm:$0xff]
      %v3842 = vld [vmem:[%s5 + $0xc8] sm:$0xff]
      %v3843 = vld [vmem:[%s5 + $0xd0] sm:$0xff]
      %v3844 = vld [vmem:[%s5 + $0xd8] sm:$0xff]
      %v3845 = vld [vmem:[%s5 + $0xe0] sm:$0xff]
      %v3846 = vld [vmem:[%s5 + $0xe8] sm:$0xff]
      %v3847 = vld [vmem:[%s5 + $0xf0] sm:$0xff]
      %v3848 = vld [vmem:[%s5 + $0xf8] sm:$0xff]
      %v3849 = vld [vmem:[%s5 + $0x100] sm:$0xff]
      %v3850 = vld [vmem:[%s5 + $0x108] sm:$0xff]
      %v3851 = vld [vmem:[%s5 + $0x110] sm:$0xff]
      %v3852 = vld [vmem:[%s5 + $0x118] sm:$0xff]
      %v3853 = vld [vmem:[%s5 + $0x120] sm:$0xff]
      %v3854 = vld [vmem:[%s5 + $0x128] sm:$0xff]
      %v3855 = vld [vmem:[%s5 + $0x130] sm:$0xff]
      %v3856 = vld [vmem:[%s5 + $0x138] sm:$0xff]
      %v3857 = vld [vmem:[%s5 + $0x140] sm:$0xff]
      %v3858 = vld [vmem:[%s5 + $0x148] sm:$0xff]
      %v3859 = vld [vmem:[%s5 + $0x150] sm:$0xff]
      %v3860 = vld [vmem:[%s5 + $0x158] sm:$0xff]
      %v3861 = vld [vmem:[%s5 + $0x160] sm:$0xff]
      %v3862 = vld [vmem:[%s5 + $0x168] sm:$0xff]
      %v3863 = vld [vmem:[%s5 + $0x170] sm:$0xff]
      %v3864 = vld [vmem:[%s5 + $0x178] sm:$0xff]
      %v3865 = vld [vmem:[%s5 + $0x180] sm:$0xff]
      %v3866 = vld [vmem:[%s5 + $0x188] sm:$0xff]
      %v3867 = vld [vmem:[%s5 + $0x190] sm:$0xff]
      %v3868 = vld [vmem:[%s5 + $0x198] sm:$0xff]
      %v3869 = vld [vmem:[%s5 + $0x1a0] sm:$0xff]
      %v3870 = vld [vmem:[%s5 + $0x1a8] sm:$0xff]
      %v3871 = vld [vmem:[%s5 + $0x1b0] sm:$0xff]
      %v3872 = vld [vmem:[%s5 + $0x1b8] sm:$0xff]
      %v3873 = vld [vmem:[%s5 + $0x1c0] sm:$0xff]
      %v3874 = vld [vmem:[%s5 + $0x1c8] sm:$0xff]
      %v3875 = vld [vmem:[%s5 + $0x1d0] sm:$0xff]
      %v3876 = vld [vmem:[%s5 + $0x1d8] sm:$0xff]
      %v3877 = vld [vmem:[%s5 + $0x1e0] sm:$0xff]
      %v3878 = vld [vmem:[%s5 + $0x1e8] sm:$0xff]
      %v3879 = vld [vmem:[%s5 + $0x1f0] sm:$0xff]
      %v3880 = vld [vmem:[%s5 + $0x1f8] sm:$0xff]
      %3881 = vmatprep.subr.mxu0 %v3818
      %3882 = vmatpush1.msra.mxu0 %v3817
      %3883 = vmatprep.subr.mxu0 %v3820
      %3884 = vmatpush1.msra.mxu0 %v3819
      %3885 = vmatprep.subr.mxu0 %v3822
      %3886 = vmatpush1.msra.mxu0 %v3821
      %3887 = vmatprep.subr.mxu0 %v3824
      %3888 = vmatpush1.msra.mxu0 %v3823
      %3889 = vmatprep.subr.mxu0 %v3826
      %3890 = vmatpush1.msra.mxu0 %v3825
      %3891 = vmatprep.subr.mxu0 %v3828
      %3892 = vmatpush1.msra.mxu0 %v3827
      %3893 = vmatprep.subr.mxu0 %v3830
      %3894 = vmatpush1.msra.mxu0 %v3829
      %3895 = vmatprep.subr.mxu0 %v3832
      %3896 = vmatpush1.msra.mxu0 %v3831
      %3897 = vmatprep.subr.mxu0 %v3834
      %3898 = vmatpush1.msra.mxu0 %v3833
      %3899 = vmatprep.subr.mxu0 %v3836
      %3900 = vmatpush1.msra.mxu0 %v3835
      %3901 = vmatprep.subr.mxu0 %v3838
      %3902 = vmatpush1.msra.mxu0 %v3837
      %3903 = vmatprep.subr.mxu0 %v3840
      %3904 = vmatpush1.msra.mxu0 %v3839
      %3905 = vmatprep.subr.mxu0 %v3842
      %3906 = vmatpush1.msra.mxu0 %v3841
      %3907 = vmatprep.subr.mxu0 %v3844
      %3908 = vmatpush1.msra.mxu0 %v3843
      %3909 = vmatprep.subr.mxu0 %v3846
      %3910 = vmatpush1.msra.mxu0 %v3845
      %3911 = vmatprep.subr.mxu0 %v3848
      %3912 = vmatpush1.msra.mxu0 %v3847
      %3913 = vmatprep.subr.mxu0 %v3850
      %3914 = vmatpush1.msra.mxu0 %v3849
      %3915 = vmatprep.subr.mxu0 %v3852
      %3916 = vmatpush1.msra.mxu0 %v3851
      %3917 = vmatprep.subr.mxu0 %v3854
      %3918 = vmatpush1.msra.mxu0 %v3853
      %3919 = vmatprep.subr.mxu0 %v3856
      %3920 = vmatpush1.msra.mxu0 %v3855
      %3921 = vmatprep.subr.mxu0 %v3858
      %3922 = vmatpush1.msra.mxu0 %v3857
      %3923 = vmatprep.subr.mxu0 %v3860
      %3924 = vmatpush1.msra.mxu0 %v3859
      %3925 = vmatprep.subr.mxu0 %v3862
      %3926 = vmatpush1.msra.mxu0 %v3861
      %3927 = vmatprep.subr.mxu0 %v3864
      %3928 = vmatpush1.msra.mxu0 %v3863
      %3929 = vmatprep.subr.mxu0 %v3866
      %3930 = vmatpush1.msra.mxu0 %v3865
      %3931 = vmatprep.subr.mxu0 %v3868
      %3932 = vmatpush1.msra.mxu0 %v3867
      %3933 = vmatprep.subr.mxu0 %v3870
      %3934 = vmatpush1.msra.mxu0 %v3869
      %3935 = vmatprep.subr.mxu0 %v3872
      %3936 = vmatpush1.msra.mxu0 %v3871
      %3937 = vmatprep.subr.mxu0 %v3874
      %3938 = vmatpush1.msra.mxu0 %v3873
      %3939 = vmatprep.subr.mxu0 %v3876
      %3940 = vmatpush1.msra.mxu0 %v3875
      %3941 = vmatprep.subr.mxu0 %v3878
      %3942 = vmatpush1.msra.mxu0 %v3877
      %3943 = vmatprep.subr.mxu0 %v3880
      %3944 = vmatpush1.msra.mxu0 %v3879
      %3945 = vmatprep.mubr.f32.mxu0 %v3334
      %3946 = vmatmul.mubr.f32.gmra.mrb[0].mxu0 %v3333
      %v3947 = vpop.f32.mrb[0].mxu0
      %v3948 = vadd.f32 0.0, %v3947
      %v3949 = vpop.f32.mrb[0].mxu0
      %v3950 = vadd.f32 0.0, %v3949
      %3951 = vmatprep.mubr.f32.mxu0 %v3336
      %3952 = vmatmul.mubr.f32.gmra.mrb[0].mxu0 %v3335
      %v3953 = vpop.f32.mrb[0].mxu0
      %v3954 = vadd.f32 0.0, %v3953
      %v3955 = vpop.f32.mrb[0].mxu0
      %v3956 = vadd.f32 0.0, %v3955
      %3957 = vmatprep.mubr.f32.mxu0 %v3338
      %3958 = vmatmul.mubr.f32.gmra.mrb[0].mxu0 %v3337
      %v3959 = vpop.f32.mrb[0].mxu0
      %v3960 = vadd.f32 0.0, %v3959
      %v3961 = vpop.f32.mrb[0].mxu0
      %v3962 = vadd.f32 0.0, %v3961
      %3963 = vmatprep.mubr.f32.mxu0 %v3340
      %3964 = vmatmul.mubr.f32.gmra.mrb[0].mxu0 %v3339
      %v3965 = vpop.f32.mrb[0].mxu0
      %v3966 = vadd.f32 0.0, %v3965
      %v3967 = vpop.f32.mrb[0].mxu0
      %v3968 = vadd.f32 0.0, %v3967
      %3969 = vmatprep.mubr.f32.mxu0 %v3342
      %3970 = vmatmul.mubr.f32.gmra.mrb[0].mxu0 %v3341
      %v3971 = vpop.f32.mrb[0].mxu0
      %v3972 = vadd.f32 0.0, %v3971
      %v3973 = vpop.f32.mrb[0].mxu0
      %v3974 = vadd.f32 0.0, %v3973
      %3975 = vmatprep.mubr.f32.mxu0 %v3344
      %3976 = vmatmul.mubr.f32.gmra.mrb[0].mxu0 %v3343
      %v3977 = vpop.f32.mrb[0].mxu0
      %v3978 = vadd.f32 0.0, %v3977
      %v3979 = vpop.f32.mrb[0].mxu0
      %v3980 = vadd.f32 0.0, %v3979
      %3981 = vmatprep.mubr.f32.mxu0 %v3346
      %3982 = vmatmul.mubr.f32.gmra.mrb[0].mxu0 %v3345
      %v3983 = vpop.f32.mrb[0].mxu0
      %v3984 = vadd.f32 0.0, %v3983
      %v3985 = vpop.f32.mrb[0].mxu0
      %v3986 = vadd.f32 0.0, %v3985
      %3987 = vmatprep.mubr.f32.mxu0 %v3348
      %3988 = vmatmul.mubr.f32.gmra.mrb[0].mxu0 %v3347
      %v3989 = vpop.f32.mrb[0].mxu0
      %v3990 = vadd.f32 0.0, %v3989
      %v3991 = vpop.f32.mrb[0].mxu0
      %v3992 = vadd.f32 0.0, %v3991
      %3993 = vmatprep.mubr.f32.mxu0 %v3350
      %3994 = vmatmul.mubr.f32.gmra.mrb[0].mxu0 %v3349
      %v3995 = vpop.f32.mrb[0].mxu0
      %v3996 = vadd.f32 0.0, %v3995
      %v3997 = vpop.f32.mrb[0].mxu0
      %v3998 = vadd.f32 0.0, %v3997
      %3999 = vmatprep.mubr.f32.mxu0 %v3352
      %4000 = vmatmul.mubr.f32.gmra.mrb[0].mxu0 %v3351
      %v4001 = vpop.f32.mrb[0].mxu0
      %v4002 = vadd.f32 0.0, %v4001
      %v4003 = vpop.f32.mrb[0].mxu0
      %v4004 = vadd.f32 0.0, %v4003
      %4005 = vmatprep.mubr.f32.mxu0 %v3354
      %4006 = vmatmul.mubr.f32.gmra.mrb[0].mxu0 %v3353
      %v4007 = vpop.f32.mrb[0].mxu0
      %v4008 = vadd.f32 0.0, %v4007
      %v4009 = vpop.f32.mrb[0].mxu0
      %v4010 = vadd.f32 0.0, %v4009
      %4011 = vmatprep.mubr.f32.mxu0 %v3356
      %4012 = vmatmul.mubr.f32.gmra.mrb[0].mxu0 %v3355
      %v4013 = vpop.f32.mrb[0].mxu0
      %v4014 = vadd.f32 0.0, %v4013
      %v4015 = vpop.f32.mrb[0].mxu0
      %v4016 = vadd.f32 0.0, %v4015
      %4017 = vmatprep.mubr.f32.mxu0 %v3358
      %4018 = vmatmul.mubr.f32.gmra.mrb[0].mxu0 %v3357
      %v4019 = vpop.f32.mrb[0].mxu0
      %v4020 = vadd.f32 0.0, %v4019
      %v4021 = vpop.f32.mrb[0].mxu0
      %v4022 = vadd.f32 0.0, %v4021
      %4023 = vmatprep.mubr.f32.mxu0 %v3360
      %4024 = vmatmul.mubr.f32.gmra.mrb[0].mxu0 %v3359
      %v4025 = vpop.f32.mrb[0].mxu0
      %v4026 = vadd.f32 0.0, %v4025
      %v4027 = vpop.f32.mrb[0].mxu0
      %v4028 = vadd.f32 0.0, %v4027
      %4029 = vmatprep.mubr.f32.mxu0 %v3362
      %4030 = vmatmul.mubr.f32.gmra.mrb[0].mxu0 %v3361
      %v4031 = vpop.f32.mrb[0].mxu0
      %v4032 = vadd.f32 0.0, %v4031
      %v4033 = vpop.f32.mrb[0].mxu0
      %v4034 = vadd.f32 0.0, %v4033
      %4035 = vmatprep.mubr.f32.mxu0 %v3364
      %4036 = vmatmul.mubr.f32.gmra.mrb[0].mxu0 %v3363
      %v4037 = vpop.f32.mrb[0].mxu0
      %v4038 = vadd.f32 0.0, %v4037
      %v4039 = vpop.f32.mrb[0].mxu0
      %v4040 = vadd.f32 0.0, %v4039
      %4041 = vdwg.mxu0
      %v4042 = vld [vmem:[%s6] sm:$0x3]
      %v4044 = vlaneseq
      %v4045 = vshrl.u32 %v4044, 7
      %v4046 = vsub.s32 0, %v4045
      %v4047 = vrot.slane %v4042, %v4046
      %v4048 = vlaneseq
      %v4049 = vshrl.u32 %v4048, 7
      %v4050 = vsub.s32 1, %v4049
      %v4051 = vrot.slane %v4042, %v4050
      %4054 = vmatprep.subr.mxu0 %v3950
      %4055 = vmatpush1.msra.mxu0 %v3948
      %4056 = vmatprep.subr.mxu0 %v3956
      %4057 = vmatpush1.msra.mxu0 %v3954
      %4058 = vmatprep.subr.mxu0 %v3962
      %4059 = vmatpush1.msra.mxu0 %v3960
      %4060 = vmatprep.subr.mxu0 %v3968
      %4061 = vmatpush1.msra.mxu0 %v3966
      %4062 = vmatprep.subr.mxu0 %v3974
      %4063 = vmatpush1.msra.mxu0 %v3972
      %4064 = vmatprep.subr.mxu0 %v3980
      %4065 = vmatpush1.msra.mxu0 %v3978
      %4066 = vmatprep.subr.mxu0 %v3986
      %4067 = vmatpush1.msra.mxu0 %v3984
      %4068 = vmatprep.subr.mxu0 %v3992
      %4069 = vmatpush1.msra.mxu0 %v3990
      %4070 = vmatprep.subr.mxu0 %v3998
      %4071 = vmatpush1.msra.mxu0 %v3996
      %4072 = vmatprep.subr.mxu0 %v4004
      %4073 = vmatpush1.msra.mxu0 %v4002
      %4074 = vmatprep.subr.mxu0 %v4010
      %4075 = vmatpush1.msra.mxu0 %v4008
      %4076 = vmatprep.subr.mxu0 %v4016
      %4077 = vmatpush1.msra.mxu0 %v4014
      %4078 = vmatprep.subr.mxu0 %v4022
      %4079 = vmatpush1.msra.mxu0 %v4020
      %4080 = vmatprep.subr.mxu0 %v4028
      %4081 = vmatpush1.msra.mxu0 %v4026
      %4082 = vmatprep.subr.mxu0 %v4034
      %4083 = vmatpush1.msra.mxu0 %v4032
      %4084 = vmatprep.subr.mxu0 %v4040
      %4085 = vmatpush1.msra.mxu0 %v4038
      %4086 = vmatprep.subr.mxu0 0.0
      %4087 = vmatpush1.msra.mxu0 0.0
      %4088 = vmatprep.subr.mxu0 0.0
      %4089 = vmatpush1.msra.mxu0 0.0
      %4090 = vmatprep.subr.mxu0 0.0
      %4091 = vmatpush1.msra.mxu0 0.0
      %4092 = vmatprep.subr.mxu0 0.0
      %4093 = vmatpush1.msra.mxu0 0.0
      %4094 = vmatprep.subr.mxu0 0.0
      %4095 = vmatpush1.msra.mxu0 0.0
      %4096 = vmatprep.subr.mxu0 0.0
      %4097 = vmatpush1.msra.mxu0 0.0
      %4098 = vmatprep.subr.mxu0 0.0
      %4099 = vmatpush1.msra.mxu0 0.0
      %4100 = vmatprep.subr.mxu0 0.0
      %4101 = vmatpush1.msra.mxu0 0.0
      %4102 = vmatprep.subr.mxu0 0.0
      %4103 = vmatpush1.msra.mxu0 0.0
      %4104 = vmatprep.subr.mxu0 0.0
      %4105 = vmatpush1.msra.mxu0 0.0
      %4106 = vmatprep.subr.mxu0 0.0
      %4107 = vmatpush1.msra.mxu0 0.0
      %4108 = vmatprep.subr.mxu0 0.0
      %4109 = vmatpush1.msra.mxu0 0.0
      %4110 = vmatprep.subr.mxu0 0.0
      %4111 = vmatpush1.msra.mxu0 0.0
      %4112 = vmatprep.subr.mxu0 0.0
      %4113 = vmatpush1.msra.mxu0 0.0
      %4114 = vmatprep.subr.mxu0 0.0
      %4115 = vmatpush1.msra.mxu0 0.0
      %4116 = vmatprep.subr.mxu0 0.0
      %4117 = vmatpush1.msra.mxu0 0.0
      %4118 = vmatprep.mubr.f32.mxu0 0.0
      %4119 = vmatmul.mubr.f32.gmra.mrb[0].mxu0 %v3801
      %v4120 = vpop.f32.mrb[0].mxu0
      %v4121 = vadd.f32 %v4047, %v4120
      %v4122 = vpop.f32.mrb[0].mxu0
      %v4123 = vadd.f32 %v4051, %v4122
      %4124 = vmatprep.mubr.f32.mxu0 0.0
      %4125 = vmatmul.mubr.f32.gmra.mrb[0].mxu0 %v3802
      %v4126 = vpop.f32.mrb[0].mxu0
      %v4127 = vadd.f32 %v4047, %v4126
      %v4128 = vpop.f32.mrb[0].mxu0
      %v4129 = vadd.f32 %v4051, %v4128
      %4130 = vmatprep.mubr.f32.mxu0 0.0
      %4131 = vmatmul.mubr.f32.gmra.mrb[0].mxu0 %v3803
      %v4132 = vpop.f32.mrb[0].mxu0
      %v4133 = vadd.f32 %v4047, %v4132
      %v4134 = vpop.f32.mrb[0].mxu0
      %v4135 = vadd.f32 %v4051, %v4134
      %4136 = vmatprep.mubr.f32.mxu0 0.0
      %4137 = vmatmul.mubr.f32.gmra.mrb[0].mxu0 %v3804
      %v4138 = vpop.f32.mrb[0].mxu0
      %v4139 = vadd.f32 %v4047, %v4138
      %v4140 = vpop.f32.mrb[0].mxu0
      %v4141 = vadd.f32 %v4051, %v4140
      %4142 = vmatprep.mubr.f32.mxu0 0.0
      %4143 = vmatmul.mubr.f32.gmra.mrb[0].mxu0 %v3805
      %v4144 = vpop.f32.mrb[0].mxu0
      %v4145 = vadd.f32 %v4047, %v4144
      %v4146 = vpop.f32.mrb[0].mxu0
      %v4147 = vadd.f32 %v4051, %v4146
      %4148 = vmatprep.mubr.f32.mxu0 0.0
      %4149 = vmatmul.mubr.f32.gmra.mrb[0].mxu0 %v3806
      %v4150 = vpop.f32.mrb[0].mxu0
      %v4151 = vadd.f32 %v4047, %v4150
      %v4152 = vpop.f32.mrb[0].mxu0
      %v4153 = vadd.f32 %v4051, %v4152
      %4154 = vmatprep.mubr.f32.mxu0 0.0
      %4155 = vmatmul.mubr.f32.gmra.mrb[0].mxu0 %v3807
      %v4156 = vpop.f32.mrb[0].mxu0
      %v4157 = vadd.f32 %v4047, %v4156
      %v4158 = vpop.f32.mrb[0].mxu0
      %v4159 = vadd.f32 %v4051, %v4158
      %4160 = vmatprep.mubr.f32.mxu0 0.0
      %4161 = vmatmul.mubr.f32.gmra.mrb[0].mxu0 %v3808
      %v4162 = vpop.f32.mrb[0].mxu0
      %v4163 = vadd.f32 %v4047, %v4162
      %v4164 = vpop.f32.mrb[0].mxu0
      %v4165 = vadd.f32 %v4051, %v4164
      %4166 = vmatprep.mubr.f32.mxu0 0.0
      %4167 = vmatmul.mubr.f32.gmra.mrb[0].mxu0 %v3809
      %v4168 = vpop.f32.mrb[0].mxu0
      %v4169 = vadd.f32 %v4047, %v4168
      %v4170 = vpop.f32.mrb[0].mxu0
      %v4171 = vadd.f32 %v4051, %v4170
      %4172 = vmatprep.mubr.f32.mxu0 0.0
      %4173 = vmatmul.mubr.f32.gmra.mrb[0].mxu0 %v3810
      %v4174 = vpop.f32.mrb[0].mxu0
      %v4175 = vadd.f32 %v4047, %v4174
      %v4176 = vpop.f32.mrb[0].mxu0
      %v4177 = vadd.f32 %v4051, %v4176
      %4178 = vmatprep.mubr.f32.mxu0 0.0
      %4179 = vmatmul.mubr.f32.gmra.mrb[0].mxu0 %v3811
      %v4180 = vpop.f32.mrb[0].mxu0
      %v4181 = vadd.f32 %v4047, %v4180
      %v4182 = vpop.f32.mrb[0].mxu0
      %v4183 = vadd.f32 %v4051, %v4182
      %4184 = vmatprep.mubr.f32.mxu0 0.0
      %4185 = vmatmul.mubr.f32.gmra.mrb[0].mxu0 %v3812
      %v4186 = vpop.f32.mrb[0].mxu0
      %v4187 = vadd.f32 %v4047, %v4186
      %v4188 = vpop.f32.mrb[0].mxu0
      %v4189 = vadd.f32 %v4051, %v4188
      %4190 = vmatprep.mubr.f32.mxu0 0.0
      %4191 = vmatmul.mubr.f32.gmra.mrb[0].mxu0 %v3813
      %v4192 = vpop.f32.mrb[0].mxu0
      %v4193 = vadd.f32 %v4047, %v4192
      %v4194 = vpop.f32.mrb[0].mxu0
      %v4195 = vadd.f32 %v4051, %v4194
      %4196 = vmatprep.mubr.f32.mxu0 0.0
      %4197 = vmatmul.mubr.f32.gmra.mrb[0].mxu0 %v3814
      %v4198 = vpop.f32.mrb[0].mxu0
      %v4199 = vadd.f32 %v4047, %v4198
      %v4200 = vpop.f32.mrb[0].mxu0
      %v4201 = vadd.f32 %v4051, %v4200
      %4202 = vmatprep.mubr.f32.mxu0 0.0
      %4203 = vmatmul.mubr.f32.gmra.mrb[0].mxu0 %v3815
      %v4204 = vpop.f32.mrb[0].mxu0
      %v4205 = vadd.f32 %v4047, %v4204
      %v4206 = vpop.f32.mrb[0].mxu0
      %v4207 = vadd.f32 %v4051, %v4206
      %4208 = vmatprep.mubr.f32.mxu0 0.0
      %4209 = vmatmul.mubr.f32.gmra.mrb[0].mxu0 %v3816
      %v4210 = vpop.f32.mrb[0].mxu0
      %v4211 = vadd.f32 %v4047, %v4210
      %v4212 = vpop.f32.mrb[0].mxu0
      %v4213 = vadd.f32 %v4051, %v4212
      %4214 = vdwg.mxu0
      %v4215 = vadd.f32 %v4121, %v3333
      %v4216 = vadd.f32 %v4123, %v3334
      %v4217 = vadd.f32 %v4127, %v3335
      %v4218 = vadd.f32 %v4129, %v3336
      %v4219 = vadd.f32 %v4133, %v3337
      %v4220 = vadd.f32 %v4135, %v3338
      %v4221 = vadd.f32 %v4139, %v3339
      %v4222 = vadd.f32 %v4141, %v3340
      %v4223 = vadd.f32 %v4145, %v3341
      %v4224 = vadd.f32 %v4147, %v3342
      %v4225 = vadd.f32 %v4151, %v3343
      %v4226 = vadd.f32 %v4153, %v3344
      %v4227 = vadd.f32 %v4157, %v3345
      %v4228 = vadd.f32 %v4159, %v3346
      %v4229 = vadd.f32 %v4163, %v3347
      %v4230 = vadd.f32 %v4165, %v3348
      %v4231 = vadd.f32 %v4169, %v3349
      %v4232 = vadd.f32 %v4171, %v3350
      %v4233 = vadd.f32 %v4175, %v3351
      %v4234 = vadd.f32 %v4177, %v3352
      %v4235 = vadd.f32 %v4181, %v3353
      %v4236 = vadd.f32 %v4183, %v3354
      %v4237 = vadd.f32 %v4187, %v3355
      %v4238 = vadd.f32 %v4189, %v3356
      %v4239 = vadd.f32 %v4193, %v3357
      %v4240 = vadd.f32 %v4195, %v3358
      %v4241 = vadd.f32 %v4199, %v3359
      %v4242 = vadd.f32 %v4201, %v3360
      %v4243 = vadd.f32 %v4205, %v3361
      %v4244 = vadd.f32 %v4207, %v3362
      %v4245 = vadd.f32 %v4211, %v3363
      %v4246 = vadd.f32 %v4213, %v3364
      %v4247 = vpack.c.bf16 %v2793, %v2789
      %v4248 = vpack.c.bf16 %v2803, %v2799
      %v4249 = vpack.c.bf16 %v2813, %v2809
      %v4250 = vpack.c.bf16 %v2823, %v2819
      %v4251 = vpack.c.bf16 %v2833, %v2829
      %v4252 = vpack.c.bf16 %v2843, %v2839
      %v4253 = vpack.c.bf16 %v2853, %v2849
      %v4254 = vpack.c.bf16 %v2863, %v2859
      %v4255 = vpack.c.bf16 %v2873, %v2869
      %v4256 = vpack.c.bf16 %v2883, %v2879
      %v4257 = vpack.c.bf16 %v2893, %v2889
      %v4258 = vpack.c.bf16 %v2903, %v2899
      %v4259 = vpack.c.bf16 %v2913, %v2909
      %v4260 = vpack.c.bf16 %v2923, %v2919
      %v4261 = vpack.c.bf16 %v2933, %v2929
      %v4262 = vpack.c.bf16 %v2943, %v2939
      %v4263 = vpack.c.bf16 %v4217, %v4215
      %v4264 = vpack.c.bf16 %v4218, %v4216
      %v4265 = vpack.c.bf16 %v4221, %v4219
      %v4266 = vpack.c.bf16 %v4222, %v4220
      %v4267 = vpack.c.bf16 %v4225, %v4223
      %v4268 = vpack.c.bf16 %v4226, %v4224
      %v4269 = vpack.c.bf16 %v4229, %v4227
      %v4270 = vpack.c.bf16 %v4230, %v4228
      %v4271 = vpack.c.bf16 %v4233, %v4231
      %v4272 = vpack.c.bf16 %v4234, %v4232
      %v4273 = vpack.c.bf16 %v4237, %v4235
      %v4274 = vpack.c.bf16 %v4238, %v4236
      %v4275 = vpack.c.bf16 %v4241, %v4239
      %v4276 = vpack.c.bf16 %v4242, %v4240
      %v4277 = vpack.c.bf16 %v4245, %v4243
      %v4278 = vpack.c.bf16 %v4246, %v4244
      %4279 = vmatprep.subr.bf16.mxu0 %v4264
      %4280 = vmatpush1.bf16.msra.mxu0 %v4263
      %4281 = vmatprep.subr.bf16.mxu0 %v4266
      %4282 = vmatpush1.bf16.msra.mxu0 %v4265
      %4283 = vmatprep.subr.bf16.mxu0 %v4268
      %4284 = vmatpush1.bf16.msra.mxu0 %v4267
      %4285 = vmatprep.subr.bf16.mxu0 %v4270
      %4286 = vmatpush1.bf16.msra.mxu0 %v4269
      %4287 = vmatprep.subr.bf16.mxu0 %v4272
      %4288 = vmatpush1.bf16.msra.mxu0 %v4271
      %4289 = vmatprep.subr.bf16.mxu0 %v4274
      %4290 = vmatpush1.bf16.msra.mxu0 %v4273
      %4291 = vmatprep.subr.bf16.mxu0 %v4276
      %4292 = vmatpush1.bf16.msra.mxu0 %v4275
      %4293 = vmatprep.subr.bf16.mxu0 %v4278
      %4294 = vmatpush1.bf16.msra.mxu0 %v4277
      %4295 = vmatprep.subr.bf16.mxu0 0
      %4296 = vmatpush1.bf16.msra.mxu0 0
      %4297 = vmatprep.subr.bf16.mxu0 0
      %4298 = vmatpush1.bf16.msra.mxu0 0
      %4299 = vmatprep.subr.bf16.mxu0 0
      %4300 = vmatpush1.bf16.msra.mxu0 0
      %4301 = vmatprep.subr.bf16.mxu0 0
      %4302 = vmatpush1.bf16.msra.mxu0 0
      %4303 = vmatprep.subr.bf16.mxu0 0
      %4304 = vmatpush1.bf16.msra.mxu0 0
      %4305 = vmatprep.subr.bf16.mxu0 0
      %4306 = vmatpush1.bf16.msra.mxu0 0
      %4307 = vmatprep.subr.bf16.mxu0 0
      %4308 = vmatpush1.bf16.msra.mxu0 0
      %4309 = vmatprep.subr.bf16.mxu0 0
      %4310 = vmatpush1.bf16.msra.mxu0 0
      %4311 = vmatprep.mubr.bf16.mxu0 0
      %4312 = vmatmul.mubr.bf16.gmra.mrb[0].mxu0 %v4247
      %v4313 = vpop.f32.mrb[0].mxu0
      %v4314 = vadd.f32 0.0, %v4313
      %v4315 = vpop.f32.mrb[0].mxu0
      %v4316 = vadd.f32 0.0, %v4315
      %v4317 = vpop.f32.mrb[0].mxu0
      %v4318 = vadd.f32 0.0, %v4317
      %v4319 = vpop.f32.mrb[0].mxu0
      %v4320 = vadd.f32 0.0, %v4319
      %4321 = vmatprep.mubr.bf16.mxu0 0
      %4322 = vmatmul.mubr.bf16.gmra.mrb[0].mxu0 %v4248
      %v4323 = vpop.f32.mrb[0].mxu0
      %v4324 = vadd.f32 0.0, %v4323
      %v4325 = vpop.f32.mrb[0].mxu0
      %v4326 = vadd.f32 0.0, %v4325
      %v4327 = vpop.f32.mrb[0].mxu0
      %v4328 = vadd.f32 0.0, %v4327
      %v4329 = vpop.f32.mrb[0].mxu0
      %v4330 = vadd.f32 0.0, %v4329
      %4331 = vmatprep.mubr.bf16.mxu0 0
      %4332 = vmatmul.mubr.bf16.gmra.mrb[0].mxu0 %v4249
      %v4333 = vpop.f32.mrb[0].mxu0
      %v4334 = vadd.f32 0.0, %v4333
      %v4335 = vpop.f32.mrb[0].mxu0
      %v4336 = vadd.f32 0.0, %v4335
      %v4337 = vpop.f32.mrb[0].mxu0
      %v4338 = vadd.f32 0.0, %v4337
      %v4339 = vpop.f32.mrb[0].mxu0
      %v4340 = vadd.f32 0.0, %v4339
      %4341 = vmatprep.mubr.bf16.mxu0 0
      %4342 = vmatmul.mubr.bf16.gmra.mrb[0].mxu0 %v4250
      %v4343 = vpop.f32.mrb[0].mxu0
      %v4344 = vadd.f32 0.0, %v4343
      %v4345 = vpop.f32.mrb[0].mxu0
      %v4346 = vadd.f32 0.0, %v4345
      %v4347 = vpop.f32.mrb[0].mxu0
      %v4348 = vadd.f32 0.0, %v4347
      %v4349 = vpop.f32.mrb[0].mxu0
      %v4350 = vadd.f32 0.0, %v4349
      %4351 = vmatprep.mubr.bf16.mxu0 0
      %4352 = vmatmul.mubr.bf16.gmra.mrb[0].mxu0 %v4251
      %v4353 = vpop.f32.mrb[0].mxu0
      %v4354 = vadd.f32 0.0, %v4353
      %v4355 = vpop.f32.mrb[0].mxu0
      %v4356 = vadd.f32 0.0, %v4355
      %v4357 = vpop.f32.mrb[0].mxu0
      %v4358 = vadd.f32 0.0, %v4357
      %v4359 = vpop.f32.mrb[0].mxu0
      %v4360 = vadd.f32 0.0, %v4359
      %4361 = vmatprep.mubr.bf16.mxu0 0
      %4362 = vmatmul.mubr.bf16.gmra.mrb[0].mxu0 %v4252
      %v4363 = vpop.f32.mrb[0].mxu0
      %v4364 = vadd.f32 0.0, %v4363
      %v4365 = vpop.f32.mrb[0].mxu0
      %v4366 = vadd.f32 0.0, %v4365
      %v4367 = vpop.f32.mrb[0].mxu0
      %v4368 = vadd.f32 0.0, %v4367
      %v4369 = vpop.f32.mrb[0].mxu0
      %v4370 = vadd.f32 0.0, %v4369
      %4371 = vmatprep.mubr.bf16.mxu0 0
      %4372 = vmatmul.mubr.bf16.gmra.mrb[0].mxu0 %v4253
      %v4373 = vpop.f32.mrb[0].mxu0
      %v4374 = vadd.f32 0.0, %v4373
      %v4375 = vpop.f32.mrb[0].mxu0
      %v4376 = vadd.f32 0.0, %v4375
      %v4377 = vpop.f32.mrb[0].mxu0
      %v4378 = vadd.f32 0.0, %v4377
      %v4379 = vpop.f32.mrb[0].mxu0
      %v4380 = vadd.f32 0.0, %v4379
      %4381 = vmatprep.mubr.bf16.mxu0 0
      %4382 = vmatmul.mubr.bf16.gmra.mrb[0].mxu0 %v4254
      %v4383 = vpop.f32.mrb[0].mxu0
      %v4384 = vadd.f32 0.0, %v4383
      %v4385 = vpop.f32.mrb[0].mxu0
      %v4386 = vadd.f32 0.0, %v4385
      %v4387 = vpop.f32.mrb[0].mxu0
      %v4388 = vadd.f32 0.0, %v4387
      %v4389 = vpop.f32.mrb[0].mxu0
      %v4390 = vadd.f32 0.0, %v4389
      %4391 = vmatprep.mubr.bf16.mxu0 0
      %4392 = vmatmul.mubr.bf16.gmra.mrb[0].mxu0 %v4255
      %v4393 = vpop.f32.mrb[0].mxu0
      %v4394 = vadd.f32 0.0, %v4393
      %v4395 = vpop.f32.mrb[0].mxu0
      %v4396 = vadd.f32 0.0, %v4395
      %v4397 = vpop.f32.mrb[0].mxu0
      %v4398 = vadd.f32 0.0, %v4397
      %v4399 = vpop.f32.mrb[0].mxu0
      %v4400 = vadd.f32 0.0, %v4399
      %4401 = vmatprep.mubr.bf16.mxu0 0
      %4402 = vmatmul.mubr.bf16.gmra.mrb[0].mxu0 %v4256
      %v4403 = vpop.f32.mrb[0].mxu0
      %v4404 = vadd.f32 0.0, %v4403
      %v4405 = vpop.f32.mrb[0].mxu0
      %v4406 = vadd.f32 0.0, %v4405
      %v4407 = vpop.f32.mrb[0].mxu0
      %v4408 = vadd.f32 0.0, %v4407
      %v4409 = vpop.f32.mrb[0].mxu0
      %v4410 = vadd.f32 0.0, %v4409
      %4411 = vmatprep.mubr.bf16.mxu0 0
      %4412 = vmatmul.mubr.bf16.gmra.mrb[0].mxu0 %v4257
      %v4413 = vpop.f32.mrb[0].mxu0
      %v4414 = vadd.f32 0.0, %v4413
      %v4415 = vpop.f32.mrb[0].mxu0
      %v4416 = vadd.f32 0.0, %v4415
      %v4417 = vpop.f32.mrb[0].mxu0
      %v4418 = vadd.f32 0.0, %v4417
      %v4419 = vpop.f32.mrb[0].mxu0
      %v4420 = vadd.f32 0.0, %v4419
      %4421 = vmatprep.mubr.bf16.mxu0 0
      %4422 = vmatmul.mubr.bf16.gmra.mrb[0].mxu0 %v4258
      %v4423 = vpop.f32.mrb[0].mxu0
      %v4424 = vadd.f32 0.0, %v4423
      %v4425 = vpop.f32.mrb[0].mxu0
      %v4426 = vadd.f32 0.0, %v4425
      %v4427 = vpop.f32.mrb[0].mxu0
      %v4428 = vadd.f32 0.0, %v4427
      %v4429 = vpop.f32.mrb[0].mxu0
      %v4430 = vadd.f32 0.0, %v4429
      %4431 = vmatprep.mubr.bf16.mxu0 0
      %4432 = vmatmul.mubr.bf16.gmra.mrb[0].mxu0 %v4259
      %v4433 = vpop.f32.mrb[0].mxu0
      %v4434 = vadd.f32 0.0, %v4433
      %v4435 = vpop.f32.mrb[0].mxu0
      %v4436 = vadd.f32 0.0, %v4435
      %v4437 = vpop.f32.mrb[0].mxu0
      %v4438 = vadd.f32 0.0, %v4437
      %v4439 = vpop.f32.mrb[0].mxu0
      %v4440 = vadd.f32 0.0, %v4439
      %4441 = vmatprep.mubr.bf16.mxu0 0
      %4442 = vmatmul.mubr.bf16.gmra.mrb[0].mxu0 %v4260
      %v4443 = vpop.f32.mrb[0].mxu0
      %v4444 = vadd.f32 0.0, %v4443
      %v4445 = vpop.f32.mrb[0].mxu0
      %v4446 = vadd.f32 0.0, %v4445
      %v4447 = vpop.f32.mrb[0].mxu0
      %v4448 = vadd.f32 0.0, %v4447
      %v4449 = vpop.f32.mrb[0].mxu0
      %v4450 = vadd.f32 0.0, %v4449
      %4451 = vmatprep.mubr.bf16.mxu0 0
      %4452 = vmatmul.mubr.bf16.gmra.mrb[0].mxu0 %v4261
      %v4453 = vpop.f32.mrb[0].mxu0
      %v4454 = vadd.f32 0.0, %v4453
      %v4455 = vpop.f32.mrb[0].mxu0
      %v4456 = vadd.f32 0.0, %v4455
      %v4457 = vpop.f32.mrb[0].mxu0
      %v4458 = vadd.f32 0.0, %v4457
      %v4459 = vpop.f32.mrb[0].mxu0
      %v4460 = vadd.f32 0.0, %v4459
      %4461 = vmatprep.mubr.bf16.mxu0 0
      %4462 = vmatmul.mubr.bf16.gmra.mrb[0].mxu0 %v4262
      %v4463 = vpop.f32.mrb[0].mxu0
      %v4464 = vadd.f32 0.0, %v4463
      %v4465 = vpop.f32.mrb[0].mxu0
      %v4466 = vadd.f32 0.0, %v4465
      %v4467 = vpop.f32.mrb[0].mxu0
      %v4468 = vadd.f32 0.0, %v4467
      %v4469 = vpop.f32.mrb[0].mxu0
      %v4470 = vadd.f32 0.0, %v4469
      %4471 = vdwg.mxu0
      %v4472 = vpack.c.bf16 %v4318, %v4314
      %v4473 = vpack.c.bf16 %v4320, %v4316
      %v4474 = vpack.c.bf16 %v4328, %v4324
      %v4475 = vpack.c.bf16 %v4330, %v4326
      %v4476 = vpack.c.bf16 %v4338, %v4334
      %v4477 = vpack.c.bf16 %v4340, %v4336
      %v4478 = vpack.c.bf16 %v4348, %v4344
      %v4479 = vpack.c.bf16 %v4350, %v4346
      %v4480 = vpack.c.bf16 %v4358, %v4354
      %v4481 = vpack.c.bf16 %v4360, %v4356
      %v4482 = vpack.c.bf16 %v4368, %v4364
      %v4483 = vpack.c.bf16 %v4370, %v4366
      %v4484 = vpack.c.bf16 %v4378, %v4374
      %v4485 = vpack.c.bf16 %v4380, %v4376
      %v4486 = vpack.c.bf16 %v4388, %v4384
      %v4487 = vpack.c.bf16 %v4390, %v4386
      %v4488 = vpack.c.bf16 %v4398, %v4394
      %v4489 = vpack.c.bf16 %v4400, %v4396
      %v4490 = vpack.c.bf16 %v4408, %v4404
      %v4491 = vpack.c.bf16 %v4410, %v4406
      %v4492 = vpack.c.bf16 %v4418, %v4414
      %v4493 = vpack.c.bf16 %v4420, %v4416
      %v4494 = vpack.c.bf16 %v4428, %v4424
      %v4495 = vpack.c.bf16 %v4430, %v4426
      %v4496 = vpack.c.bf16 %v4438, %v4434
      %v4497 = vpack.c.bf16 %v4440, %v4436
      %v4498 = vpack.c.bf16 %v4448, %v4444
      %v4499 = vpack.c.bf16 %v4450, %v4446
      %v4500 = vpack.c.bf16 %v4458, %v4454
      %v4501 = vpack.c.bf16 %v4460, %v4456
      %v4502 = vpack.c.bf16 %v4468, %v4464
      %v4503 = vpack.c.bf16 %v4470, %v4466
      %v4504 = vld [vmem:[%s7] sm:$0xf]
      %v4505 = vld [vmem:[%s7 + $0x4] sm:$0xf]
      %v4506 = vld [vmem:[%s7 + $0x8] sm:$0xf]
      %v4507 = vld [vmem:[%s7 + $0xc] sm:$0xf]
      %v4508 = vld [vmem:[%s7 + $0x10] sm:$0xf]
      %v4509 = vld [vmem:[%s7 + $0x14] sm:$0xf]
      %v4510 = vld [vmem:[%s7 + $0x18] sm:$0xf]
      %v4511 = vld [vmem:[%s7 + $0x1c] sm:$0xf]
      %v4512 = vld [vmem:[%s7 + $0x20] sm:$0xf]
      %v4513 = vld [vmem:[%s7 + $0x24] sm:$0xf]
      %v4514 = vld [vmem:[%s7 + $0x28] sm:$0xf]
      %v4515 = vld [vmem:[%s7 + $0x2c] sm:$0xf]
      %v4516 = vld [vmem:[%s7 + $0x30] sm:$0xf]
      %v4517 = vld [vmem:[%s7 + $0x34] sm:$0xf]
      %v4518 = vld [vmem:[%s7 + $0x38] sm:$0xf]
      %v4519 = vld [vmem:[%s7 + $0x3c] sm:$0xf]
      %v4520 = vld [vmem:[%s7 + $0x40] sm:$0xf]
      %v4521 = vld [vmem:[%s7 + $0x44] sm:$0xf]
      %v4522 = vld [vmem:[%s7 + $0x48] sm:$0xf]
      %v4523 = vld [vmem:[%s7 + $0x4c] sm:$0xf]
      %v4524 = vld [vmem:[%s7 + $0x50] sm:$0xf]
      %v4525 = vld [vmem:[%s7 + $0x54] sm:$0xf]
      %v4526 = vld [vmem:[%s7 + $0x58] sm:$0xf]
      %v4527 = vld [vmem:[%s7 + $0x5c] sm:$0xf]
      %v4528 = vld [vmem:[%s7 + $0x60] sm:$0xf]
      %v4529 = vld [vmem:[%s7 + $0x64] sm:$0xf]
      %v4530 = vld [vmem:[%s7 + $0x68] sm:$0xf]
      %v4531 = vld [vmem:[%s7 + $0x6c] sm:$0xf]
      %v4532 = vld [vmem:[%s7 + $0x70] sm:$0xf]
      %v4533 = vld [vmem:[%s7 + $0x74] sm:$0xf]
      %v4534 = vld [vmem:[%s7 + $0x78] sm:$0xf]
      %v4535 = vld [vmem:[%s7 + $0x7c] sm:$0xf]
      %v4536 = vld [vmem:[%s8] sm:$0x1]
      %v4538 = vlaneseq
      %v4539 = vshrl.u32 %v4538, 7
      %v4540 = vsub.s32 0, %v4539
      %v4541 = vrot.slane %v4536, %v4540
      %v4575 = vunpack.c.l.b16 %v4504
      %v4576 = vunpack.c.l.b16 %v4505
      %v4577 = vunpack.c.l.b16 %v4506
      %v4578 = vunpack.c.l.b16 %v4507
      %v4579 = vunpack.c.l.b16 %v4508
      %v4580 = vunpack.c.l.b16 %v4509
      %v4581 = vunpack.c.l.b16 %v4510
      %v4582 = vunpack.c.l.b16 %v4511
      %v4583 = vunpack.c.l.b16 %v4512
      %v4584 = vunpack.c.l.b16 %v4513
      %v4585 = vunpack.c.l.b16 %v4514
      %v4586 = vunpack.c.l.b16 %v4515
      %v4587 = vunpack.c.l.b16 %v4516
      %v4588 = vunpack.c.l.b16 %v4517
      %v4589 = vunpack.c.l.b16 %v4518
      %v4590 = vunpack.c.l.b16 %v4519
      %v4591 = vunpack.c.l.b16 %v4520
      %v4592 = vunpack.c.l.b16 %v4521
      %v4593 = vunpack.c.l.b16 %v4522
      %v4594 = vunpack.c.l.b16 %v4523
      %v4595 = vunpack.c.l.b16 %v4524
      %v4596 = vunpack.c.l.b16 %v4525
      %v4597 = vunpack.c.l.b16 %v4526
      %v4598 = vunpack.c.l.b16 %v4527
      %v4599 = vunpack.c.l.b16 %v4528
      %v4600 = vunpack.c.l.b16 %v4529
      %v4601 = vunpack.c.l.b16 %v4530
      %v4602 = vunpack.c.l.b16 %v4531
      %v4603 = vunpack.c.l.b16 %v4532
      %v4604 = vunpack.c.l.b16 %v4533
      %v4605 = vunpack.c.l.b16 %v4534
      %v4606 = vunpack.c.l.b16 %v4535
      %v4607 = vpack.c.b16 %v4576, %v4575
      %v4608 = vpack.c.b16 %v4578, %v4577
      %v4609 = vpack.c.b16 %v4580, %v4579
      %v4610 = vpack.c.b16 %v4582, %v4581
      %v4611 = vpack.c.b16 %v4584, %v4583
      %v4612 = vpack.c.b16 %v4586, %v4585
      %v4613 = vpack.c.b16 %v4588, %v4587
      %v4614 = vpack.c.b16 %v4590, %v4589
      %v4615 = vpack.c.b16 %v4592, %v4591
      %v4616 = vpack.c.b16 %v4594, %v4593
      %v4617 = vpack.c.b16 %v4596, %v4595
      %v4618 = vpack.c.b16 %v4598, %v4597
      %v4619 = vpack.c.b16 %v4600, %v4599
      %v4620 = vpack.c.b16 %v4602, %v4601
      %v4621 = vpack.c.b16 %v4604, %v4603
      %v4622 = vpack.c.b16 %v4606, %v4605
      %4639 = vmatprep.subr.bf16.mxu0 0
      %4640 = vmatpush1.bf16.msra.mxu0 %v4607
      %4641 = vmatprep.subr.bf16.mxu0 0
      %4642 = vmatpush1.bf16.msra.mxu0 %v4608
      %4643 = vmatprep.subr.bf16.mxu0 0
      %4644 = vmatpush1.bf16.msra.mxu0 %v4609
      %4645 = vmatprep.subr.bf16.mxu0 0
      %4646 = vmatpush1.bf16.msra.mxu0 %v4610
      %4647 = vmatprep.subr.bf16.mxu0 0
      %4648 = vmatpush1.bf16.msra.mxu0 %v4611
      %4649 = vmatprep.subr.bf16.mxu0 0
      %4650 = vmatpush1.bf16.msra.mxu0 %v4612
      %4651 = vmatprep.subr.bf16.mxu0 0
      %4652 = vmatpush1.bf16.msra.mxu0 %v4613
      %4653 = vmatprep.subr.bf16.mxu0 0
      %4654 = vmatpush1.bf16.msra.mxu0 %v4614
      %4655 = vmatprep.subr.bf16.mxu0 0
      %4656 = vmatpush1.bf16.msra.mxu0 %v4615
      %4657 = vmatprep.subr.bf16.mxu0 0
      %4658 = vmatpush1.bf16.msra.mxu0 %v4616
      %4659 = vmatprep.subr.bf16.mxu0 0
      %4660 = vmatpush1.bf16.msra.mxu0 %v4617
      %4661 = vmatprep.subr.bf16.mxu0 0
      %4662 = vmatpush1.bf16.msra.mxu0 %v4618
      %4663 = vmatprep.subr.bf16.mxu0 0
      %4664 = vmatpush1.bf16.msra.mxu0 %v4619
      %4665 = vmatprep.subr.bf16.mxu0 0
      %4666 = vmatpush1.bf16.msra.mxu0 %v4620
      %4667 = vmatprep.subr.bf16.mxu0 0
      %4668 = vmatpush1.bf16.msra.mxu0 %v4621
      %4669 = vmatprep.subr.bf16.mxu0 0
      %4670 = vmatpush1.bf16.msra.mxu0 %v4622
      %4671 = vmatprep.mubr.bf16.mxu0 %v4473
      %4672 = vmatmul.mubr.bf16.gmra.mrb[0].mxu0 %v4472
      %v4673 = vpop.f32.mrb[0].mxu0
      %v4674 = vadd.f32 %v4541, %v4673
      %v4675 = vpop.f32.mrb[0].mxu0
      %v4676 = vpop.f32.mrb[0].mxu0
      %v4677 = vadd.f32 %v4541, %v4676
      %v4678 = vpop.f32.mrb[0].mxu0
      %4679 = vmatprep.mubr.bf16.mxu0 %v4475
      %4680 = vmatmul.mubr.bf16.gmra.mrb[0].mxu0 %v4474
      %v4681 = vpop.f32.mrb[0].mxu0
      %v4682 = vadd.f32 %v4541, %v4681
      %v4683 = vpop.f32.mrb[0].mxu0
      %v4684 = vpop.f32.mrb[0].mxu0
      %v4685 = vadd.f32 %v4541, %v4684
      %v4686 = vpop.f32.mrb[0].mxu0
      %4687 = vmatprep.mubr.bf16.mxu0 %v4477
      %4688 = vmatmul.mubr.bf16.gmra.mrb[0].mxu0 %v4476
      %v4689 = vpop.f32.mrb[0].mxu0
      %v4690 = vadd.f32 %v4541, %v4689
      %v4691 = vpop.f32.mrb[0].mxu0
      %v4692 = vpop.f32.mrb[0].mxu0
      %v4693 = vadd.f32 %v4541, %v4692
      %v4694 = vpop.f32.mrb[0].mxu0
      %4695 = vmatprep.mubr.bf16.mxu0 %v4479
      %4696 = vmatmul.mubr.bf16.gmra.mrb[0].mxu0 %v4478
      %v4697 = vpop.f32.mrb[0].mxu0
      %v4698 = vadd.f32 %v4541, %v4697
      %v4699 = vpop.f32.mrb[0].mxu0
      %v4700 = vpop.f32.mrb[0].mxu0
      %v4701 = vadd.f32 %v4541, %v4700
      %v4702 = vpop.f32.mrb[0].mxu0
      %4703 = vmatprep.mubr.bf16.mxu0 %v4481
      %4704 = vmatmul.mubr.bf16.gmra.mrb[0].mxu0 %v4480
      %v4705 = vpop.f32.mrb[0].mxu0
      %v4706 = vadd.f32 %v4541, %v4705
      %v4707 = vpop.f32.mrb[0].mxu0
      %v4708 = vpop.f32.mrb[0].mxu0
      %v4709 = vadd.f32 %v4541, %v4708
      %v4710 = vpop.f32.mrb[0].mxu0
      %4711 = vmatprep.mubr.bf16.mxu0 %v4483
      %4712 = vmatmul.mubr.bf16.gmra.mrb[0].mxu0 %v4482
      %v4713 = vpop.f32.mrb[0].mxu0
      %v4714 = vadd.f32 %v4541, %v4713
      %v4715 = vpop.f32.mrb[0].mxu0
      %v4716 = vpop.f32.mrb[0].mxu0
      %v4717 = vadd.f32 %v4541, %v4716
      %v4718 = vpop.f32.mrb[0].mxu0
      %4719 = vmatprep.mubr.bf16.mxu0 %v4485
      %4720 = vmatmul.mubr.bf16.gmra.mrb[0].mxu0 %v4484
      %v4721 = vpop.f32.mrb[0].mxu0
      %v4722 = vadd.f32 %v4541, %v4721
      %v4723 = vpop.f32.mrb[0].mxu0
      %v4724 = vpop.f32.mrb[0].mxu0
      %v4725 = vadd.f32 %v4541, %v4724
      %v4726 = vpop.f32.mrb[0].mxu0
      %4727 = vmatprep.mubr.bf16.mxu0 %v4487
      %4728 = vmatmul.mubr.bf16.gmra.mrb[0].mxu0 %v4486
      %v4729 = vpop.f32.mrb[0].mxu0
      %v4730 = vadd.f32 %v4541, %v4729
      %v4731 = vpop.f32.mrb[0].mxu0
      %v4732 = vpop.f32.mrb[0].mxu0
      %v4733 = vadd.f32 %v4541, %v4732
      %v4734 = vpop.f32.mrb[0].mxu0
      %4735 = vmatprep.mubr.bf16.mxu0 %v4489
      %4736 = vmatmul.mubr.bf16.gmra.mrb[0].mxu0 %v4488
      %v4737 = vpop.f32.mrb[0].mxu0
      %v4738 = vadd.f32 %v4541, %v4737
      %v4739 = vpop.f32.mrb[0].mxu0
      %v4740 = vpop.f32.mrb[0].mxu0
      %v4741 = vadd.f32 %v4541, %v4740
      %v4742 = vpop.f32.mrb[0].mxu0
      %4743 = vmatprep.mubr.bf16.mxu0 %v4491
      %4744 = vmatmul.mubr.bf16.gmra.mrb[0].mxu0 %v4490
      %v4745 = vpop.f32.mrb[0].mxu0
      %v4746 = vadd.f32 %v4541, %v4745
      %v4747 = vpop.f32.mrb[0].mxu0
      %v4748 = vpop.f32.mrb[0].mxu0
      %v4749 = vadd.f32 %v4541, %v4748
      %v4750 = vpop.f32.mrb[0].mxu0
      %4751 = vmatprep.mubr.bf16.mxu0 %v4493
      %4752 = vmatmul.mubr.bf16.gmra.mrb[0].mxu0 %v4492
      %v4753 = vpop.f32.mrb[0].mxu0
      %v4754 = vadd.f32 %v4541, %v4753
      %v4755 = vpop.f32.mrb[0].mxu0
      %v4756 = vpop.f32.mrb[0].mxu0
      %v4757 = vadd.f32 %v4541, %v4756
      %v4758 = vpop.f32.mrb[0].mxu0
      %4759 = vmatprep.mubr.bf16.mxu0 %v4495
      %4760 = vmatmul.mubr.bf16.gmra.mrb[0].mxu0 %v4494
      %v4761 = vpop.f32.mrb[0].mxu0
      %v4762 = vadd.f32 %v4541, %v4761
      %v4763 = vpop.f32.mrb[0].mxu0
      %v4764 = vpop.f32.mrb[0].mxu0
      %v4765 = vadd.f32 %v4541, %v4764
      %v4766 = vpop.f32.mrb[0].mxu0
      %4767 = vmatprep.mubr.bf16.mxu0 %v4497
      %4768 = vmatmul.mubr.bf16.gmra.mrb[0].mxu0 %v4496
      %v4769 = vpop.f32.mrb[0].mxu0
      %v4770 = vadd.f32 %v4541, %v4769
      %v4771 = vpop.f32.mrb[0].mxu0
      %v4772 = vpop.f32.mrb[0].mxu0
      %v4773 = vadd.f32 %v4541, %v4772
      %v4774 = vpop.f32.mrb[0].mxu0
      %4775 = vmatprep.mubr.bf16.mxu0 %v4499
      %4776 = vmatmul.mubr.bf16.gmra.mrb[0].mxu0 %v4498
      %v4777 = vpop.f32.mrb[0].mxu0
      %v4778 = vadd.f32 %v4541, %v4777
      %v4779 = vpop.f32.mrb[0].mxu0
      %v4780 = vpop.f32.mrb[0].mxu0
      %v4781 = vadd.f32 %v4541, %v4780
      %v4782 = vpop.f32.mrb[0].mxu0
      %4783 = vmatprep.mubr.bf16.mxu0 %v4501
      %4784 = vmatmul.mubr.bf16.gmra.mrb[0].mxu0 %v4500
      %v4785 = vpop.f32.mrb[0].mxu0
      %v4786 = vadd.f32 %v4541, %v4785
      %v4787 = vpop.f32.mrb[0].mxu0
      %v4788 = vpop.f32.mrb[0].mxu0
      %v4789 = vadd.f32 %v4541, %v4788
      %v4790 = vpop.f32.mrb[0].mxu0
      %4791 = vmatprep.mubr.bf16.mxu0 %v4503
      %4792 = vmatmul.mubr.bf16.gmra.mrb[0].mxu0 %v4502
      %v4793 = vpop.f32.mrb[0].mxu0
      %v4794 = vadd.f32 %v4541, %v4793
      %v4795 = vpop.f32.mrb[0].mxu0
      %v4796 = vpop.f32.mrb[0].mxu0
      %v4797 = vadd.f32 %v4541, %v4796
      %v4798 = vpop.f32.mrb[0].mxu0
      %4799 = vdwg.mxu0
      %v4800 = vadd.f32 %v4674, %v2600
      %v4801 = vadd.f32 %v4677, %v2601
      %v4802 = vadd.f32 %v4682, %v2602
      %v4803 = vadd.f32 %v4685, %v2603
      %v4804 = vadd.f32 %v4690, %v2604
      %v4805 = vadd.f32 %v4693, %v2605
      %v4806 = vadd.f32 %v4698, %v2606
      %v4807 = vadd.f32 %v4701, %v2607
      %v4808 = vadd.f32 %v4706, %v2608
      %v4809 = vadd.f32 %v4709, %v2609
      %v4810 = vadd.f32 %v4714, %v2610
      %v4811 = vadd.f32 %v4717, %v2611
      %v4812 = vadd.f32 %v4722, %v2612
      %v4813 = vadd.f32 %v4725, %v2613
      %v4814 = vadd.f32 %v4730, %v2614
      %v4815 = vadd.f32 %v4733, %v2615
      %v4816 = vadd.f32 %v4738, %v2616
      %v4817 = vadd.f32 %v4741, %v2617
      %v4818 = vadd.f32 %v4746, %v2618
      %v4819 = vadd.f32 %v4749, %v2619
      %v4820 = vadd.f32 %v4754, %v2620
      %v4821 = vadd.f32 %v4757, %v2621
      %v4822 = vadd.f32 %v4762, %v2622
      %v4823 = vadd.f32 %v4765, %v2623
      %v4824 = vadd.f32 %v4770, %v2624
      %v4825 = vadd.f32 %v4773, %v2625
      %v4826 = vadd.f32 %v4778, %v2626
      %v4827 = vadd.f32 %v4781, %v2627
      %v4828 = vadd.f32 %v4786, %v2628
      %v4829 = vadd.f32 %v4789, %v2629
      %v4830 = vadd.f32 %v4794, %v2630
      %v4831 = vadd.f32 %v4797, %v2631
      %v4832 = vld [vmem:[%s9] sm:$0xf]
      %v4833 = vpack.c.bf16 %v4801, %v4800
      %v4834 = vpack.c.bf16 %v4803, %v4802
      %v4835 = vpack.c.bf16 %v4805, %v4804
      %v4836 = vpack.c.bf16 %v4807, %v4806
      %v4837 = vpack.c.bf16 %v4809, %v4808
      %v4838 = vpack.c.bf16 %v4811, %v4810
      %v4839 = vpack.c.bf16 %v4813, %v4812
      %v4840 = vpack.c.bf16 %v4815, %v4814
      %v4841 = vpack.c.bf16 %v4817, %v4816
      %v4842 = vpack.c.bf16 %v4819, %v4818
      %v4843 = vpack.c.bf16 %v4821, %v4820
      %v4844 = vpack.c.bf16 %v4823, %v4822
      %v4845 = vpack.c.bf16 %v4825, %v4824
      %v4846 = vpack.c.bf16 %v4827, %v4826
      %v4847 = vpack.c.bf16 %v4829, %v4828
      %v4848 = vpack.c.bf16 %v4831, %v4830
      %v4849 = vld [vmem:[%s10] sm:$0xff]
      %4851 = vset.pattern.permute.xlu0 0
      %4852 = vperm.xlu0 %4851, %v4849
      %v4853 = vpop.permute.xlu0 %4852
      %v4856 = vsel %vm2705, %v4832, 0
      %v4859 = vsel %vm2705, %v4833, 0
      %v4862 = vsel %vm2705, %v4834, 0
      %v4865 = vsel %vm2705, %v4835, 0
      %v4868 = vsel %vm2705, %v4836, 0
      %v4871 = vsel %vm2705, %v4837, 0
      %v4874 = vsel %vm2705, %v4838, 0
      %v4877 = vsel %vm2705, %v4839, 0
      %v4880 = vsel %vm2705, %v4840, 0
      %v4883 = vsel %vm2705, %v4841, 0
      %v4886 = vsel %vm2705, %v4842, 0
      %v4889 = vsel %vm2705, %v4843, 0
      %v4892 = vsel %vm2705, %v4844, 0
      %v4895 = vsel %vm2705, %v4845, 0
      %v4898 = vsel %vm2705, %v4846, 0
      %v4901 = vsel %vm2705, %v4847, 0
      %v4904 = vsel %vm2705, %v4848, 0
      %4906 = vmatprep.subr.bf16.mxu0 0
      %4907 = vmatpush1.bf16.xpose.msra.mxu0 %v4859
      %4908 = vmatprep.subr.bf16.mxu0 0
      %4909 = vmatpush1.bf16.xpose.msra.mxu0 %v4862
      %4910 = vmatprep.subr.bf16.mxu0 0
      %4911 = vmatpush1.bf16.xpose.msra.mxu0 %v4865
      %4912 = vmatprep.subr.bf16.mxu0 0
      %4913 = vmatpush1.bf16.xpose.msra.mxu0 %v4868
      %4914 = vmatprep.subr.bf16.mxu0 0
      %4915 = vmatpush1.bf16.xpose.msra.mxu0 %v4871
      %4916 = vmatprep.subr.bf16.mxu0 0
      %4917 = vmatpush1.bf16.xpose.msra.mxu0 %v4874
      %4918 = vmatprep.subr.bf16.mxu0 0
      %4919 = vmatpush1.bf16.xpose.msra.mxu0 %v4877
      %4920 = vmatprep.subr.bf16.mxu0 0
      %4921 = vmatpush1.bf16.xpose.msra.mxu0 %v4880
      %4922 = vmatprep.subr.bf16.mxu0 0
      %4923 = vmatpush1.bf16.xpose.msra.mxu0 %v4883
      %4924 = vmatprep.subr.bf16.mxu0 0
      %4925 = vmatpush1.bf16.xpose.msra.mxu0 %v4886
      %4926 = vmatprep.subr.bf16.mxu0 0
      %4927 = vmatpush1.bf16.xpose.msra.mxu0 %v4889
      %4928 = vmatprep.subr.bf16.mxu0 0
      %4929 = vmatpush1.bf16.xpose.msra.mxu0 %v4892
      %4930 = vmatprep.subr.bf16.mxu0 0
      %4931 = vmatpush1.bf16.xpose.msra.mxu0 %v4895
      %4932 = vmatprep.subr.bf16.mxu0 0
      %4933 = vmatpush1.bf16.xpose.msra.mxu0 %v4898
      %4934 = vmatprep.subr.bf16.mxu0 0
      %4935 = vmatpush1.bf16.xpose.msra.mxu0 %v4901
      %4936 = vmatprep.subr.bf16.mxu0 0
      %4937 = vmatpush1.bf16.xpose.msra.mxu0 %v4904
      %4938 = vmatprep.mubr.bf16.mxu0 0
      %4939 = vmatmul.mubr.bf16.gmra.mrb[0].mxu0 %v4856
      %v4940 = vpop.f32.mrb[0].mxu0
      %v4941 = vadd.f32 %v4853, %v4940
      %v4942 = vpop.f32.mrb[0].mxu0
      %v4943 = vadd.f32 %v4853, %v4942
      %v4944 = vpop.f32.mrb[0].mxu0
      %v4945 = vpop.f32.mrb[0].mxu0
      %4946 = vdwg.mxu0
      %4947 = vst [vmem:[%s431] sm:$0xff] %v4941
      %4948 = vst [vmem:[%s431 + $0x8] sm:$0xff] %v4943
      %p4949 = scmp.lt.s32.totalorder %s26, 1
      %s4950 = scalar_select %p4949, %s26, 1
      %s4951 = smul.addr %s4950, 2
      %s4952 = smul.addr %s4951, 8
      %s4953 = scalar_lea.vmem %s11, %s4952
      // Predicated region
      $region65: #{psp_head_forward.1} parent=63 // pred_check
        %p4954 = pneg %p295
      $region66: #{psp_head_forward.1} parent=63 // pred_check_branch
        %4956 = sbr.rel (%p4954) target = $region68
      $region67: #{psp_head_forward.1} parent=63 // pred_region
        _
      $region68: #{psp_head_forward.1} parent=63 // pred_fallthru
        _
    $region64: #{psp_head_forward.1} parent=5 // pred_fallthru
      _
    %p4957 = scmp.le.s32.totalorder 2, %s17
    // Predicated region
    $region69: #{psp_head_forward.1} parent=5 // pred_check
      %p4958 = pneg %p4957
    $region70: #{psp_head_forward.1} parent=5 // pred_check_branch
      %4960 = sbr.rel (%p4958) target = $region72
    $region71: #{psp_head_forward.1} parent=5 // pred_region
      %s4961 = ssub.s32 %s17, 2
      // Predicated region
      $region73: #{psp_head_forward.1} parent=71 // pred_check
        %p4962 = pneg %p301
      $region74: #{psp_head_forward.1} parent=71 // pred_check_branch
        %4964 = sbr.rel (%p4962) target = $region76
      $region75: #{psp_head_forward.1} parent=71 // pred_region
        %p4965 = scmp.lt.s32.totalorder %s28, 1
        %s4966 = scalar_select %p4965, %s28, 1
        %s4967 = smul.addr %s4966, 2
        %s4968 = smul.addr %s4967, 8
        %s4969 = scalar_lea.vmem %s11, %s4968
      $region76: #{psp_head_forward.1} parent=71 // pred_fallthru
        _
    $region72: #{psp_head_forward.1} parent=5 // pred_fallthru
      _
  $region6: #{psp_head_forward.1} parent=0 // loop_footer
    %s21 = sadd.s32 1, %s17
  $region7: #{psp_head_forward.1} parent=0 // loop_footer_branch
    %16 = sbr.rel target = $region3
  $region8: #{psp_head_forward.1} parent=0 // loop_exit
    _

</llo_original>
